<compile_context>
chip_gen: v7x
topology: tpu7x:2x2x1
jax: 0.10.0
libtpu: 0.0.40
codegen_flags: <defaults>
</compile_context>

<pallas_src>
import jax
import jax.numpy as jnp
from jax.experimental import pallas as pl
from jax.experimental.pallas import tpu as pltpu

LANE = 128
X_SUBLANE = 16   # bf16 packs 2 rows per 32-bit sublane -> use 16-row granules


def mlp_kernel(x_ref,
               w1_ref, b1_ref,
               w2_ref, b2_ref,
               w3_ref, b3_ref,
               w4_ref, b4_ref,
               w5_ref, b5_ref,
               o_ref):
    """All 5 layers fused; intermediates live in vregs/VMEM.

    bf16 operands into the MXU, f32 accumulation + bias + ReLU epilogue,
    bf16 activations carried between layers (cast after the f32 ReLU, so the
    elementwise math itself stays f32 -> also fine on v5e's f32-only VPU).
    """

    def layer(h_bf16, w_ref, b_ref, relu):
        acc = jnp.dot(h_bf16, w_ref[...], preferred_element_type=jnp.float32)
        acc = acc + b_ref[...]
        if relu:
            return jnp.maximum(acc, 0.0).astype(jnp.bfloat16)
        return acc

    h = x_ref[...]                          # (bm, in_dim) bf16
    h = layer(h, w1_ref, b1_ref, True)      # dropout -> identity (eval mode)
    h = layer(h, w2_ref, b2_ref, True)
    h = layer(h, w3_ref, b3_ref, True)
    h = layer(h, w4_ref, b4_ref, True)
    out = layer(h, w5_ref, b5_ref, False)   # lane-padded final layer, f32 acc
    o_ref[...] = out.astype(o_ref.dtype)    # bf16 lane-dense store


def _x_index_map(i):
    return (i, 0)


def _const_index_map(i):
    return (0, 0)


def _round_up(n, m):
    return -(-n // m) * m


def simple_nn_forward(x, params):
    """x: (batch, input_size) float32. params: list of (W, b) per layer,
    W: (fan_in, fan_out), b: (fan_out,). Returns (batch, out_dim) float32."""
    batch, in_dim = x.shape
    n_layers = len(params)
    out_dim = params[-1][0].shape[1]
    padded_out = _round_up(max(out_dim, 1), LANE)   # lane-dense output slab

    # --- pack params: bf16 weights, f32 (1, fan_out) biases, lane-pad last ---
    flat = []
    for li, (w, b) in enumerate(params):
        w = w.astype(jnp.bfloat16)
        b = b.reshape(1, -1).astype(jnp.float32)
        if li == n_layers - 1 and w.shape[1] < padded_out:
            pad = padded_out - w.shape[1]
            w = jnp.pad(w, ((0, 0), (0, pad)))
            b = jnp.pad(b, ((0, 0), (0, pad)))
        flat.append(w)
        flat.append(b)

    # --- batch (M) tiling: big tiles, and >=2 grid steps when possible so ---
    # --- both TensorCores get work on v7x.                                ---
    padded_batch = _round_up(batch, X_SUBLANE)
    desired_bm = 512 if padded_batch >= 1024 else 256
    if padded_batch >= 2 * X_SUBLANE:
        steps = max(2, pl.cdiv(padded_batch, desired_bm))
        bm = _round_up(pl.cdiv(padded_batch, steps), X_SUBLANE)
        padded_batch = bm * steps
    else:
        bm = padded_batch
    if padded_batch != batch:
        x = jnp.pad(x, ((0, padded_batch - batch), (0, 0)))
    grid = (padded_batch // bm,)

    # Input in bf16: halves the per-step x DMA; matmul operands are bf16 anyway.
    x = x.astype(jnp.bfloat16)

    out_spec = pl.BlockSpec((bm, padded_out), _x_index_map)

    def build_in_specs(single_buffer_weights):
        specs = [pl.BlockSpec((bm, in_dim), _x_index_map)]
        # Weights/biases: full-array blocks, constant block index -> loaded
        # once, resident in VMEM across all batch-grid steps.
        for a in flat:
            if single_buffer_weights:
                specs.append(pl.BlockSpec(a.shape, _const_index_map,
                                          pipeline_mode=pl.Buffered(buffer_count=1)))
            else:
                specs.append(pl.BlockSpec(a.shape, _const_index_map))
        return specs

    def call(in_specs):
        return pl.pallas_call(
            mlp_kernel,
            out_shape=jax.ShapeDtypeStruct((padded_batch, padded_out),
                                           jnp.bfloat16),
            grid=grid,
            in_specs=in_specs,
            out_specs=out_spec,
            compiler_params=pltpu.CompilerParams(
                dimension_semantics=("parallel",),   # batch-shard across TCs
                vmem_limit_bytes=32 << 20,
            ),
        )(x, *flat)

    try:
        # Invariant blocks -> single-buffer (no pointless double-buffer DMA).
        out = call(build_in_specs(True))
    except Exception:
        # Fallback if this jax version rejects pipeline_mode on BlockSpec.
        out = call(build_in_specs(False))

    return out[:batch, :out_dim].astype(jnp.float32)


def init_params(key, input_size):
    """Deterministic init mimicking nn.Linear's uniform(-1/sqrt(fan_in), ...).
    W stored transposed as (fan_in, fan_out); b as (fan_out,)."""
    dims = [input_size, 512, 512, 256, 128, 1]
    params = []
    for i in range(len(dims) - 1):
        fan_in, fan_out = dims[i], dims[i + 1]
        key, kw, kb = jax.random.split(key, 3)
        bound = 1.0 / jnp.sqrt(jnp.float32(fan_in))
        w = jax.random.uniform(kw, (fan_in, fan_out), jnp.float32, -bound, bound)
        b = jax.random.uniform(kb, (fan_out,), jnp.float32, -bound, bound)
        params.append((w, b))
    return params


def reference_forward_f32(x, params):
    h = x
    for i, (w, b) in enumerate(params):
        h = h @ w + b.reshape(1, -1)
        if i < len(params) - 1:
            h = jnp.maximum(h, 0.0)
    return h


def reference_forward_bf16(x, params):
    """Mirrors the kernel numerics: bf16 matmul operands, f32 accumulation,
    f32 bias + ReLU epilogue, bf16 inter-layer activations."""
    h = x.astype(jnp.bfloat16)
    for i, (w, b) in enumerate(params):
        h = jnp.dot(h, w.astype(jnp.bfloat16),
                    preferred_element_type=jnp.float32) + b.reshape(1, -1)
        if i < len(params) - 1:
            h = jnp.maximum(h, 0.0).astype(jnp.bfloat16)
    return h


if __name__ == "__main__":
    key = jax.random.PRNGKey(0)
    batch, input_size = 8, 32

    k_x, k_p = jax.random.split(key)
    x = jax.random.normal(k_x, (batch, input_size), jnp.float32)
    params = init_params(k_p, input_size)

    out = simple_nn_forward(x, params)
    out = jax.block_until_ready(out)
    assert out.shape == (batch, 1)

    # Mixed-precision-matched reference (bf16 MXU operands / f32 accumulate).
    # Kernel output is stored as bf16, so allow ~1 bf16 ULP of slack.
    ref_bf16 = reference_forward_bf16(x, params)
    assert jnp.allclose(out, ref_bf16, atol=5e-3, rtol=5e-3), \
        "mismatch vs bf16-matched reference"

    # Loose check against the full-f32 reference (bf16 weights ~0.3% err).
    ref_f32 = reference_forward_f32(x, params)
    assert jnp.allclose(out, ref_f32, atol=5e-2, rtol=5e-2), \
        "mismatch vs f32 reference"

    print("KERNEL_OK")
</pallas_src>

<mosaic_0001>
module attributes {stable_mosaic.version = 11 : i64} {
  func.func @mlp_kernel(%arg0: i32, %arg1: memref<16x32xbf16, #tpu.memory_space<vmem>>, %arg2: memref<32x512xbf16, #tpu.memory_space<vmem>>, %arg3: memref<1x512xf32, #tpu.memory_space<vmem>>, %arg4: memref<512x512xbf16, #tpu.memory_space<vmem>>, %arg5: memref<1x512xf32, #tpu.memory_space<vmem>>, %arg6: memref<512x256xbf16, #tpu.memory_space<vmem>>, %arg7: memref<1x256xf32, #tpu.memory_space<vmem>>, %arg8: memref<256x128xbf16, #tpu.memory_space<vmem>>, %arg9: memref<1x128xf32, #tpu.memory_space<vmem>>, %arg10: memref<128x128xbf16, #tpu.memory_space<vmem>>, %arg11: memref<1x128xf32, #tpu.memory_space<vmem>>, %arg12: memref<16x128xbf16, #tpu.memory_space<vmem>>) attributes {dimension_semantics = [#tpu.dimension_semantics<parallel>], iteration_bounds = array<i64: 1>, scalar_prefetch = 0 : i64, scratch_operands = 0 : i64, tpu.core_type = #tpu.core_type<tc>, window_params = [{transform_indices = @transform_0, window_bounds = array<i64: 16, 32>}, {pipeline_mode = #tpu.pipeline_mode<synchronous>, transform_indices = @transform_1, window_bounds = array<i64: 32, 512>}, {pipeline_mode = #tpu.pipeline_mode<synchronous>, transform_indices = @transform_2, window_bounds = array<i64: 1, 512>}, {pipeline_mode = #tpu.pipeline_mode<synchronous>, transform_indices = @transform_3, window_bounds = array<i64: 512, 512>}, {pipeline_mode = #tpu.pipeline_mode<synchronous>, transform_indices = @transform_4, window_bounds = array<i64: 1, 512>}, {pipeline_mode = #tpu.pipeline_mode<synchronous>, transform_indices = @transform_5, window_bounds = array<i64: 512, 256>}, {pipeline_mode = #tpu.pipeline_mode<synchronous>, transform_indices = @transform_6, window_bounds = array<i64: 1, 256>}, {pipeline_mode = #tpu.pipeline_mode<synchronous>, transform_indices = @transform_7, window_bounds = array<i64: 256, 128>}, {pipeline_mode = #tpu.pipeline_mode<synchronous>, transform_indices = @transform_8, window_bounds = array<i64: 1, 128>}, {pipeline_mode = #tpu.pipeline_mode<synchronous>, transform_indices = @transform_9, window_bounds = array<i64: 128, 128>}, {pipeline_mode = #tpu.pipeline_mode<synchronous>, transform_indices = @transform_10, window_bounds = array<i64: 1, 128>}, {transform_indices = @transform_11, window_bounds = array<i64: 16, 128>}]} {
    %c0 = arith.constant 0 : index
    %c0_0 = arith.constant 0 : index
    %0 = vector.load %arg1[%c0, %c0_0] : memref<16x32xbf16, #tpu.memory_space<vmem>>, vector<16x32xbf16>
    %c0_1 = arith.constant 0 : index
    %c0_2 = arith.constant 0 : index
    %1 = vector.load %arg2[%c0_1, %c0_2] : memref<32x512xbf16, #tpu.memory_space<vmem>>, vector<32x512xbf16>
    %cst = arith.constant dense<0.000000e+00> : vector<16x512xf32>
    %2 = tpu.matmul %0, %1, %cst {dimension_numbers = #tpu.dot_dimension_numbers<[1], [0], [0], [1], [0, 0, 1, 1], [], []>} : vector<16x32xbf16>, vector<32x512xbf16>, vector<16x512xf32> -> vector<16x512xf32>
    %c0_3 = arith.constant 0 : index
    %c0_4 = arith.constant 0 : index
    %3 = vector.load %arg3[%c0_3, %c0_4] : memref<1x512xf32, #tpu.memory_space<vmem>>, vector<1x512xf32>
    %4 = vector.broadcast %3 : vector<1x512xf32> to vector<16x512xf32>
    %5 = arith.addf %2, %4 : vector<16x512xf32>
    %cst_5 = arith.constant 0.000000e+00 : f32
    %6 = vector.broadcast %cst_5 : f32 to vector<16x512xf32>
    %7 = arith.maximumf %5, %6 : vector<16x512xf32>
    %8 = arith.truncf %7 : vector<16x512xf32> to vector<16x512xbf16>
    %c0_6 = arith.constant 0 : index
    %c0_7 = arith.constant 0 : index
    %9 = vector.load %arg4[%c0_6, %c0_7] : memref<512x512xbf16, #tpu.memory_space<vmem>>, vector<512x512xbf16>
    %cst_8 = arith.constant dense<0.000000e+00> : vector<16x512xf32>
    %10 = tpu.matmul %8, %9, %cst_8 {dimension_numbers = #tpu.dot_dimension_numbers<[1], [0], [0], [1], [0, 0, 1, 1], [], []>} : vector<16x512xbf16>, vector<512x512xbf16>, vector<16x512xf32> -> vector<16x512xf32>
    %c0_9 = arith.constant 0 : index
    %c0_10 = arith.constant 0 : index
    %11 = vector.load %arg5[%c0_9, %c0_10] : memref<1x512xf32, #tpu.memory_space<vmem>>, vector<1x512xf32>
    %12 = vector.broadcast %11 : vector<1x512xf32> to vector<16x512xf32>
    %13 = arith.addf %10, %12 : vector<16x512xf32>
    %cst_11 = arith.constant 0.000000e+00 : f32
    %14 = vector.broadcast %cst_11 : f32 to vector<16x512xf32>
    %15 = arith.maximumf %13, %14 : vector<16x512xf32>
    %16 = arith.truncf %15 : vector<16x512xf32> to vector<16x512xbf16>
    %c0_12 = arith.constant 0 : index
    %c0_13 = arith.constant 0 : index
    %17 = vector.load %arg6[%c0_12, %c0_13] : memref<512x256xbf16, #tpu.memory_space<vmem>>, vector<512x256xbf16>
    %cst_14 = arith.constant dense<0.000000e+00> : vector<16x256xf32>
    %18 = tpu.matmul %16, %17, %cst_14 {dimension_numbers = #tpu.dot_dimension_numbers<[1], [0], [0], [1], [0, 0, 1, 1], [], []>} : vector<16x512xbf16>, vector<512x256xbf16>, vector<16x256xf32> -> vector<16x256xf32>
    %c0_15 = arith.constant 0 : index
    %c0_16 = arith.constant 0 : index
    %19 = vector.load %arg7[%c0_15, %c0_16] : memref<1x256xf32, #tpu.memory_space<vmem>>, vector<1x256xf32>
    %20 = vector.broadcast %19 : vector<1x256xf32> to vector<16x256xf32>
    %21 = arith.addf %18, %20 : vector<16x256xf32>
    %cst_17 = arith.constant 0.000000e+00 : f32
    %22 = vector.broadcast %cst_17 : f32 to vector<16x256xf32>
    %23 = arith.maximumf %21, %22 : vector<16x256xf32>
    %24 = arith.truncf %23 : vector<16x256xf32> to vector<16x256xbf16>
    %c0_18 = arith.constant 0 : index
    %c0_19 = arith.constant 0 : index
    %25 = vector.load %arg8[%c0_18, %c0_19] : memref<256x128xbf16, #tpu.memory_space<vmem>>, vector<256x128xbf16>
    %cst_20 = arith.constant dense<0.000000e+00> : vector<16x128xf32>
    %26 = tpu.matmul %24, %25, %cst_20 {dimension_numbers = #tpu.dot_dimension_numbers<[1], [0], [0], [1], [0, 0, 1, 1], [], []>} : vector<16x256xbf16>, vector<256x128xbf16>, vector<16x128xf32> -> vector<16x128xf32>
    %c0_21 = arith.constant 0 : index
    %c0_22 = arith.constant 0 : index
    %27 = vector.load %arg9[%c0_21, %c0_22] : memref<1x128xf32, #tpu.memory_space<vmem>>, vector<1x128xf32>
    %28 = vector.broadcast %27 : vector<1x128xf32> to vector<16x128xf32>
    %29 = arith.addf %26, %28 : vector<16x128xf32>
    %cst_23 = arith.constant 0.000000e+00 : f32
    %30 = vector.broadcast %cst_23 : f32 to vector<16x128xf32>
    %31 = arith.maximumf %29, %30 : vector<16x128xf32>
    %32 = arith.truncf %31 : vector<16x128xf32> to vector<16x128xbf16>
    %c0_24 = arith.constant 0 : index
    %c0_25 = arith.constant 0 : index
    %33 = vector.load %arg10[%c0_24, %c0_25] : memref<128x128xbf16, #tpu.memory_space<vmem>>, vector<128x128xbf16>
    %cst_26 = arith.constant dense<0.000000e+00> : vector<16x128xf32>
    %34 = tpu.matmul %32, %33, %cst_26 {dimension_numbers = #tpu.dot_dimension_numbers<[1], [0], [0], [1], [0, 0, 1, 1], [], []>} : vector<16x128xbf16>, vector<128x128xbf16>, vector<16x128xf32> -> vector<16x128xf32>
    %c0_27 = arith.constant 0 : index
    %c0_28 = arith.constant 0 : index
    %35 = vector.load %arg11[%c0_27, %c0_28] : memref<1x128xf32, #tpu.memory_space<vmem>>, vector<1x128xf32>
    %36 = vector.broadcast %35 : vector<1x128xf32> to vector<16x128xf32>
    %37 = arith.addf %34, %36 : vector<16x128xf32>
    %38 = arith.truncf %37 : vector<16x128xf32> to vector<16x128xbf16>
    %c0_29 = arith.constant 0 : index
    %c0_30 = arith.constant 0 : index
    %39 = vector.load %arg12[%c0_29, %c0_30] : memref<16x128xbf16, #tpu.memory_space<vmem>>, vector<16x128xbf16>
    tpu.vector_store %arg12[%c0_29, %c0_30], %38 {strides = array<i32>} : memref<16x128xbf16, #tpu.memory_space<vmem>>, vector<16x128xbf16>,
    return
  }
  func.func @transform_0(%arg0: i32) -> (i32, i32) {
    %c0_i32 = arith.constant 0 : i32
    %c0_i32_0 = arith.constant 0 : i32
    return %arg0, %c0_i32 : i32, i32
  }
  func.func @transform_1(%arg0: i32) -> (i32, i32) {
    %c0_i32 = arith.constant 0 : i32
    %c0_i32_0 = arith.constant 0 : i32
    %c0_i32_1 = arith.constant 0 : i32
    return %c0_i32, %c0_i32_0 : i32, i32
  }
  func.func @transform_2(%arg0: i32) -> (i32, i32) {
    %c0_i32 = arith.constant 0 : i32
    %c0_i32_0 = arith.constant 0 : i32
    %c0_i32_1 = arith.constant 0 : i32
    return %c0_i32, %c0_i32_0 : i32, i32
  }
  func.func @transform_3(%arg0: i32) -> (i32, i32) {
    %c0_i32 = arith.constant 0 : i32
    %c0_i32_0 = arith.constant 0 : i32
    %c0_i32_1 = arith.constant 0 : i32
    return %c0_i32, %c0_i32_0 : i32, i32
  }
  func.func @transform_4(%arg0: i32) -> (i32, i32) {
    %c0_i32 = arith.constant 0 : i32
    %c0_i32_0 = arith.constant 0 : i32
    %c0_i32_1 = arith.constant 0 : i32
    return %c0_i32, %c0_i32_0 : i32, i32
  }
  func.func @transform_5(%arg0: i32) -> (i32, i32) {
    %c0_i32 = arith.constant 0 : i32
    %c0_i32_0 = arith.constant 0 : i32
    %c0_i32_1 = arith.constant 0 : i32
    return %c0_i32, %c0_i32_0 : i32, i32
  }
  func.func @transform_6(%arg0: i32) -> (i32, i32) {
    %c0_i32 = arith.constant 0 : i32
    %c0_i32_0 = arith.constant 0 : i32
    %c0_i32_1 = arith.constant 0 : i32
    return %c0_i32, %c0_i32_0 : i32, i32
  }
  func.func @transform_7(%arg0: i32) -> (i32, i32) {
    %c0_i32 = arith.constant 0 : i32
    %c0_i32_0 = arith.constant 0 : i32
    %c0_i32_1 = arith.constant 0 : i32
    return %c0_i32, %c0_i32_0 : i32, i32
  }
  func.func @transform_8(%arg0: i32) -> (i32, i32) {
    %c0_i32 = arith.constant 0 : i32
    %c0_i32_0 = arith.constant 0 : i32
    %c0_i32_1 = arith.constant 0 : i32
    return %c0_i32, %c0_i32_0 : i32, i32
  }
  func.func @transform_9(%arg0: i32) -> (i32, i32) {
    %c0_i32 = arith.constant 0 : i32
    %c0_i32_0 = arith.constant 0 : i32
    %c0_i32_1 = arith.constant 0 : i32
    return %c0_i32, %c0_i32_0 : i32, i32
  }
  func.func @transform_10(%arg0: i32) -> (i32, i32) {
    %c0_i32 = arith.constant 0 : i32
    %c0_i32_0 = arith.constant 0 : i32
    %c0_i32_1 = arith.constant 0 : i32
    return %c0_i32, %c0_i32_0 : i32, i32
  }
  func.func @transform_11(%arg0: i32) -> (i32, i32) {
    %c0_i32 = arith.constant 0 : i32
    %c0_i32_0 = arith.constant 0 : i32
    return %arg0, %c0_i32 : i32, i32
  }
}

module attributes {stable_mosaic.version = 11 : i64} {
  func.func @mlp_kernel(%arg0: i32, %arg1: memref<16x32xbf16, #tpu.memory_space<vmem>>, %arg2: memref<32x512xbf16, #tpu.memory_space<vmem>>, %arg3: memref<1x512xf32, #tpu.memory_space<vmem>>, %arg4: memref<512x512xbf16, #tpu.memory_space<vmem>>, %arg5: memref<1x512xf32, #tpu.memory_space<vmem>>, %arg6: memref<512x256xbf16, #tpu.memory_space<vmem>>, %arg7: memref<1x256xf32, #tpu.memory_space<vmem>>, %arg8: memref<256x128xbf16, #tpu.memory_space<vmem>>, %arg9: memref<1x128xf32, #tpu.memory_space<vmem>>, %arg10: memref<128x128xbf16, #tpu.memory_space<vmem>>, %arg11: memref<1x128xf32, #tpu.memory_space<vmem>>, %arg12: memref<16x128xbf16, #tpu.memory_space<vmem>>) attributes {dimension_semantics = [#tpu.dimension_semantics<parallel>], iteration_bounds = array<i64: 1>, scalar_prefetch = 0 : i64, scratch_operands = 0 : i64, tpu.core_type = #tpu.core_type<tc>, window_params = [{transform_indices = @transform_0, window_bounds = array<i64: 16, 32>}, {pipeline_mode = #tpu.pipeline_mode<synchronous>, transform_indices = @transform_1, window_bounds = array<i64: 32, 512>}, {pipeline_mode = #tpu.pipeline_mode<synchronous>, transform_indices = @transform_2, window_bounds = array<i64: 1, 512>}, {pipeline_mode = #tpu.pipeline_mode<synchronous>, transform_indices = @transform_3, window_bounds = array<i64: 512, 512>}, {pipeline_mode = #tpu.pipeline_mode<synchronous>, transform_indices = @transform_4, window_bounds = array<i64: 1, 512>}, {pipeline_mode = #tpu.pipeline_mode<synchronous>, transform_indices = @transform_5, window_bounds = array<i64: 512, 256>}, {pipeline_mode = #tpu.pipeline_mode<synchronous>, transform_indices = @transform_6, window_bounds = array<i64: 1, 256>}, {pipeline_mode = #tpu.pipeline_mode<synchronous>, transform_indices = @transform_7, window_bounds = array<i64: 256, 128>}, {pipeline_mode = #tpu.pipeline_mode<synchronous>, transform_indices = @transform_8, window_bounds = array<i64: 1, 128>}, {pipeline_mode = #tpu.pipeline_mode<synchronous>, transform_indices = @transform_9, window_bounds = array<i64: 128, 128>}, {pipeline_mode = #tpu.pipeline_mode<synchronous>, transform_indices = @transform_10, window_bounds = array<i64: 1, 128>}, {transform_indices = @transform_11, window_bounds = array<i64: 16, 128>}]} {
    %c0 = arith.constant 0 : index
    %c0_0 = arith.constant 0 : index
    %0 = vector.load %arg1[%c0, %c0_0] : memref<16x32xbf16, #tpu.memory_space<vmem>>, vector<16x32xbf16>
    %c0_1 = arith.constant 0 : index
    %c0_2 = arith.constant 0 : index
    %1 = vector.load %arg2[%c0_1, %c0_2] : memref<32x512xbf16, #tpu.memory_space<vmem>>, vector<32x512xbf16>
    %cst = arith.constant dense<0.000000e+00> : vector<16x512xf32>
    %2 = tpu.matmul %0, %1, %cst {dimension_numbers = #tpu.dot_dimension_numbers<[1], [0], [0], [1], [0, 0, 1, 1], [], []>} : vector<16x32xbf16>, vector<32x512xbf16>, vector<16x512xf32> -> vector<16x512xf32>
    %c0_3 = arith.constant 0 : index
    %c0_4 = arith.constant 0 : index
    %3 = vector.load %arg3[%c0_3, %c0_4] : memref<1x512xf32, #tpu.memory_space<vmem>>, vector<1x512xf32>
    %4 = vector.broadcast %3 : vector<1x512xf32> to vector<16x512xf32>
    %5 = arith.addf %2, %4 : vector<16x512xf32>
    %cst_5 = arith.constant 0.000000e+00 : f32
    %6 = vector.broadcast %cst_5 : f32 to vector<16x512xf32>
    %7 = arith.maximumf %5, %6 : vector<16x512xf32>
    %8 = arith.truncf %7 : vector<16x512xf32> to vector<16x512xbf16>
    %c0_6 = arith.constant 0 : index
    %c0_7 = arith.constant 0 : index
    %9 = vector.load %arg4[%c0_6, %c0_7] : memref<512x512xbf16, #tpu.memory_space<vmem>>, vector<512x512xbf16>
    %cst_8 = arith.constant dense<0.000000e+00> : vector<16x512xf32>
    %10 = tpu.matmul %8, %9, %cst_8 {dimension_numbers = #tpu.dot_dimension_numbers<[1], [0], [0], [1], [0, 0, 1, 1], [], []>} : vector<16x512xbf16>, vector<512x512xbf16>, vector<16x512xf32> -> vector<16x512xf32>
    %c0_9 = arith.constant 0 : index
    %c0_10 = arith.constant 0 : index
    %11 = vector.load %arg5[%c0_9, %c0_10] : memref<1x512xf32, #tpu.memory_space<vmem>>, vector<1x512xf32>
    %12 = vector.broadcast %11 : vector<1x512xf32> to vector<16x512xf32>
    %13 = arith.addf %10, %12 : vector<16x512xf32>
    %cst_11 = arith.constant 0.000000e+00 : f32
    %14 = vector.broadcast %cst_11 : f32 to vector<16x512xf32>
    %15 = arith.maximumf %13, %14 : vector<16x512xf32>
    %16 = arith.truncf %15 : vector<16x512xf32> to vector<16x512xbf16>
    %c0_12 = arith.constant 0 : index
    %c0_13 = arith.constant 0 : index
    %17 = vector.load %arg6[%c0_12, %c0_13] : memref<512x256xbf16, #tpu.memory_space<vmem>>, vector<512x256xbf16>
    %cst_14 = arith.constant dense<0.000000e+00> : vector<16x256xf32>
    %18 = tpu.matmul %16, %17, %cst_14 {dimension_numbers = #tpu.dot_dimension_numbers<[1], [0], [0], [1], [0, 0, 1, 1], [], []>} : vector<16x512xbf16>, vector<512x256xbf16>, vector<16x256xf32> -> vector<16x256xf32>
    %c0_15 = arith.constant 0 : index
    %c0_16 = arith.constant 0 : index
    %19 = vector.load %arg7[%c0_15, %c0_16] : memref<1x256xf32, #tpu.memory_space<vmem>>, vector<1x256xf32>
    %20 = vector.broadcast %19 : vector<1x256xf32> to vector<16x256xf32>
    %21 = arith.addf %18, %20 : vector<16x256xf32>
    %cst_17 = arith.constant 0.000000e+00 : f32
    %22 = vector.broadcast %cst_17 : f32 to vector<16x256xf32>
    %23 = arith.maximumf %21, %22 : vector<16x256xf32>
    %24 = arith.truncf %23 : vector<16x256xf32> to vector<16x256xbf16>
    %c0_18 = arith.constant 0 : index
    %c0_19 = arith.constant 0 : index
    %25 = vector.load %arg8[%c0_18, %c0_19] : memref<256x128xbf16, #tpu.memory_space<vmem>>, vector<256x128xbf16>
    %cst_20 = arith.constant dense<0.000000e+00> : vector<16x128xf32>
    %26 = tpu.matmul %24, %25, %cst_20 {dimension_numbers = #tpu.dot_dimension_numbers<[1], [0], [0], [1], [0, 0, 1, 1], [], []>} : vector<16x256xbf16>, vector<256x128xbf16>, vector<16x128xf32> -> vector<16x128xf32>
    %c0_21 = arith.constant 0 : index
    %c0_22 = arith.constant 0 : index
    %27 = vector.load %arg9[%c0_21, %c0_22] : memref<1x128xf32, #tpu.memory_space<vmem>>, vector<1x128xf32>
    %28 = vector.broadcast %27 : vector<1x128xf32> to vector<16x128xf32>
    %29 = arith.addf %26, %28 : vector<16x128xf32>
    %cst_23 = arith.constant 0.000000e+00 : f32
    %30 = vector.broadcast %cst_23 : f32 to vector<16x128xf32>
    %31 = arith.maximumf %29, %30 : vector<16x128xf32>
    %32 = arith.truncf %31 : vector<16x128xf32> to vector<16x128xbf16>
    %c0_24 = arith.constant 0 : index
    %c0_25 = arith.constant 0 : index
    %33 = vector.load %arg10[%c0_24, %c0_25] : memref<128x128xbf16, #tpu.memory_space<vmem>>, vector<128x128xbf16>
    %cst_26 = arith.constant dense<0.000000e+00> : vector<16x128xf32>
    %34 = tpu.matmul %32, %33, %cst_26 {dimension_numbers = #tpu.dot_dimension_numbers<[1], [0], [0], [1], [0, 0, 1, 1], [], []>} : vector<16x128xbf16>, vector<128x128xbf16>, vector<16x128xf32> -> vector<16x128xf32>
    %c0_27 = arith.constant 0 : index
    %c0_28 = arith.constant 0 : index
    %35 = vector.load %arg11[%c0_27, %c0_28] : memref<1x128xf32, #tpu.memory_space<vmem>>, vector<1x128xf32>
    %36 = vector.broadcast %35 : vector<1x128xf32> to vector<16x128xf32>
    %37 = arith.addf %34, %36 : vector<16x128xf32>
    %38 = arith.truncf %37 : vector<16x128xf32> to vector<16x128xbf16>
    %c0_29 = arith.constant 0 : index
    %c0_30 = arith.constant 0 : index
    %39 = vector.load %arg12[%c0_29, %c0_30] : memref<16x128xbf16, #tpu.memory_space<vmem>>, vector<16x128xbf16>
    tpu.vector_store %arg12[%c0_29, %c0_30], %38 {strides = array<i32>} : memref<16x128xbf16, #tpu.memory_space<vmem>>, vector<16x128xbf16>,
    return
  }
  func.func @transform_0(%arg0: i32) -> (i32, i32) {
    %c0_i32 = arith.constant 0 : i32
    %c0_i32_0 = arith.constant 0 : i32
    return %arg0, %c0_i32 : i32, i32
  }
  func.func @transform_1(%arg0: i32) -> (i32, i32) {
    %c0_i32 = arith.constant 0 : i32
    %c0_i32_0 = arith.constant 0 : i32
    %c0_i32_1 = arith.constant 0 : i32
    return %c0_i32, %c0_i32_0 : i32, i32
  }
  func.func @transform_2(%arg0: i32) -> (i32, i32) {
    %c0_i32 = arith.constant 0 : i32
    %c0_i32_0 = arith.constant 0 : i32
    %c0_i32_1 = arith.constant 0 : i32
    return %c0_i32, %c0_i32_0 : i32, i32
  }
  func.func @transform_3(%arg0: i32) -> (i32, i32) {
    %c0_i32 = arith.constant 0 : i32
    %c0_i32_0 = arith.constant 0 : i32
    %c0_i32_1 = arith.constant 0 : i32
    return %c0_i32, %c0_i32_0 : i32, i32
  }
  func.func @transform_4(%arg0: i32) -> (i32, i32) {
    %c0_i32 = arith.constant 0 : i32
    %c0_i32_0 = arith.constant 0 : i32
    %c0_i32_1 = arith.constant 0 : i32
    return %c0_i32, %c0_i32_0 : i32, i32
  }
  func.func @transform_5(%arg0: i32) -> (i32, i32) {
    %c0_i32 = arith.constant 0 : i32
    %c0_i32_0 = arith.constant 0 : i32
    %c0_i32_1 = arith.constant 0 : i32
    return %c0_i32, %c0_i32_0 : i32, i32
  }
  func.func @transform_6(%arg0: i32) -> (i32, i32) {
    %c0_i32 = arith.constant 0 : i32
    %c0_i32_0 = arith.constant 0 : i32
    %c0_i32_1 = arith.constant 0 : i32
    return %c0_i32, %c0_i32_0 : i32, i32
  }
  func.func @transform_7(%arg0: i32) -> (i32, i32) {
    %c0_i32 = arith.constant 0 : i32
    %c0_i32_0 = arith.constant 0 : i32
    %c0_i32_1 = arith.constant 0 : i32
    return %c0_i32, %c0_i32_0 : i32, i32
  }
  func.func @transform_8(%arg0: i32) -> (i32, i32) {
    %c0_i32 = arith.constant 0 : i32
    %c0_i32_0 = arith.constant 0 : i32
    %c0_i32_1 = arith.constant 0 : i32
    return %c0_i32, %c0_i32_0 : i32, i32
  }
  func.func @transform_9(%arg0: i32) -> (i32, i32) {
    %c0_i32 = arith.constant 0 : i32
    %c0_i32_0 = arith.constant 0 : i32
    %c0_i32_1 = arith.constant 0 : i32
    return %c0_i32, %c0_i32_0 : i32, i32
  }
  func.func @transform_10(%arg0: i32) -> (i32, i32) {
    %c0_i32 = arith.constant 0 : i32
    %c0_i32_0 = arith.constant 0 : i32
    %c0_i32_1 = arith.constant 0 : i32
    return %c0_i32, %c0_i32_0 : i32, i32
  }
  func.func @transform_11(%arg0: i32) -> (i32, i32) {
    %c0_i32 = arith.constant 0 : i32
    %c0_i32_0 = arith.constant 0 : i32
    return %arg0, %c0_i32 : i32, i32
  }
}

</mosaic_0001>

<llo_original>
// kernel: tpu_custom_call.1
$region0: #{tpu_custom_call.1}
  #allocation0 [shape = 'u32[]', space=smem, size = 0x4, offset = 0x4, fixed_abs, tag = 'smem constant byte address 0x4 - core index']
  #allocation1 [shape = 'u32[144,128]{1,0:T(1,128)}', space=vmem, size = 0x12000, scoped, tag = 'internal scratch']
  %s0 = inlined_call_operand.hbm [shape: bf16[16,32], index: 0, kind: input, shape index: {}]
  %s1 = inlined_call_operand.hbm [shape: bf16[32,512], index: 1, kind: input, shape index: {}]
  %s2 = inlined_call_operand.vmem [shape: f32[1,512], index: 2, kind: input, shape index: {}]
  %s3 = inlined_call_operand.hbm [shape: bf16[512,512], index: 3, kind: input, shape index: {}]
  %s4 = inlined_call_operand.vmem [shape: f32[1,512], index: 4, kind: input, shape index: {}]
  %s5 = inlined_call_operand.hbm [shape: bf16[512,256], index: 5, kind: input, shape index: {}]
  %s6 = inlined_call_operand.vmem [shape: f32[1,256], index: 6, kind: input, shape index: {}]
  %s7 = inlined_call_operand.hbm [shape: bf16[256,128], index: 7, kind: input, shape index: {}]
  %s8 = inlined_call_operand.vmem [shape: f32[1,128], index: 8, kind: input, shape index: {}]
  %s9 = inlined_call_operand.hbm [shape: bf16[128,128], index: 9, kind: input, shape index: {}]
  %s10 = inlined_call_operand.vmem [shape: f32[1,128], index: 10, kind: input, shape index: {}]
  %s11 = inlined_call_operand.hbm [shape: bf16[16,128], index: 11, kind: output, shape index: {}]
  %s12 = sld [smem:[#allocation0]]
  $region78: #{tpu_custom_call.1} parent=0
    _
  %s14 = ssub.s32 1, %s12
  %s15 = scalar_select 0, %s14, %s12
  $region1: #{tpu_custom_call.1} parent=0
    #allocation2 [shape = 'u8[4096]{0}', space=vmem, size = 0x1000, scoped, tag = 'input window, operand 0, single buffered']
    #allocation3 [shape = 's32[1]{0}', space=sflag, size = 0x4, scoped, tag = 'scoped memory for tpu_custom_call.1']
    #allocation4 [shape = 's32[1]{0}', space=sflag, size = 0x4, scoped, tag = 'scoped memory for tpu_custom_call.1']
    #allocation5 [shape = 'u8[32768]{0}', space=vmem, size = 0x8000, scoped, tag = 'input window, operand 1, single buffered']
    #allocation6 [shape = 's32[1]{0}', space=sflag, size = 0x4, scoped, tag = 'scoped memory for tpu_custom_call.1']
    #allocation7 [shape = 'u8[524288]{0}', space=vmem, size = 0x80000, scoped, tag = 'input window, operand 3, single buffered']
    #allocation8 [shape = 'u8[262144]{0}', space=vmem, size = 0x40000, scoped, tag = 'input window, operand 5, single buffered']
    #allocation9 [shape = 's32[1]{0}', space=sflag, size = 0x4, scoped, tag = 'scoped memory for tpu_custom_call.1']
    #allocation10 [shape = 'u8[65536]{0}', space=vmem, size = 0x10000, scoped, tag = 'input window, operand 7, single buffered']
    #allocation11 [shape = 'u8[32768]{0}', space=vmem, size = 0x8000, scoped, tag = 'input window, operand 9, single buffered']
    #allocation12 [shape = 's32[1]{0}', space=sflag, size = 0x4, scoped, tag = 'scoped memory for tpu_custom_call.1']
    #allocation13 [shape = 'u8[4096]{0}', space=vmem, size = 0x1000, scoped, tag = 'output window, operand 0, single buffered']
    %16 = vsyncpa [#allocation3], 0
    %17 = vsyncpa [#allocation6], 0
    %18 = vsyncpa [#allocation9], 0
    %19 = vsyncpa [#allocation12], 0
    %20 = vsyncpa [#allocation4], 0
    // Predicated region
    $region2: #{tpu_custom_call.1} parent=1 // pred_check
      _
    $region3: #{tpu_custom_call.1} parent=1 // pred_check_branch
      %22 = sbr.rel (0) target = $region5
    $region4: #{tpu_custom_call.1} parent=1 // pred_region
      %s24 = ssub.s32 128, 128
      %25 = vsyncadd [#allocation3], %s24
      %s26 = sshll.u32 [#allocation2], 4
      %s27 = int_to_ptr.vmem [resolvable:$true] %s26
      %32 = dma.hbm_to_vmem [thread:$0]  %s0, 128, %s27, [#allocation3], 64, 64, 4
    $region5: #{tpu_custom_call.1} parent=1 // pred_fallthru
      _
    // Predicated region
    $region6: #{tpu_custom_call.1} parent=1 // pred_check
      _
    $region7: #{tpu_custom_call.1} parent=1 // pred_check_branch
      %34 = sbr.rel (0) target = $region9
    $region8: #{tpu_custom_call.1} parent=1 // pred_region
      %s36 = ssub.s32 1024, 1024
      %37 = vsyncadd [#allocation6], %s36
      %s38 = sshll.u32 [#allocation5], 4
      %s39 = int_to_ptr.vmem [resolvable:$true] %s38
      %44 = dma.hbm_to_vmem [thread:$0]  %s1, 1024, %s39, [#allocation6], 256, 256, 16
    $region9: #{tpu_custom_call.1} parent=1 // pred_fallthru
      _
    // Predicated region
    $region10: #{tpu_custom_call.1} parent=1 // pred_check
      _
    $region11: #{tpu_custom_call.1} parent=1 // pred_check_branch
      %46 = sbr.rel (0) target = $region13
    $region12: #{tpu_custom_call.1} parent=1 // pred_region
      _
    $region13: #{tpu_custom_call.1} parent=1 // pred_fallthru
      _
    // Predicated region
    $region14: #{tpu_custom_call.1} parent=1 // pred_check
      _
    $region15: #{tpu_custom_call.1} parent=1 // pred_check_branch
      %48 = sbr.rel (0) target = $region17
    $region16: #{tpu_custom_call.1} parent=1 // pred_region
      %s50 = ssub.s32 16384, 16384
      %51 = vsyncadd [#allocation6], %s50
      %s52 = sshll.u32 [#allocation7], 4
      %s53 = int_to_ptr.vmem [resolvable:$true] %s52
      %58 = dma.hbm_to_vmem [thread:$0]  %s3, 16384, %s53, [#allocation6], 256, 256, 16
    $region17: #{tpu_custom_call.1} parent=1 // pred_fallthru
      _
    // Predicated region
    $region18: #{tpu_custom_call.1} parent=1 // pred_check
      _
    $region19: #{tpu_custom_call.1} parent=1 // pred_check_branch
      %60 = sbr.rel (0) target = $region21
    $region20: #{tpu_custom_call.1} parent=1 // pred_region
      _
    $region21: #{tpu_custom_call.1} parent=1 // pred_fallthru
      _
    // Predicated region
    $region22: #{tpu_custom_call.1} parent=1 // pred_check
      _
    $region23: #{tpu_custom_call.1} parent=1 // pred_check_branch
      %62 = sbr.rel (0) target = $region25
    $region24: #{tpu_custom_call.1} parent=1 // pred_region
      %s64 = ssub.s32 8192, 8192
      %65 = vsyncadd [#allocation9], %s64
      %s66 = sshll.u32 [#allocation8], 4
      %s67 = int_to_ptr.vmem [resolvable:$true] %s66
      %72 = dma.hbm_to_vmem [thread:$0]  %s5, 8192, %s67, [#allocation9], 128, 128, 8
    $region25: #{tpu_custom_call.1} parent=1 // pred_fallthru
      _
    // Predicated region
    $region26: #{tpu_custom_call.1} parent=1 // pred_check
      _
    $region27: #{tpu_custom_call.1} parent=1 // pred_check_branch
      %74 = sbr.rel (0) target = $region29
    $region28: #{tpu_custom_call.1} parent=1 // pred_region
      _
    $region29: #{tpu_custom_call.1} parent=1 // pred_fallthru
      _
    // Predicated region
    $region30: #{tpu_custom_call.1} parent=1 // pred_check
      _
    $region31: #{tpu_custom_call.1} parent=1 // pred_check_branch
      %76 = sbr.rel (0) target = $region33
    $region32: #{tpu_custom_call.1} parent=1 // pred_region
      %s78 = ssub.s32 2048, 2048
      %79 = vsyncadd [#allocation9], %s78
      %s80 = sshll.u32 [#allocation10], 4
      %s81 = int_to_ptr.vmem [resolvable:$true] %s80
      %86 = dma.hbm_to_vmem [thread:$0]  %s7, 2048, %s81, [#allocation9], 64, 64, 4
    $region33: #{tpu_custom_call.1} parent=1 // pred_fallthru
      _
    // Predicated region
    $region34: #{tpu_custom_call.1} parent=1 // pred_check
      _
    $region35: #{tpu_custom_call.1} parent=1 // pred_check_branch
      %88 = sbr.rel (0) target = $region37
    $region36: #{tpu_custom_call.1} parent=1 // pred_region
      _
    $region37: #{tpu_custom_call.1} parent=1 // pred_fallthru
      _
    // Predicated region
    $region38: #{tpu_custom_call.1} parent=1 // pred_check
      _
    $region39: #{tpu_custom_call.1} parent=1 // pred_check_branch
      %90 = sbr.rel (0) target = $region41
    $region40: #{tpu_custom_call.1} parent=1 // pred_region
      %s92 = ssub.s32 1024, 1024
      %93 = vsyncadd [#allocation12], %s92
      %s94 = sshll.u32 [#allocation11], 4
      %s95 = int_to_ptr.vmem [resolvable:$true] %s94
      %100 = dma.hbm_to_vmem [thread:$0]  %s9, 1024, %s95, [#allocation12], 64, 64, 4
    $region41: #{tpu_custom_call.1} parent=1 // pred_fallthru
      _
    // Predicated region
    $region42: #{tpu_custom_call.1} parent=1 // pred_check
      _
    $region43: #{tpu_custom_call.1} parent=1 // pred_check_branch
      %102 = sbr.rel (0) target = $region45
    $region44: #{tpu_custom_call.1} parent=1 // pred_region
      _
    $region45: #{tpu_custom_call.1} parent=1 // pred_fallthru
      _
    // Predicated region
    $region46: #{tpu_custom_call.1} parent=1 // pred_check
      _
    $region47: #{tpu_custom_call.1} parent=1 // pred_check_branch
      %104 = sbr.rel (0) target = $region49
    $region48: #{tpu_custom_call.1} parent=1 // pred_region
      %105 = dma.done [#allocation3], 128
    $region49: #{tpu_custom_call.1} parent=1 // pred_fallthru
      _
    // Predicated region
    $region50: #{tpu_custom_call.1} parent=1 // pred_check
      _
    $region51: #{tpu_custom_call.1} parent=1 // pred_check_branch
      %107 = sbr.rel (0) target = $region53
    $region52: #{tpu_custom_call.1} parent=1 // pred_region
      %108 = dma.done [#allocation6], 1024
    $region53: #{tpu_custom_call.1} parent=1 // pred_fallthru
      _
    // Predicated region
    $region54: #{tpu_custom_call.1} parent=1 // pred_check
      _
    $region55: #{tpu_custom_call.1} parent=1 // pred_check_branch
      %110 = sbr.rel (0) target = $region57
    $region56: #{tpu_custom_call.1} parent=1 // pred_region
      %111 = dma.done [#allocation6], 16384
    $region57: #{tpu_custom_call.1} parent=1 // pred_fallthru
      _
    // Predicated region
    $region58: #{tpu_custom_call.1} parent=1 // pred_check
      _
    $region59: #{tpu_custom_call.1} parent=1 // pred_check_branch
      %113 = sbr.rel (0) target = $region61
    $region60: #{tpu_custom_call.1} parent=1 // pred_region
      %114 = dma.done [#allocation9], 8192
    $region61: #{tpu_custom_call.1} parent=1 // pred_fallthru
      _
    // Predicated region
    $region62: #{tpu_custom_call.1} parent=1 // pred_check
      _
    $region63: #{tpu_custom_call.1} parent=1 // pred_check_branch
      %116 = sbr.rel (0) target = $region65
    $region64: #{tpu_custom_call.1} parent=1 // pred_region
      %117 = dma.done [#allocation9], 2048
    $region65: #{tpu_custom_call.1} parent=1 // pred_fallthru
      _
    // Predicated region
    $region66: #{tpu_custom_call.1} parent=1 // pred_check
      _
    $region67: #{tpu_custom_call.1} parent=1 // pred_check_branch
      %119 = sbr.rel (0) target = $region69
    $region68: #{tpu_custom_call.1} parent=1 // pred_region
      %120 = dma.done [#allocation12], 1024
    $region69: #{tpu_custom_call.1} parent=1 // pred_fallthru
      _
    %v122 = vld [vmem:[#allocation2] sm:$0xf]
    %v123 = vld [vmem:[#allocation2 + $0x4] sm:$0xf]
    %v124 = vld [vmem:[#allocation5] sm:$0xff]
    %v125 = vld [vmem:[#allocation5 + $0x8] sm:$0xff]
    %v126 = vld [vmem:[#allocation5 + $0x10] sm:$0xff]
    %v127 = vld [vmem:[#allocation5 + $0x18] sm:$0xff]
    %v128 = vld [vmem:[#allocation5 + $0x20] sm:$0xff]
    %v129 = vld [vmem:[#allocation5 + $0x28] sm:$0xff]
    %v130 = vld [vmem:[#allocation5 + $0x30] sm:$0xff]
    %v131 = vld [vmem:[#allocation5 + $0x38] sm:$0xff]
    %v132 = vld [vmem:[%s2] sm:$0xf]
    %v134 = vlaneseq
    %v135 = vshrl.u32 %v134, 7
    %v136 = vsub.s32 0, %v135
    %v137 = vrot.slane %v132, %v136
    %v138 = vlaneseq
    %v139 = vshrl.u32 %v138, 7
    %v140 = vsub.s32 1, %v139
    %v141 = vrot.slane %v132, %v140
    %v142 = vlaneseq
    %v143 = vshrl.u32 %v142, 7
    %v144 = vsub.s32 2, %v143
    %v145 = vrot.slane %v132, %v144
    %v146 = vlaneseq
    %v147 = vshrl.u32 %v146, 7
    %v148 = vsub.s32 3, %v147
    %v149 = vrot.slane %v132, %v148
    %v156 = vunpack.c.l.b16 %v122
    %v157 = vunpack.c.l.b16 %v123
    %v158 = vpack.c.b16 %v157, %v156
    %v167 = vunpack.c.l.b16 %v124
    %v168 = vunpack.c.h.b16 %v124
    %v169 = vunpack.c.l.b16 %v125
    %v170 = vunpack.c.h.b16 %v125
    %v171 = vunpack.c.l.b16 %v126
    %v172 = vunpack.c.h.b16 %v126
    %v173 = vunpack.c.l.b16 %v127
    %v174 = vunpack.c.h.b16 %v127
    %v175 = vunpack.c.l.b16 %v128
    %v176 = vunpack.c.h.b16 %v128
    %v177 = vunpack.c.l.b16 %v129
    %v178 = vunpack.c.h.b16 %v129
    %v179 = vunpack.c.l.b16 %v130
    %v180 = vunpack.c.h.b16 %v130
    %v181 = vunpack.c.l.b16 %v131
    %v182 = vunpack.c.h.b16 %v131
    %v183 = vpack.c.b16 %v171, %v167
    %v184 = vpack.c.b16 %v172, %v168
    %v185 = vpack.c.b16 %v173, %v169
    %v186 = vpack.c.b16 %v174, %v170
    %v187 = vpack.c.b16 %v179, %v175
    %v188 = vpack.c.b16 %v180, %v176
    %v189 = vpack.c.b16 %v181, %v177
    %v190 = vpack.c.b16 %v182, %v178
    %vm199 = vcmask 261120
    %v201 = vsel %vm199, %v158, 0
    %203 = vmatprep.subr.bf16.mxu0 %v184
    %204 = vmatpush1.bf16.msra.mxu0 %v183
    %205 = vmatprep.subr.bf16.mxu0 %v188
    %206 = vmatpush1.bf16.msra.mxu0 %v187
    %207 = vmatprep.subr.bf16.mxu0 0
    %208 = vmatpush1.bf16.msra.mxu0 0
    %209 = vmatprep.subr.bf16.mxu0 0
    %210 = vmatpush1.bf16.msra.mxu0 0
    %211 = vmatprep.subr.bf16.mxu0 0
    %212 = vmatpush1.bf16.msra.mxu0 0
    %213 = vmatprep.subr.bf16.mxu0 0
    %214 = vmatpush1.bf16.msra.mxu0 0
    %215 = vmatprep.subr.bf16.mxu0 0
    %216 = vmatpush1.bf16.msra.mxu0 0
    %217 = vmatprep.subr.bf16.mxu0 0
    %218 = vmatpush1.bf16.msra.mxu0 0
    %219 = vmatprep.subr.bf16.mxu0 0
    %220 = vmatpush1.bf16.msra.mxu0 0
    %221 = vmatprep.subr.bf16.mxu0 0
    %222 = vmatpush1.bf16.msra.mxu0 0
    %223 = vmatprep.subr.bf16.mxu0 0
    %224 = vmatpush1.bf16.msra.mxu0 0
    %225 = vmatprep.subr.bf16.mxu0 0
    %226 = vmatpush1.bf16.msra.mxu0 0
    %227 = vmatprep.subr.bf16.mxu0 0
    %228 = vmatpush1.bf16.msra.mxu0 0
    %229 = vmatprep.subr.bf16.mxu0 0
    %230 = vmatpush1.bf16.msra.mxu0 0
    %231 = vmatprep.subr.bf16.mxu0 0
    %232 = vmatpush1.bf16.msra.mxu0 0
    %233 = vmatprep.subr.bf16.mxu0 0
    %234 = vmatpush1.bf16.msra.mxu0 0
    %235 = vmatprep.mubr.bf16.mxu0 0
    %236 = vmatmul.mubr.bf16.gmra.mrb[0].mxu0 %v201
    %v237 = vpop.f32.mrb[0].mxu0
    %v238 = vadd.f32 %v137, %v237
    %v239 = vpop.f32.mrb[0].mxu0
    %v240 = vadd.f32 %v141, %v239
    %v241 = vpop.f32.mrb[0].mxu0
    %v242 = vadd.f32 %v137, %v241
    %v243 = vpop.f32.mrb[0].mxu0
    %v244 = vadd.f32 %v141, %v243
    %245 = vdwg.mxu0
    %246 = vmatprep.subr.bf16.mxu0 %v186
    %247 = vmatpush1.bf16.msra.mxu0 %v185
    %248 = vmatprep.subr.bf16.mxu0 %v190
    %249 = vmatpush1.bf16.msra.mxu0 %v189
    %250 = vmatprep.subr.bf16.mxu0 0
    %251 = vmatpush1.bf16.msra.mxu0 0
    %252 = vmatprep.subr.bf16.mxu0 0
    %253 = vmatpush1.bf16.msra.mxu0 0
    %254 = vmatprep.subr.bf16.mxu0 0
    %255 = vmatpush1.bf16.msra.mxu0 0
    %256 = vmatprep.subr.bf16.mxu0 0
    %257 = vmatpush1.bf16.msra.mxu0 0
    %258 = vmatprep.subr.bf16.mxu0 0
    %259 = vmatpush1.bf16.msra.mxu0 0
    %260 = vmatprep.subr.bf16.mxu0 0
    %261 = vmatpush1.bf16.msra.mxu0 0
    %262 = vmatprep.subr.bf16.mxu0 0
    %263 = vmatpush1.bf16.msra.mxu0 0
    %264 = vmatprep.subr.bf16.mxu0 0
    %265 = vmatpush1.bf16.msra.mxu0 0
    %266 = vmatprep.subr.bf16.mxu0 0
    %267 = vmatpush1.bf16.msra.mxu0 0
    %268 = vmatprep.subr.bf16.mxu0 0
    %269 = vmatpush1.bf16.msra.mxu0 0
    %270 = vmatprep.subr.bf16.mxu0 0
    %271 = vmatpush1.bf16.msra.mxu0 0
    %272 = vmatprep.subr.bf16.mxu0 0
    %273 = vmatpush1.bf16.msra.mxu0 0
    %274 = vmatprep.subr.bf16.mxu0 0
    %275 = vmatpush1.bf16.msra.mxu0 0
    %276 = vmatprep.subr.bf16.mxu0 0
    %277 = vmatpush1.bf16.msra.mxu0 0
    %278 = vmatprep.mubr.bf16.mxu0 0
    %279 = vmatmul.mubr.bf16.gmra.mrb[0].mxu0 %v201
    %v280 = vpop.f32.mrb[0].mxu0
    %v281 = vadd.f32 %v145, %v280
    %v282 = vpop.f32.mrb[0].mxu0
    %v283 = vadd.f32 %v149, %v282
    %v284 = vpop.f32.mrb[0].mxu0
    %v285 = vadd.f32 %v145, %v284
    %v286 = vpop.f32.mrb[0].mxu0
    %v287 = vadd.f32 %v149, %v286
    %288 = vdwg.mxu0
    %v289 = vmax.f32 %v238, 0.0
    %v290 = vmax.f32 %v240, 0.0
    %v291 = vmax.f32 %v281, 0.0
    %v292 = vmax.f32 %v283, 0.0
    %v293 = vmax.f32 %v242, 0.0
    %v294 = vmax.f32 %v244, 0.0
    %v295 = vmax.f32 %v285, 0.0
    %v296 = vmax.f32 %v287, 0.0
    %v297 = vpack.c.bf16 %v293, %v289
    %v298 = vpack.c.bf16 %v294, %v290
    %v299 = vpack.c.bf16 %v295, %v291
    %v300 = vpack.c.bf16 %v296, %v292
    %v301 = vld [vmem:[#allocation7] sm:$0xff]
    %v302 = vld [vmem:[#allocation7 + $0x8] sm:$0xff]
    %v303 = vld [vmem:[#allocation7 + $0x10] sm:$0xff]
    %v304 = vld [vmem:[#allocation7 + $0x18] sm:$0xff]
    %v305 = vld [vmem:[#allocation7 + $0x20] sm:$0xff]
    %v306 = vld [vmem:[#allocation7 + $0x28] sm:$0xff]
    %v307 = vld [vmem:[#allocation7 + $0x30] sm:$0xff]
    %v308 = vld [vmem:[#allocation7 + $0x38] sm:$0xff]
    %v309 = vld [vmem:[#allocation7 + $0x40] sm:$0xff]
    %v310 = vld [vmem:[#allocation7 + $0x48] sm:$0xff]
    %v311 = vld [vmem:[#allocation7 + $0x50] sm:$0xff]
    %v312 = vld [vmem:[#allocation7 + $0x58] sm:$0xff]
    %v313 = vld [vmem:[#allocation7 + $0x60] sm:$0xff]
    %v314 = vld [vmem:[#allocation7 + $0x68] sm:$0xff]
    %v315 = vld [vmem:[#allocation7 + $0x70] sm:$0xff]
    %v316 = vld [vmem:[#allocation7 + $0x78] sm:$0xff]
    %v317 = vld [vmem:[#allocation7 + $0x80] sm:$0xff]
    %v318 = vld [vmem:[#allocation7 + $0x88] sm:$0xff]
    %v319 = vld [vmem:[#allocation7 + $0x90] sm:$0xff]
    %v320 = vld [vmem:[#allocation7 + $0x98] sm:$0xff]
    %v321 = vld [vmem:[#allocation7 + $0xa0] sm:$0xff]
    %v322 = vld [vmem:[#allocation7 + $0xa8] sm:$0xff]
    %v323 = vld [vmem:[#allocation7 + $0xb0] sm:$0xff]
    %v324 = vld [vmem:[#allocation7 + $0xb8] sm:$0xff]
    %v325 = vld [vmem:[#allocation7 + $0xc0] sm:$0xff]
    %v326 = vld [vmem:[#allocation7 + $0xc8] sm:$0xff]
    %v327 = vld [vmem:[#allocation7 + $0xd0] sm:$0xff]
    %v328 = vld [vmem:[#allocation7 + $0xd8] sm:$0xff]
    %v329 = vld [vmem:[#allocation7 + $0xe0] sm:$0xff]
    %v330 = vld [vmem:[#allocation7 + $0xe8] sm:$0xff]
    %v331 = vld [vmem:[#allocation7 + $0xf0] sm:$0xff]
    %v332 = vld [vmem:[#allocation7 + $0xf8] sm:$0xff]
    %v333 = vld [vmem:[#allocation7 + $0x100] sm:$0xff]
    %v334 = vld [vmem:[#allocation7 + $0x108] sm:$0xff]
    %v335 = vld [vmem:[#allocation7 + $0x110] sm:$0xff]
    %v336 = vld [vmem:[#allocation7 + $0x118] sm:$0xff]
    %v337 = vld [vmem:[#allocation7 + $0x120] sm:$0xff]
    %v338 = vld [vmem:[#allocation7 + $0x128] sm:$0xff]
    %v339 = vld [vmem:[#allocation7 + $0x130] sm:$0xff]
    %v340 = vld [vmem:[#allocation7 + $0x138] sm:$0xff]
    %v341 = vld [vmem:[#allocation7 + $0x140] sm:$0xff]
    %v342 = vld [vmem:[#allocation7 + $0x148] sm:$0xff]
    %v343 = vld [vmem:[#allocation7 + $0x150] sm:$0xff]
    %v344 = vld [vmem:[#allocation7 + $0x158] sm:$0xff]
    %v345 = vld [vmem:[#allocation7 + $0x160] sm:$0xff]
    %v346 = vld [vmem:[#allocation7 + $0x168] sm:$0xff]
    %v347 = vld [vmem:[#allocation7 + $0x170] sm:$0xff]
    %v348 = vld [vmem:[#allocation7 + $0x178] sm:$0xff]
    %v349 = vld [vmem:[#allocation7 + $0x180] sm:$0xff]
    %v350 = vld [vmem:[#allocation7 + $0x188] sm:$0xff]
    %v351 = vld [vmem:[#allocation7 + $0x190] sm:$0xff]
    %v352 = vld [vmem:[#allocation7 + $0x198] sm:$0xff]
    %v353 = vld [vmem:[#allocation7 + $0x1a0] sm:$0xff]
    %v354 = vld [vmem:[#allocation7 + $0x1a8] sm:$0xff]
    %v355 = vld [vmem:[#allocation7 + $0x1b0] sm:$0xff]
    %v356 = vld [vmem:[#allocation7 + $0x1b8] sm:$0xff]
    %v357 = vld [vmem:[#allocation7 + $0x1c0] sm:$0xff]
    %v358 = vld [vmem:[#allocation7 + $0x1c8] sm:$0xff]
    %v359 = vld [vmem:[#allocation7 + $0x1d0] sm:$0xff]
    %v360 = vld [vmem:[#allocation7 + $0x1d8] sm:$0xff]
    %v361 = vld [vmem:[#allocation7 + $0x1e0] sm:$0xff]
    %v362 = vld [vmem:[#allocation7 + $0x1e8] sm:$0xff]
    %v363 = vld [vmem:[#allocation7 + $0x1f0] sm:$0xff]
    %v364 = vld [vmem:[#allocation7 + $0x1f8] sm:$0xff]
    %v365 = vld [vmem:[#allocation7 + $0x200] sm:$0xff]
    %v366 = vld [vmem:[#allocation7 + $0x208] sm:$0xff]
    %v367 = vld [vmem:[#allocation7 + $0x210] sm:$0xff]
    %v368 = vld [vmem:[#allocation7 + $0x218] sm:$0xff]
    %v369 = vld [vmem:[#allocation7 + $0x220] sm:$0xff]
    %v370 = vld [vmem:[#allocation7 + $0x228] sm:$0xff]
    %v371 = vld [vmem:[#allocation7 + $0x230] sm:$0xff]
    %v372 = vld [vmem:[#allocation7 + $0x238] sm:$0xff]
    %v373 = vld [vmem:[#allocation7 + $0x240] sm:$0xff]
    %v374 = vld [vmem:[#allocation7 + $0x248] sm:$0xff]
    %v375 = vld [vmem:[#allocation7 + $0x250] sm:$0xff]
    %v376 = vld [vmem:[#allocation7 + $0x258] sm:$0xff]
    %v377 = vld [vmem:[#allocation7 + $0x260] sm:$0xff]
    %v378 = vld [vmem:[#allocation7 + $0x268] sm:$0xff]
    %v379 = vld [vmem:[#allocation7 + $0x270] sm:$0xff]
    %v380 = vld [vmem:[#allocation7 + $0x278] sm:$0xff]
    %v381 = vld [vmem:[#allocation7 + $0x280] sm:$0xff]
    %v382 = vld [vmem:[#allocation7 + $0x288] sm:$0xff]
    %v383 = vld [vmem:[#allocation7 + $0x290] sm:$0xff]
    %v384 = vld [vmem:[#allocation7 + $0x298] sm:$0xff]
    %v385 = vld [vmem:[#allocation7 + $0x2a0] sm:$0xff]
    %v386 = vld [vmem:[#allocation7 + $0x2a8] sm:$0xff]
    %v387 = vld [vmem:[#allocation7 + $0x2b0] sm:$0xff]
    %v388 = vld [vmem:[#allocation7 + $0x2b8] sm:$0xff]
    %v389 = vld [vmem:[#allocation7 + $0x2c0] sm:$0xff]
    %v390 = vld [vmem:[#allocation7 + $0x2c8] sm:$0xff]
    %v391 = vld [vmem:[#allocation7 + $0x2d0] sm:$0xff]
    %v392 = vld [vmem:[#allocation7 + $0x2d8] sm:$0xff]
    %v393 = vld [vmem:[#allocation7 + $0x2e0] sm:$0xff]
    %v394 = vld [vmem:[#allocation7 + $0x2e8] sm:$0xff]
    %v395 = vld [vmem:[#allocation7 + $0x2f0] sm:$0xff]
    %v396 = vld [vmem:[#allocation7 + $0x2f8] sm:$0xff]
    %v397 = vld [vmem:[#allocation7 + $0x300] sm:$0xff]
    %v398 = vld [vmem:[#allocation7 + $0x308] sm:$0xff]
    %v399 = vld [vmem:[#allocation7 + $0x310] sm:$0xff]
    %v400 = vld [vmem:[#allocation7 + $0x318] sm:$0xff]
    %v401 = vld [vmem:[#allocation7 + $0x320] sm:$0xff]
    %v402 = vld [vmem:[#allocation7 + $0x328] sm:$0xff]
    %v403 = vld [vmem:[#allocation7 + $0x330] sm:$0xff]
    %v404 = vld [vmem:[#allocation7 + $0x338] sm:$0xff]
    %v405 = vld [vmem:[#allocation7 + $0x340] sm:$0xff]
    %v406 = vld [vmem:[#allocation7 + $0x348] sm:$0xff]
    %v407 = vld [vmem:[#allocation7 + $0x350] sm:$0xff]
    %v408 = vld [vmem:[#allocation7 + $0x358] sm:$0xff]
    %v409 = vld [vmem:[#allocation7 + $0x360] sm:$0xff]
    %v410 = vld [vmem:[#allocation7 + $0x368] sm:$0xff]
    %v411 = vld [vmem:[#allocation7 + $0x370] sm:$0xff]
    %v412 = vld [vmem:[#allocation7 + $0x378] sm:$0xff]
    %v413 = vld [vmem:[#allocation7 + $0x380] sm:$0xff]
    %v414 = vld [vmem:[#allocation7 + $0x388] sm:$0xff]
    %v415 = vld [vmem:[#allocation7 + $0x390] sm:$0xff]
    %v416 = vld [vmem:[#allocation7 + $0x398] sm:$0xff]
    %v417 = vld [vmem:[#allocation7 + $0x3a0] sm:$0xff]
    %v418 = vld [vmem:[#allocation7 + $0x3a8] sm:$0xff]
    %v419 = vld [vmem:[#allocation7 + $0x3b0] sm:$0xff]
    %v420 = vld [vmem:[#allocation7 + $0x3b8] sm:$0xff]
    %v421 = vld [vmem:[#allocation7 + $0x3c0] sm:$0xff]
    %v422 = vld [vmem:[#allocation7 + $0x3c8] sm:$0xff]
    %v423 = vld [vmem:[#allocation7 + $0x3d0] sm:$0xff]
    %v424 = vld [vmem:[#allocation7 + $0x3d8] sm:$0xff]
    %v425 = vld [vmem:[#allocation7 + $0x3e0] sm:$0xff]
    %v426 = vld [vmem:[#allocation7 + $0x3e8] sm:$0xff]
    %v427 = vld [vmem:[#allocation7 + $0x3f0] sm:$0xff]
    %v428 = vld [vmem:[#allocation7 + $0x3f8] sm:$0xff]
    %v429 = vld [vmem:[%s4] sm:$0xf]
    %v431 = vlaneseq
    %v432 = vshrl.u32 %v431, 7
    %v433 = vsub.s32 0, %v432
    %v434 = vrot.slane %v429, %v433
    %v435 = vlaneseq
    %v436 = vshrl.u32 %v435, 7
    %v437 = vsub.s32 1, %v436
    %v438 = vrot.slane %v429, %v437
    %v439 = vlaneseq
    %v440 = vshrl.u32 %v439, 7
    %v441 = vsub.s32 2, %v440
    %v442 = vrot.slane %v429, %v441
    %v443 = vlaneseq
    %v444 = vshrl.u32 %v443, 7
    %v445 = vsub.s32 3, %v444
    %v446 = vrot.slane %v429, %v445
    %v579 = vunpack.c.l.b16 %v301
    %v580 = vunpack.c.h.b16 %v301
    %v581 = vunpack.c.l.b16 %v302
    %v582 = vunpack.c.h.b16 %v302
    %v583 = vunpack.c.l.b16 %v303
    %v584 = vunpack.c.h.b16 %v303
    %v585 = vunpack.c.l.b16 %v304
    %v586 = vunpack.c.h.b16 %v304
    %v587 = vunpack.c.l.b16 %v305
    %v588 = vunpack.c.h.b16 %v305
    %v589 = vunpack.c.l.b16 %v306
    %v590 = vunpack.c.h.b16 %v306
    %v591 = vunpack.c.l.b16 %v307
    %v592 = vunpack.c.h.b16 %v307
    %v593 = vunpack.c.l.b16 %v308
    %v594 = vunpack.c.h.b16 %v308
    %v595 = vunpack.c.l.b16 %v309
    %v596 = vunpack.c.h.b16 %v309
    %v597 = vunpack.c.l.b16 %v310
    %v598 = vunpack.c.h.b16 %v310
    %v599 = vunpack.c.l.b16 %v311
    %v600 = vunpack.c.h.b16 %v311
    %v601 = vunpack.c.l.b16 %v312
    %v602 = vunpack.c.h.b16 %v312
    %v603 = vunpack.c.l.b16 %v313
    %v604 = vunpack.c.h.b16 %v313
    %v605 = vunpack.c.l.b16 %v314
    %v606 = vunpack.c.h.b16 %v314
    %v607 = vunpack.c.l.b16 %v315
    %v608 = vunpack.c.h.b16 %v315
    %v609 = vunpack.c.l.b16 %v316
    %v610 = vunpack.c.h.b16 %v316
    %v611 = vunpack.c.l.b16 %v317
    %v612 = vunpack.c.h.b16 %v317
    %v613 = vunpack.c.l.b16 %v318
    %v614 = vunpack.c.h.b16 %v318
    %v615 = vunpack.c.l.b16 %v319
    %v616 = vunpack.c.h.b16 %v319
    %v617 = vunpack.c.l.b16 %v320
    %v618 = vunpack.c.h.b16 %v320
    %v619 = vunpack.c.l.b16 %v321
    %v620 = vunpack.c.h.b16 %v321
    %v621 = vunpack.c.l.b16 %v322
    %v622 = vunpack.c.h.b16 %v322
    %v623 = vunpack.c.l.b16 %v323
    %v624 = vunpack.c.h.b16 %v323
    %v625 = vunpack.c.l.b16 %v324
    %v626 = vunpack.c.h.b16 %v324
    %v627 = vunpack.c.l.b16 %v325
    %v628 = vunpack.c.h.b16 %v325
    %v629 = vunpack.c.l.b16 %v326
    %v630 = vunpack.c.h.b16 %v326
    %v631 = vunpack.c.l.b16 %v327
    %v632 = vunpack.c.h.b16 %v327
    %v633 = vunpack.c.l.b16 %v328
    %v634 = vunpack.c.h.b16 %v328
    %v635 = vunpack.c.l.b16 %v329
    %v636 = vunpack.c.h.b16 %v329
    %v637 = vunpack.c.l.b16 %v330
    %v638 = vunpack.c.h.b16 %v330
    %v639 = vunpack.c.l.b16 %v331
    %v640 = vunpack.c.h.b16 %v331
    %v641 = vunpack.c.l.b16 %v332
    %v642 = vunpack.c.h.b16 %v332
    %v643 = vunpack.c.l.b16 %v333
    %v644 = vunpack.c.h.b16 %v333
    %v645 = vunpack.c.l.b16 %v334
    %v646 = vunpack.c.h.b16 %v334
    %v647 = vunpack.c.l.b16 %v335
    %v648 = vunpack.c.h.b16 %v335
    %v649 = vunpack.c.l.b16 %v336
    %v650 = vunpack.c.h.b16 %v336
    %v651 = vunpack.c.l.b16 %v337
    %v652 = vunpack.c.h.b16 %v337
    %v653 = vunpack.c.l.b16 %v338
    %v654 = vunpack.c.h.b16 %v338
    %v655 = vunpack.c.l.b16 %v339
    %v656 = vunpack.c.h.b16 %v339
    %v657 = vunpack.c.l.b16 %v340
    %v658 = vunpack.c.h.b16 %v340
    %v659 = vunpack.c.l.b16 %v341
    %v660 = vunpack.c.h.b16 %v341
    %v661 = vunpack.c.l.b16 %v342
    %v662 = vunpack.c.h.b16 %v342
    %v663 = vunpack.c.l.b16 %v343
    %v664 = vunpack.c.h.b16 %v343
    %v665 = vunpack.c.l.b16 %v344
    %v666 = vunpack.c.h.b16 %v344
    %v667 = vunpack.c.l.b16 %v345
    %v668 = vunpack.c.h.b16 %v345
    %v669 = vunpack.c.l.b16 %v346
    %v670 = vunpack.c.h.b16 %v346
    %v671 = vunpack.c.l.b16 %v347
    %v672 = vunpack.c.h.b16 %v347
    %v673 = vunpack.c.l.b16 %v348
    %v674 = vunpack.c.h.b16 %v348
    %v675 = vunpack.c.l.b16 %v349
    %v676 = vunpack.c.h.b16 %v349
    %v677 = vunpack.c.l.b16 %v350
    %v678 = vunpack.c.h.b16 %v350
    %v679 = vunpack.c.l.b16 %v351
    %v680 = vunpack.c.h.b16 %v351
    %v681 = vunpack.c.l.b16 %v352
    %v682 = vunpack.c.h.b16 %v352
    %v683 = vunpack.c.l.b16 %v353
    %v684 = vunpack.c.h.b16 %v353
    %v685 = vunpack.c.l.b16 %v354
    %v686 = vunpack.c.h.b16 %v354
    %v687 = vunpack.c.l.b16 %v355
    %v688 = vunpack.c.h.b16 %v355
    %v689 = vunpack.c.l.b16 %v356
    %v690 = vunpack.c.h.b16 %v356
    %v691 = vunpack.c.l.b16 %v357
    %v692 = vunpack.c.h.b16 %v357
    %v693 = vunpack.c.l.b16 %v358
    %v694 = vunpack.c.h.b16 %v358
    %v695 = vunpack.c.l.b16 %v359
    %v696 = vunpack.c.h.b16 %v359
    %v697 = vunpack.c.l.b16 %v360
    %v698 = vunpack.c.h.b16 %v360
    %v699 = vunpack.c.l.b16 %v361
    %v700 = vunpack.c.h.b16 %v361
    %v701 = vunpack.c.l.b16 %v362
    %v702 = vunpack.c.h.b16 %v362
    %v703 = vunpack.c.l.b16 %v363
    %v704 = vunpack.c.h.b16 %v363
    %v705 = vunpack.c.l.b16 %v364
    %v706 = vunpack.c.h.b16 %v364
    %v707 = vunpack.c.l.b16 %v365
    %v708 = vunpack.c.h.b16 %v365
    %v709 = vunpack.c.l.b16 %v366
    %v710 = vunpack.c.h.b16 %v366
    %v711 = vunpack.c.l.b16 %v367
    %v712 = vunpack.c.h.b16 %v367
    %v713 = vunpack.c.l.b16 %v368
    %v714 = vunpack.c.h.b16 %v368
    %v715 = vunpack.c.l.b16 %v369
    %v716 = vunpack.c.h.b16 %v369
    %v717 = vunpack.c.l.b16 %v370
    %v718 = vunpack.c.h.b16 %v370
    %v719 = vunpack.c.l.b16 %v371
    %v720 = vunpack.c.h.b16 %v371
    %v721 = vunpack.c.l.b16 %v372
    %v722 = vunpack.c.h.b16 %v372
    %v723 = vunpack.c.l.b16 %v373
    %v724 = vunpack.c.h.b16 %v373
    %v725 = vunpack.c.l.b16 %v374
    %v726 = vunpack.c.h.b16 %v374
    %v727 = vunpack.c.l.b16 %v375
    %v728 = vunpack.c.h.b16 %v375
    %v729 = vunpack.c.l.b16 %v376
    %v730 = vunpack.c.h.b16 %v376
    %v731 = vunpack.c.l.b16 %v377
    %v732 = vunpack.c.h.b16 %v377
    %v733 = vunpack.c.l.b16 %v378
    %v734 = vunpack.c.h.b16 %v378
    %v735 = vunpack.c.l.b16 %v379
    %v736 = vunpack.c.h.b16 %v379
    %v737 = vunpack.c.l.b16 %v380
    %v738 = vunpack.c.h.b16 %v380
    %v739 = vunpack.c.l.b16 %v381
    %v740 = vunpack.c.h.b16 %v381
    %v741 = vunpack.c.l.b16 %v382
    %v742 = vunpack.c.h.b16 %v382
    %v743 = vunpack.c.l.b16 %v383
    %v744 = vunpack.c.h.b16 %v383
    %v745 = vunpack.c.l.b16 %v384
    %v746 = vunpack.c.h.b16 %v384
    %v747 = vunpack.c.l.b16 %v385
    %v748 = vunpack.c.h.b16 %v385
    %v749 = vunpack.c.l.b16 %v386
    %v750 = vunpack.c.h.b16 %v386
    %v751 = vunpack.c.l.b16 %v387
    %v752 = vunpack.c.h.b16 %v387
    %v753 = vunpack.c.l.b16 %v388
    %v754 = vunpack.c.h.b16 %v388
    %v755 = vunpack.c.l.b16 %v389
    %v756 = vunpack.c.h.b16 %v389
    %v757 = vunpack.c.l.b16 %v390
    %v758 = vunpack.c.h.b16 %v390
    %v759 = vunpack.c.l.b16 %v391
    %v760 = vunpack.c.h.b16 %v391
    %v761 = vunpack.c.l.b16 %v392
    %v762 = vunpack.c.h.b16 %v392
    %v763 = vunpack.c.l.b16 %v393
    %v764 = vunpack.c.h.b16 %v393
    %v765 = vunpack.c.l.b16 %v394
    %v766 = vunpack.c.h.b16 %v394
    %v767 = vunpack.c.l.b16 %v395
    %v768 = vunpack.c.h.b16 %v395
    %v769 = vunpack.c.l.b16 %v396
    %v770 = vunpack.c.h.b16 %v396
    %v771 = vunpack.c.l.b16 %v397
    %v772 = vunpack.c.h.b16 %v397
    %v773 = vunpack.c.l.b16 %v398
    %v774 = vunpack.c.h.b16 %v398
    %v775 = vunpack.c.l.b16 %v399
    %v776 = vunpack.c.h.b16 %v399
    %v777 = vunpack.c.l.b16 %v400
    %v778 = vunpack.c.h.b16 %v400
    %v779 = vunpack.c.l.b16 %v401
    %v780 = vunpack.c.h.b16 %v401
    %v781 = vunpack.c.l.b16 %v402
    %v782 = vunpack.c.h.b16 %v402
    %v783 = vunpack.c.l.b16 %v403
    %v784 = vunpack.c.h.b16 %v403
    %v785 = vunpack.c.l.b16 %v404
    %v786 = vunpack.c.h.b16 %v404
    %v787 = vunpack.c.l.b16 %v405
    %v788 = vunpack.c.h.b16 %v405
    %v789 = vunpack.c.l.b16 %v406
    %v790 = vunpack.c.h.b16 %v406
    %v791 = vunpack.c.l.b16 %v407
    %v792 = vunpack.c.h.b16 %v407
    %v793 = vunpack.c.l.b16 %v408
    %v794 = vunpack.c.h.b16 %v408
    %v795 = vunpack.c.l.b16 %v409
    %v796 = vunpack.c.h.b16 %v409
    %v797 = vunpack.c.l.b16 %v410
    %v798 = vunpack.c.h.b16 %v410
    %v799 = vunpack.c.l.b16 %v411
    %v800 = vunpack.c.h.b16 %v411
    %v801 = vunpack.c.l.b16 %v412
    %v802 = vunpack.c.h.b16 %v412
    %v803 = vunpack.c.l.b16 %v413
    %v804 = vunpack.c.h.b16 %v413
    %v805 = vunpack.c.l.b16 %v414
    %v806 = vunpack.c.h.b16 %v414
    %v807 = vunpack.c.l.b16 %v415
    %v808 = vunpack.c.h.b16 %v415
    %v809 = vunpack.c.l.b16 %v416
    %v810 = vunpack.c.h.b16 %v416
    %v811 = vunpack.c.l.b16 %v417
    %v812 = vunpack.c.h.b16 %v417
    %v813 = vunpack.c.l.b16 %v418
    %v814 = vunpack.c.h.b16 %v418
    %v815 = vunpack.c.l.b16 %v419
    %v816 = vunpack.c.h.b16 %v419
    %v817 = vunpack.c.l.b16 %v420
    %v818 = vunpack.c.h.b16 %v420
    %v819 = vunpack.c.l.b16 %v421
    %v820 = vunpack.c.h.b16 %v421
    %v821 = vunpack.c.l.b16 %v422
    %v822 = vunpack.c.h.b16 %v422
    %v823 = vunpack.c.l.b16 %v423
    %v824 = vunpack.c.h.b16 %v423
    %v825 = vunpack.c.l.b16 %v424
    %v826 = vunpack.c.h.b16 %v424
    %v827 = vunpack.c.l.b16 %v425
    %v828 = vunpack.c.h.b16 %v425
    %v829 = vunpack.c.l.b16 %v426
    %v830 = vunpack.c.h.b16 %v426
    %v831 = vunpack.c.l.b16 %v427
    %v832 = vunpack.c.h.b16 %v427
    %v833 = vunpack.c.l.b16 %v428
    %v834 = vunpack.c.h.b16 %v428
    %v835 = vpack.c.b16 %v583, %v579
    %v836 = vpack.c.b16 %v584, %v580
    %v837 = vpack.c.b16 %v585, %v581
    %v838 = vpack.c.b16 %v586, %v582
    %v839 = vpack.c.b16 %v591, %v587
    %v840 = vpack.c.b16 %v592, %v588
    %v841 = vpack.c.b16 %v593, %v589
    %v842 = vpack.c.b16 %v594, %v590
    %v843 = vpack.c.b16 %v599, %v595
    %v844 = vpack.c.b16 %v600, %v596
    %v845 = vpack.c.b16 %v601, %v597
    %v846 = vpack.c.b16 %v602, %v598
    %v847 = vpack.c.b16 %v607, %v603
    %v848 = vpack.c.b16 %v608, %v604
    %v849 = vpack.c.b16 %v609, %v605
    %v850 = vpack.c.b16 %v610, %v606
    %v851 = vpack.c.b16 %v615, %v611
    %v852 = vpack.c.b16 %v616, %v612
    %v853 = vpack.c.b16 %v617, %v613
    %v854 = vpack.c.b16 %v618, %v614
    %v855 = vpack.c.b16 %v623, %v619
    %v856 = vpack.c.b16 %v624, %v620
    %v857 = vpack.c.b16 %v625, %v621
    %v858 = vpack.c.b16 %v626, %v622
    %v859 = vpack.c.b16 %v631, %v627
    %v860 = vpack.c.b16 %v632, %v628
    %v861 = vpack.c.b16 %v633, %v629
    %v862 = vpack.c.b16 %v634, %v630
    %v863 = vpack.c.b16 %v639, %v635
    %v864 = vpack.c.b16 %v640, %v636
    %v865 = vpack.c.b16 %v641, %v637
    %v866 = vpack.c.b16 %v642, %v638
    %v867 = vpack.c.b16 %v647, %v643
    %v868 = vpack.c.b16 %v648, %v644
    %v869 = vpack.c.b16 %v649, %v645
    %v870 = vpack.c.b16 %v650, %v646
    %v871 = vpack.c.b16 %v655, %v651
    %v872 = vpack.c.b16 %v656, %v652
    %v873 = vpack.c.b16 %v657, %v653
    %v874 = vpack.c.b16 %v658, %v654
    %v875 = vpack.c.b16 %v663, %v659
    %v876 = vpack.c.b16 %v664, %v660
    %v877 = vpack.c.b16 %v665, %v661
    %v878 = vpack.c.b16 %v666, %v662
    %v879 = vpack.c.b16 %v671, %v667
    %v880 = vpack.c.b16 %v672, %v668
    %v881 = vpack.c.b16 %v673, %v669
    %v882 = vpack.c.b16 %v674, %v670
    %v883 = vpack.c.b16 %v679, %v675
    %v884 = vpack.c.b16 %v680, %v676
    %v885 = vpack.c.b16 %v681, %v677
    %v886 = vpack.c.b16 %v682, %v678
    %v887 = vpack.c.b16 %v687, %v683
    %v888 = vpack.c.b16 %v688, %v684
    %v889 = vpack.c.b16 %v689, %v685
    %v890 = vpack.c.b16 %v690, %v686
    %v891 = vpack.c.b16 %v695, %v691
    %v892 = vpack.c.b16 %v696, %v692
    %v893 = vpack.c.b16 %v697, %v693
    %v894 = vpack.c.b16 %v698, %v694
    %v895 = vpack.c.b16 %v703, %v699
    %v896 = vpack.c.b16 %v704, %v700
    %v897 = vpack.c.b16 %v705, %v701
    %v898 = vpack.c.b16 %v706, %v702
    %v899 = vpack.c.b16 %v711, %v707
    %v900 = vpack.c.b16 %v712, %v708
    %v901 = vpack.c.b16 %v713, %v709
    %v902 = vpack.c.b16 %v714, %v710
    %v903 = vpack.c.b16 %v719, %v715
    %v904 = vpack.c.b16 %v720, %v716
    %v905 = vpack.c.b16 %v721, %v717
    %v906 = vpack.c.b16 %v722, %v718
    %v907 = vpack.c.b16 %v727, %v723
    %v908 = vpack.c.b16 %v728, %v724
    %v909 = vpack.c.b16 %v729, %v725
    %v910 = vpack.c.b16 %v730, %v726
    %v911 = vpack.c.b16 %v735, %v731
    %v912 = vpack.c.b16 %v736, %v732
    %v913 = vpack.c.b16 %v737, %v733
    %v914 = vpack.c.b16 %v738, %v734
    %v915 = vpack.c.b16 %v743, %v739
    %v916 = vpack.c.b16 %v744, %v740
    %v917 = vpack.c.b16 %v745, %v741
    %v918 = vpack.c.b16 %v746, %v742
    %v919 = vpack.c.b16 %v751, %v747
    %v920 = vpack.c.b16 %v752, %v748
    %v921 = vpack.c.b16 %v753, %v749
    %v922 = vpack.c.b16 %v754, %v750
    %v923 = vpack.c.b16 %v759, %v755
    %v924 = vpack.c.b16 %v760, %v756
    %v925 = vpack.c.b16 %v761, %v757
    %v926 = vpack.c.b16 %v762, %v758
    %v927 = vpack.c.b16 %v767, %v763
    %v928 = vpack.c.b16 %v768, %v764
    %v929 = vpack.c.b16 %v769, %v765
    %v930 = vpack.c.b16 %v770, %v766
    %v931 = vpack.c.b16 %v775, %v771
    %v932 = vpack.c.b16 %v776, %v772
    %v933 = vpack.c.b16 %v777, %v773
    %v934 = vpack.c.b16 %v778, %v774
    %v935 = vpack.c.b16 %v783, %v779
    %v936 = vpack.c.b16 %v784, %v780
    %v937 = vpack.c.b16 %v785, %v781
    %v938 = vpack.c.b16 %v786, %v782
    %v939 = vpack.c.b16 %v791, %v787
    %v940 = vpack.c.b16 %v792, %v788
    %v941 = vpack.c.b16 %v793, %v789
    %v942 = vpack.c.b16 %v794, %v790
    %v943 = vpack.c.b16 %v799, %v795
    %v944 = vpack.c.b16 %v800, %v796
    %v945 = vpack.c.b16 %v801, %v797
    %v946 = vpack.c.b16 %v802, %v798
    %v947 = vpack.c.b16 %v807, %v803
    %v948 = vpack.c.b16 %v808, %v804
    %v949 = vpack.c.b16 %v809, %v805
    %v950 = vpack.c.b16 %v810, %v806
    %v951 = vpack.c.b16 %v815, %v811
    %v952 = vpack.c.b16 %v816, %v812
    %v953 = vpack.c.b16 %v817, %v813
    %v954 = vpack.c.b16 %v818, %v814
    %v955 = vpack.c.b16 %v823, %v819
    %v956 = vpack.c.b16 %v824, %v820
    %v957 = vpack.c.b16 %v825, %v821
    %v958 = vpack.c.b16 %v826, %v822
    %v959 = vpack.c.b16 %v831, %v827
    %v960 = vpack.c.b16 %v832, %v828
    %v961 = vpack.c.b16 %v833, %v829
    %v962 = vpack.c.b16 %v834, %v830
    %1091 = vmatprep.subr.bf16.mxu0 %v836
    %1092 = vmatpush1.bf16.msra.mxu0 %v835
    %1093 = vmatprep.subr.bf16.mxu0 %v840
    %1094 = vmatpush1.bf16.msra.mxu0 %v839
    %1095 = vmatprep.subr.bf16.mxu0 %v844
    %1096 = vmatpush1.bf16.msra.mxu0 %v843
    %1097 = vmatprep.subr.bf16.mxu0 %v848
    %1098 = vmatpush1.bf16.msra.mxu0 %v847
    %1099 = vmatprep.subr.bf16.mxu0 %v852
    %1100 = vmatpush1.bf16.msra.mxu0 %v851
    %1101 = vmatprep.subr.bf16.mxu0 %v856
    %1102 = vmatpush1.bf16.msra.mxu0 %v855
    %1103 = vmatprep.subr.bf16.mxu0 %v860
    %1104 = vmatpush1.bf16.msra.mxu0 %v859
    %1105 = vmatprep.subr.bf16.mxu0 %v864
    %1106 = vmatpush1.bf16.msra.mxu0 %v863
    %1107 = vmatprep.subr.bf16.mxu0 %v868
    %1108 = vmatpush1.bf16.msra.mxu0 %v867
    %1109 = vmatprep.subr.bf16.mxu0 %v872
    %1110 = vmatpush1.bf16.msra.mxu0 %v871
    %1111 = vmatprep.subr.bf16.mxu0 %v876
    %1112 = vmatpush1.bf16.msra.mxu0 %v875
    %1113 = vmatprep.subr.bf16.mxu0 %v880
    %1114 = vmatpush1.bf16.msra.mxu0 %v879
    %1115 = vmatprep.subr.bf16.mxu0 %v884
    %1116 = vmatpush1.bf16.msra.mxu0 %v883
    %1117 = vmatprep.subr.bf16.mxu0 %v888
    %1118 = vmatpush1.bf16.msra.mxu0 %v887
    %1119 = vmatprep.subr.bf16.mxu0 %v892
    %1120 = vmatpush1.bf16.msra.mxu0 %v891
    %1121 = vmatprep.subr.bf16.mxu0 %v896
    %1122 = vmatpush1.bf16.msra.mxu0 %v895
    %1123 = vmatprep.mubr.bf16.mxu0 %v298
    %1124 = vmatmul.mubr.bf16.gmra.mrb[0].mxu0 %v297
    %v1125 = vpop.f32.mrb[0].mxu0
    %v1126 = vadd.f32 %v434, %v1125
    %v1127 = vpop.f32.mrb[0].mxu0
    %v1128 = vadd.f32 %v438, %v1127
    %v1129 = vpop.f32.mrb[0].mxu0
    %v1130 = vadd.f32 %v434, %v1129
    %v1131 = vpop.f32.mrb[0].mxu0
    %v1132 = vadd.f32 %v438, %v1131
    %1133 = vdwg.mxu0
    %1134 = vmatprep.subr.bf16.mxu0 %v900
    %1135 = vmatpush1.bf16.msra.mxu0 %v899
    %1136 = vmatprep.subr.bf16.mxu0 %v904
    %1137 = vmatpush1.bf16.msra.mxu0 %v903
    %1138 = vmatprep.subr.bf16.mxu0 %v908
    %1139 = vmatpush1.bf16.msra.mxu0 %v907
    %1140 = vmatprep.subr.bf16.mxu0 %v912
    %1141 = vmatpush1.bf16.msra.mxu0 %v911
    %1142 = vmatprep.subr.bf16.mxu0 %v916
    %1143 = vmatpush1.bf16.msra.mxu0 %v915
    %1144 = vmatprep.subr.bf16.mxu0 %v920
    %1145 = vmatpush1.bf16.msra.mxu0 %v919
    %1146 = vmatprep.subr.bf16.mxu0 %v924
    %1147 = vmatpush1.bf16.msra.mxu0 %v923
    %1148 = vmatprep.subr.bf16.mxu0 %v928
    %1149 = vmatpush1.bf16.msra.mxu0 %v927
    %1150 = vmatprep.subr.bf16.mxu0 %v932
    %1151 = vmatpush1.bf16.msra.mxu0 %v931
    %1152 = vmatprep.subr.bf16.mxu0 %v936
    %1153 = vmatpush1.bf16.msra.mxu0 %v935
    %1154 = vmatprep.subr.bf16.mxu0 %v940
    %1155 = vmatpush1.bf16.msra.mxu0 %v939
    %1156 = vmatprep.subr.bf16.mxu0 %v944
    %1157 = vmatpush1.bf16.msra.mxu0 %v943
    %1158 = vmatprep.subr.bf16.mxu0 %v948
    %1159 = vmatpush1.bf16.msra.mxu0 %v947
    %1160 = vmatprep.subr.bf16.mxu0 %v952
    %1161 = vmatpush1.bf16.msra.mxu0 %v951
    %1162 = vmatprep.subr.bf16.mxu0 %v956
    %1163 = vmatpush1.bf16.msra.mxu0 %v955
    %1164 = vmatprep.subr.bf16.mxu0 %v960
    %1165 = vmatpush1.bf16.msra.mxu0 %v959
    %1166 = vmatprep.mubr.bf16.mxu0 %v300
    %1167 = vmatmul.mubr.bf16.gmra.mrb[0].mxu0 %v299
    %v1168 = vpop.f32.mrb[0].mxu0
    %v1169 = vadd.f32 %v1126, %v1168
    %v1170 = vpop.f32.mrb[0].mxu0
    %v1171 = vadd.f32 %v1128, %v1170
    %v1172 = vpop.f32.mrb[0].mxu0
    %v1173 = vadd.f32 %v1130, %v1172
    %v1174 = vpop.f32.mrb[0].mxu0
    %v1175 = vadd.f32 %v1132, %v1174
    %1176 = vdwg.mxu0
    %1177 = vmatprep.subr.bf16.mxu0 %v838
    %1178 = vmatpush1.bf16.msra.mxu0 %v837
    %1179 = vmatprep.subr.bf16.mxu0 %v842
    %1180 = vmatpush1.bf16.msra.mxu0 %v841
    %1181 = vmatprep.subr.bf16.mxu0 %v846
    %1182 = vmatpush1.bf16.msra.mxu0 %v845
    %1183 = vmatprep.subr.bf16.mxu0 %v850
    %1184 = vmatpush1.bf16.msra.mxu0 %v849
    %1185 = vmatprep.subr.bf16.mxu0 %v854
    %1186 = vmatpush1.bf16.msra.mxu0 %v853
    %1187 = vmatprep.subr.bf16.mxu0 %v858
    %1188 = vmatpush1.bf16.msra.mxu0 %v857
    %1189 = vmatprep.subr.bf16.mxu0 %v862
    %1190 = vmatpush1.bf16.msra.mxu0 %v861
    %1191 = vmatprep.subr.bf16.mxu0 %v866
    %1192 = vmatpush1.bf16.msra.mxu0 %v865
    %1193 = vmatprep.subr.bf16.mxu0 %v870
    %1194 = vmatpush1.bf16.msra.mxu0 %v869
    %1195 = vmatprep.subr.bf16.mxu0 %v874
    %1196 = vmatpush1.bf16.msra.mxu0 %v873
    %1197 = vmatprep.subr.bf16.mxu0 %v878
    %1198 = vmatpush1.bf16.msra.mxu0 %v877
    %1199 = vmatprep.subr.bf16.mxu0 %v882
    %1200 = vmatpush1.bf16.msra.mxu0 %v881
    %1201 = vmatprep.subr.bf16.mxu0 %v886
    %1202 = vmatpush1.bf16.msra.mxu0 %v885
    %1203 = vmatprep.subr.bf16.mxu0 %v890
    %1204 = vmatpush1.bf16.msra.mxu0 %v889
    %1205 = vmatprep.subr.bf16.mxu0 %v894
    %1206 = vmatpush1.bf16.msra.mxu0 %v893
    %1207 = vmatprep.subr.bf16.mxu0 %v898
    %1208 = vmatpush1.bf16.msra.mxu0 %v897
    %1209 = vmatprep.mubr.bf16.mxu0 %v298
    %1210 = vmatmul.mubr.bf16.gmra.mrb[0].mxu0 %v297
    %v1211 = vpop.f32.mrb[0].mxu0
    %v1212 = vadd.f32 %v442, %v1211
    %v1213 = vpop.f32.mrb[0].mxu0
    %v1214 = vadd.f32 %v446, %v1213
    %v1215 = vpop.f32.mrb[0].mxu0
    %v1216 = vadd.f32 %v442, %v1215
    %v1217 = vpop.f32.mrb[0].mxu0
    %v1218 = vadd.f32 %v446, %v1217
    %1219 = vdwg.mxu0
    %1220 = vmatprep.subr.bf16.mxu0 %v902
    %1221 = vmatpush1.bf16.msra.mxu0 %v901
    %1222 = vmatprep.subr.bf16.mxu0 %v906
    %1223 = vmatpush1.bf16.msra.mxu0 %v905
    %1224 = vmatprep.subr.bf16.mxu0 %v910
    %1225 = vmatpush1.bf16.msra.mxu0 %v909
    %1226 = vmatprep.subr.bf16.mxu0 %v914
    %1227 = vmatpush1.bf16.msra.mxu0 %v913
    %1228 = vmatprep.subr.bf16.mxu0 %v918
    %1229 = vmatpush1.bf16.msra.mxu0 %v917
    %1230 = vmatprep.subr.bf16.mxu0 %v922
    %1231 = vmatpush1.bf16.msra.mxu0 %v921
    %1232 = vmatprep.subr.bf16.mxu0 %v926
    %1233 = vmatpush1.bf16.msra.mxu0 %v925
    %1234 = vmatprep.subr.bf16.mxu0 %v930
    %1235 = vmatpush1.bf16.msra.mxu0 %v929
    %1236 = vmatprep.subr.bf16.mxu0 %v934
    %1237 = vmatpush1.bf16.msra.mxu0 %v933
    %1238 = vmatprep.subr.bf16.mxu0 %v938
    %1239 = vmatpush1.bf16.msra.mxu0 %v937
    %1240 = vmatprep.subr.bf16.mxu0 %v942
    %1241 = vmatpush1.bf16.msra.mxu0 %v941
    %1242 = vmatprep.subr.bf16.mxu0 %v946
    %1243 = vmatpush1.bf16.msra.mxu0 %v945
    %1244 = vmatprep.subr.bf16.mxu0 %v950
    %1245 = vmatpush1.bf16.msra.mxu0 %v949
    %1246 = vmatprep.subr.bf16.mxu0 %v954
    %1247 = vmatpush1.bf16.msra.mxu0 %v953
    %1248 = vmatprep.subr.bf16.mxu0 %v958
    %1249 = vmatpush1.bf16.msra.mxu0 %v957
    %1250 = vmatprep.subr.bf16.mxu0 %v962
    %1251 = vmatpush1.bf16.msra.mxu0 %v961
    %1252 = vmatprep.mubr.bf16.mxu0 %v300
    %1253 = vmatmul.mubr.bf16.gmra.mrb[0].mxu0 %v299
    %v1254 = vpop.f32.mrb[0].mxu0
    %v1255 = vadd.f32 %v1212, %v1254
    %v1256 = vpop.f32.mrb[0].mxu0
    %v1257 = vadd.f32 %v1214, %v1256
    %v1258 = vpop.f32.mrb[0].mxu0
    %v1259 = vadd.f32 %v1216, %v1258
    %v1260 = vpop.f32.mrb[0].mxu0
    %v1261 = vadd.f32 %v1218, %v1260
    %1262 = vdwg.mxu0
    %v1263 = vmax.f32 %v1169, 0.0
    %v1264 = vmax.f32 %v1171, 0.0
    %v1265 = vmax.f32 %v1255, 0.0
    %v1266 = vmax.f32 %v1257, 0.0
    %v1267 = vmax.f32 %v1173, 0.0
    %v1268 = vmax.f32 %v1175, 0.0
    %v1269 = vmax.f32 %v1259, 0.0
    %v1270 = vmax.f32 %v1261, 0.0
    %v1271 = vpack.c.bf16 %v1267, %v1263
    %v1272 = vpack.c.bf16 %v1268, %v1264
    %v1273 = vpack.c.bf16 %v1269, %v1265
    %v1274 = vpack.c.bf16 %v1270, %v1266
    %v1275 = vld [vmem:[#allocation8] sm:$0xff]
    %v1276 = vld [vmem:[#allocation8 + $0x8] sm:$0xff]
    %v1277 = vld [vmem:[#allocation8 + $0x10] sm:$0xff]
    %v1278 = vld [vmem:[#allocation8 + $0x18] sm:$0xff]
    %v1279 = vld [vmem:[#allocation8 + $0x20] sm:$0xff]
    %v1280 = vld [vmem:[#allocation8 + $0x28] sm:$0xff]
    %v1281 = vld [vmem:[#allocation8 + $0x30] sm:$0xff]
    %v1282 = vld [vmem:[#allocation8 + $0x38] sm:$0xff]
    %v1283 = vld [vmem:[#allocation8 + $0x40] sm:$0xff]
    %v1284 = vld [vmem:[#allocation8 + $0x48] sm:$0xff]
    %v1285 = vld [vmem:[#allocation8 + $0x50] sm:$0xff]
    %v1286 = vld [vmem:[#allocation8 + $0x58] sm:$0xff]
    %v1287 = vld [vmem:[#allocation8 + $0x60] sm:$0xff]
    %v1288 = vld [vmem:[#allocation8 + $0x68] sm:$0xff]
    %v1289 = vld [vmem:[#allocation8 + $0x70] sm:$0xff]
    %v1290 = vld [vmem:[#allocation8 + $0x78] sm:$0xff]
    %v1291 = vld [vmem:[#allocation8 + $0x80] sm:$0xff]
    %v1292 = vld [vmem:[#allocation8 + $0x88] sm:$0xff]
    %v1293 = vld [vmem:[#allocation8 + $0x90] sm:$0xff]
    %v1294 = vld [vmem:[#allocation8 + $0x98] sm:$0xff]
    %v1295 = vld [vmem:[#allocation8 + $0xa0] sm:$0xff]
    %v1296 = vld [vmem:[#allocation8 + $0xa8] sm:$0xff]
    %v1297 = vld [vmem:[#allocation8 + $0xb0] sm:$0xff]
    %v1298 = vld [vmem:[#allocation8 + $0xb8] sm:$0xff]
    %v1299 = vld [vmem:[#allocation8 + $0xc0] sm:$0xff]
    %v1300 = vld [vmem:[#allocation8 + $0xc8] sm:$0xff]
    %v1301 = vld [vmem:[#allocation8 + $0xd0] sm:$0xff]
    %v1302 = vld [vmem:[#allocation8 + $0xd8] sm:$0xff]
    %v1303 = vld [vmem:[#allocation8 + $0xe0] sm:$0xff]
    %v1304 = vld [vmem:[#allocation8 + $0xe8] sm:$0xff]
    %v1305 = vld [vmem:[#allocation8 + $0xf0] sm:$0xff]
    %v1306 = vld [vmem:[#allocation8 + $0xf8] sm:$0xff]
    %v1307 = vld [vmem:[#allocation8 + $0x100] sm:$0xff]
    %v1308 = vld [vmem:[#allocation8 + $0x108] sm:$0xff]
    %v1309 = vld [vmem:[#allocation8 + $0x110] sm:$0xff]
    %v1310 = vld [vmem:[#allocation8 + $0x118] sm:$0xff]
    %v1311 = vld [vmem:[#allocation8 + $0x120] sm:$0xff]
    %v1312 = vld [vmem:[#allocation8 + $0x128] sm:$0xff]
    %v1313 = vld [vmem:[#allocation8 + $0x130] sm:$0xff]
    %v1314 = vld [vmem:[#allocation8 + $0x138] sm:$0xff]
    %v1315 = vld [vmem:[#allocation8 + $0x140] sm:$0xff]
    %v1316 = vld [vmem:[#allocation8 + $0x148] sm:$0xff]
    %v1317 = vld [vmem:[#allocation8 + $0x150] sm:$0xff]
    %v1318 = vld [vmem:[#allocation8 + $0x158] sm:$0xff]
    %v1319 = vld [vmem:[#allocation8 + $0x160] sm:$0xff]
    %v1320 = vld [vmem:[#allocation8 + $0x168] sm:$0xff]
    %v1321 = vld [vmem:[#allocation8 + $0x170] sm:$0xff]
    %v1322 = vld [vmem:[#allocation8 + $0x178] sm:$0xff]
    %v1323 = vld [vmem:[#allocation8 + $0x180] sm:$0xff]
    %v1324 = vld [vmem:[#allocation8 + $0x188] sm:$0xff]
    %v1325 = vld [vmem:[#allocation8 + $0x190] sm:$0xff]
    %v1326 = vld [vmem:[#allocation8 + $0x198] sm:$0xff]
    %v1327 = vld [vmem:[#allocation8 + $0x1a0] sm:$0xff]
    %v1328 = vld [vmem:[#allocation8 + $0x1a8] sm:$0xff]
    %v1329 = vld [vmem:[#allocation8 + $0x1b0] sm:$0xff]
    %v1330 = vld [vmem:[#allocation8 + $0x1b8] sm:$0xff]
    %v1331 = vld [vmem:[#allocation8 + $0x1c0] sm:$0xff]
    %v1332 = vld [vmem:[#allocation8 + $0x1c8] sm:$0xff]
    %v1333 = vld [vmem:[#allocation8 + $0x1d0] sm:$0xff]
    %v1334 = vld [vmem:[#allocation8 + $0x1d8] sm:$0xff]
    %v1335 = vld [vmem:[#allocation8 + $0x1e0] sm:$0xff]
    %v1336 = vld [vmem:[#allocation8 + $0x1e8] sm:$0xff]
    %v1337 = vld [vmem:[#allocation8 + $0x1f0] sm:$0xff]
    %v1338 = vld [vmem:[#allocation8 + $0x1f8] sm:$0xff]
    %v1339 = vld [vmem:[%s6] sm:$0x3]
    %v1341 = vlaneseq
    %v1342 = vshrl.u32 %v1341, 7
    %v1343 = vsub.s32 0, %v1342
    %v1344 = vrot.slane %v1339, %v1343
    %v1345 = vlaneseq
    %v1346 = vshrl.u32 %v1345, 7
    %v1347 = vsub.s32 1, %v1346
    %v1348 = vrot.slane %v1339, %v1347
    %v1415 = vunpack.c.l.b16 %v1275
    %v1416 = vunpack.c.h.b16 %v1275
    %v1417 = vunpack.c.l.b16 %v1276
    %v1418 = vunpack.c.h.b16 %v1276
    %v1419 = vunpack.c.l.b16 %v1277
    %v1420 = vunpack.c.h.b16 %v1277
    %v1421 = vunpack.c.l.b16 %v1278
    %v1422 = vunpack.c.h.b16 %v1278
    %v1423 = vunpack.c.l.b16 %v1279
    %v1424 = vunpack.c.h.b16 %v1279
    %v1425 = vunpack.c.l.b16 %v1280
    %v1426 = vunpack.c.h.b16 %v1280
    %v1427 = vunpack.c.l.b16 %v1281
    %v1428 = vunpack.c.h.b16 %v1281
    %v1429 = vunpack.c.l.b16 %v1282
    %v1430 = vunpack.c.h.b16 %v1282
    %v1431 = vunpack.c.l.b16 %v1283
    %v1432 = vunpack.c.h.b16 %v1283
    %v1433 = vunpack.c.l.b16 %v1284
    %v1434 = vunpack.c.h.b16 %v1284
    %v1435 = vunpack.c.l.b16 %v1285
    %v1436 = vunpack.c.h.b16 %v1285
    %v1437 = vunpack.c.l.b16 %v1286
    %v1438 = vunpack.c.h.b16 %v1286
    %v1439 = vunpack.c.l.b16 %v1287
    %v1440 = vunpack.c.h.b16 %v1287
    %v1441 = vunpack.c.l.b16 %v1288
    %v1442 = vunpack.c.h.b16 %v1288
    %v1443 = vunpack.c.l.b16 %v1289
    %v1444 = vunpack.c.h.b16 %v1289
    %v1445 = vunpack.c.l.b16 %v1290
    %v1446 = vunpack.c.h.b16 %v1290
    %v1447 = vunpack.c.l.b16 %v1291
    %v1448 = vunpack.c.h.b16 %v1291
    %v1449 = vunpack.c.l.b16 %v1292
    %v1450 = vunpack.c.h.b16 %v1292
    %v1451 = vunpack.c.l.b16 %v1293
    %v1452 = vunpack.c.h.b16 %v1293
    %v1453 = vunpack.c.l.b16 %v1294
    %v1454 = vunpack.c.h.b16 %v1294
    %v1455 = vunpack.c.l.b16 %v1295
    %v1456 = vunpack.c.h.b16 %v1295
    %v1457 = vunpack.c.l.b16 %v1296
    %v1458 = vunpack.c.h.b16 %v1296
    %v1459 = vunpack.c.l.b16 %v1297
    %v1460 = vunpack.c.h.b16 %v1297
    %v1461 = vunpack.c.l.b16 %v1298
    %v1462 = vunpack.c.h.b16 %v1298
    %v1463 = vunpack.c.l.b16 %v1299
    %v1464 = vunpack.c.h.b16 %v1299
    %v1465 = vunpack.c.l.b16 %v1300
    %v1466 = vunpack.c.h.b16 %v1300
    %v1467 = vunpack.c.l.b16 %v1301
    %v1468 = vunpack.c.h.b16 %v1301
    %v1469 = vunpack.c.l.b16 %v1302
    %v1470 = vunpack.c.h.b16 %v1302
    %v1471 = vunpack.c.l.b16 %v1303
    %v1472 = vunpack.c.h.b16 %v1303
    %v1473 = vunpack.c.l.b16 %v1304
    %v1474 = vunpack.c.h.b16 %v1304
    %v1475 = vunpack.c.l.b16 %v1305
    %v1476 = vunpack.c.h.b16 %v1305
    %v1477 = vunpack.c.l.b16 %v1306
    %v1478 = vunpack.c.h.b16 %v1306
    %v1479 = vunpack.c.l.b16 %v1307
    %v1480 = vunpack.c.h.b16 %v1307
    %v1481 = vunpack.c.l.b16 %v1308
    %v1482 = vunpack.c.h.b16 %v1308
    %v1483 = vunpack.c.l.b16 %v1309
    %v1484 = vunpack.c.h.b16 %v1309
    %v1485 = vunpack.c.l.b16 %v1310
    %v1486 = vunpack.c.h.b16 %v1310
    %v1487 = vunpack.c.l.b16 %v1311
    %v1488 = vunpack.c.h.b16 %v1311
    %v1489 = vunpack.c.l.b16 %v1312
    %v1490 = vunpack.c.h.b16 %v1312
    %v1491 = vunpack.c.l.b16 %v1313
    %v1492 = vunpack.c.h.b16 %v1313
    %v1493 = vunpack.c.l.b16 %v1314
    %v1494 = vunpack.c.h.b16 %v1314
    %v1495 = vunpack.c.l.b16 %v1315
    %v1496 = vunpack.c.h.b16 %v1315
    %v1497 = vunpack.c.l.b16 %v1316
    %v1498 = vunpack.c.h.b16 %v1316
    %v1499 = vunpack.c.l.b16 %v1317
    %v1500 = vunpack.c.h.b16 %v1317
    %v1501 = vunpack.c.l.b16 %v1318
    %v1502 = vunpack.c.h.b16 %v1318
    %v1503 = vunpack.c.l.b16 %v1319
    %v1504 = vunpack.c.h.b16 %v1319
    %v1505 = vunpack.c.l.b16 %v1320
    %v1506 = vunpack.c.h.b16 %v1320
    %v1507 = vunpack.c.l.b16 %v1321
    %v1508 = vunpack.c.h.b16 %v1321
    %v1509 = vunpack.c.l.b16 %v1322
    %v1510 = vunpack.c.h.b16 %v1322
    %v1511 = vunpack.c.l.b16 %v1323
    %v1512 = vunpack.c.h.b16 %v1323
    %v1513 = vunpack.c.l.b16 %v1324
    %v1514 = vunpack.c.h.b16 %v1324
    %v1515 = vunpack.c.l.b16 %v1325
    %v1516 = vunpack.c.h.b16 %v1325
    %v1517 = vunpack.c.l.b16 %v1326
    %v1518 = vunpack.c.h.b16 %v1326
    %v1519 = vunpack.c.l.b16 %v1327
    %v1520 = vunpack.c.h.b16 %v1327
    %v1521 = vunpack.c.l.b16 %v1328
    %v1522 = vunpack.c.h.b16 %v1328
    %v1523 = vunpack.c.l.b16 %v1329
    %v1524 = vunpack.c.h.b16 %v1329
    %v1525 = vunpack.c.l.b16 %v1330
    %v1526 = vunpack.c.h.b16 %v1330
    %v1527 = vunpack.c.l.b16 %v1331
    %v1528 = vunpack.c.h.b16 %v1331
    %v1529 = vunpack.c.l.b16 %v1332
    %v1530 = vunpack.c.h.b16 %v1332
    %v1531 = vunpack.c.l.b16 %v1333
    %v1532 = vunpack.c.h.b16 %v1333
    %v1533 = vunpack.c.l.b16 %v1334
    %v1534 = vunpack.c.h.b16 %v1334
    %v1535 = vunpack.c.l.b16 %v1335
    %v1536 = vunpack.c.h.b16 %v1335
    %v1537 = vunpack.c.l.b16 %v1336
    %v1538 = vunpack.c.h.b16 %v1336
    %v1539 = vunpack.c.l.b16 %v1337
    %v1540 = vunpack.c.h.b16 %v1337
    %v1541 = vunpack.c.l.b16 %v1338
    %v1542 = vunpack.c.h.b16 %v1338
    %v1543 = vpack.c.b16 %v1417, %v1415
    %v1544 = vpack.c.b16 %v1418, %v1416
    %v1545 = vpack.c.b16 %v1421, %v1419
    %v1546 = vpack.c.b16 %v1422, %v1420
    %v1547 = vpack.c.b16 %v1425, %v1423
    %v1548 = vpack.c.b16 %v1426, %v1424
    %v1549 = vpack.c.b16 %v1429, %v1427
    %v1550 = vpack.c.b16 %v1430, %v1428
    %v1551 = vpack.c.b16 %v1433, %v1431
    %v1552 = vpack.c.b16 %v1434, %v1432
    %v1553 = vpack.c.b16 %v1437, %v1435
    %v1554 = vpack.c.b16 %v1438, %v1436
    %v1555 = vpack.c.b16 %v1441, %v1439
    %v1556 = vpack.c.b16 %v1442, %v1440
    %v1557 = vpack.c.b16 %v1445, %v1443
    %v1558 = vpack.c.b16 %v1446, %v1444
    %v1559 = vpack.c.b16 %v1449, %v1447
    %v1560 = vpack.c.b16 %v1450, %v1448
    %v1561 = vpack.c.b16 %v1453, %v1451
    %v1562 = vpack.c.b16 %v1454, %v1452
    %v1563 = vpack.c.b16 %v1457, %v1455
    %v1564 = vpack.c.b16 %v1458, %v1456
    %v1565 = vpack.c.b16 %v1461, %v1459
    %v1566 = vpack.c.b16 %v1462, %v1460
    %v1567 = vpack.c.b16 %v1465, %v1463
    %v1568 = vpack.c.b16 %v1466, %v1464
    %v1569 = vpack.c.b16 %v1469, %v1467
    %v1570 = vpack.c.b16 %v1470, %v1468
    %v1571 = vpack.c.b16 %v1473, %v1471
    %v1572 = vpack.c.b16 %v1474, %v1472
    %v1573 = vpack.c.b16 %v1477, %v1475
    %v1574 = vpack.c.b16 %v1478, %v1476
    %v1575 = vpack.c.b16 %v1481, %v1479
    %v1576 = vpack.c.b16 %v1482, %v1480
    %v1577 = vpack.c.b16 %v1485, %v1483
    %v1578 = vpack.c.b16 %v1486, %v1484
    %v1579 = vpack.c.b16 %v1489, %v1487
    %v1580 = vpack.c.b16 %v1490, %v1488
    %v1581 = vpack.c.b16 %v1493, %v1491
    %v1582 = vpack.c.b16 %v1494, %v1492
    %v1583 = vpack.c.b16 %v1497, %v1495
    %v1584 = vpack.c.b16 %v1498, %v1496
    %v1585 = vpack.c.b16 %v1501, %v1499
    %v1586 = vpack.c.b16 %v1502, %v1500
    %v1587 = vpack.c.b16 %v1505, %v1503
    %v1588 = vpack.c.b16 %v1506, %v1504
    %v1589 = vpack.c.b16 %v1509, %v1507
    %v1590 = vpack.c.b16 %v1510, %v1508
    %v1591 = vpack.c.b16 %v1513, %v1511
    %v1592 = vpack.c.b16 %v1514, %v1512
    %v1593 = vpack.c.b16 %v1517, %v1515
    %v1594 = vpack.c.b16 %v1518, %v1516
    %v1595 = vpack.c.b16 %v1521, %v1519
    %v1596 = vpack.c.b16 %v1522, %v1520
    %v1597 = vpack.c.b16 %v1525, %v1523
    %v1598 = vpack.c.b16 %v1526, %v1524
    %v1599 = vpack.c.b16 %v1529, %v1527
    %v1600 = vpack.c.b16 %v1530, %v1528
    %v1601 = vpack.c.b16 %v1533, %v1531
    %v1602 = vpack.c.b16 %v1534, %v1532
    %v1603 = vpack.c.b16 %v1537, %v1535
    %v1604 = vpack.c.b16 %v1538, %v1536
    %v1605 = vpack.c.b16 %v1541, %v1539
    %v1606 = vpack.c.b16 %v1542, %v1540
    %1671 = vmatprep.subr.bf16.mxu0 %v1544
    %1672 = vmatpush1.bf16.msra.mxu0 %v1543
    %1673 = vmatprep.subr.bf16.mxu0 %v1546
    %1674 = vmatpush1.bf16.msra.mxu0 %v1545
    %1675 = vmatprep.subr.bf16.mxu0 %v1548
    %1676 = vmatpush1.bf16.msra.mxu0 %v1547
    %1677 = vmatprep.subr.bf16.mxu0 %v1550
    %1678 = vmatpush1.bf16.msra.mxu0 %v1549
    %1679 = vmatprep.subr.bf16.mxu0 %v1552
    %1680 = vmatpush1.bf16.msra.mxu0 %v1551
    %1681 = vmatprep.subr.bf16.mxu0 %v1554
    %1682 = vmatpush1.bf16.msra.mxu0 %v1553
    %1683 = vmatprep.subr.bf16.mxu0 %v1556
    %1684 = vmatpush1.bf16.msra.mxu0 %v1555
    %1685 = vmatprep.subr.bf16.mxu0 %v1558
    %1686 = vmatpush1.bf16.msra.mxu0 %v1557
    %1687 = vmatprep.subr.bf16.mxu0 %v1560
    %1688 = vmatpush1.bf16.msra.mxu0 %v1559
    %1689 = vmatprep.subr.bf16.mxu0 %v1562
    %1690 = vmatpush1.bf16.msra.mxu0 %v1561
    %1691 = vmatprep.subr.bf16.mxu0 %v1564
    %1692 = vmatpush1.bf16.msra.mxu0 %v1563
    %1693 = vmatprep.subr.bf16.mxu0 %v1566
    %1694 = vmatpush1.bf16.msra.mxu0 %v1565
    %1695 = vmatprep.subr.bf16.mxu0 %v1568
    %1696 = vmatpush1.bf16.msra.mxu0 %v1567
    %1697 = vmatprep.subr.bf16.mxu0 %v1570
    %1698 = vmatpush1.bf16.msra.mxu0 %v1569
    %1699 = vmatprep.subr.bf16.mxu0 %v1572
    %1700 = vmatpush1.bf16.msra.mxu0 %v1571
    %1701 = vmatprep.subr.bf16.mxu0 %v1574
    %1702 = vmatpush1.bf16.msra.mxu0 %v1573
    %1703 = vmatprep.mubr.bf16.mxu0 %v1272
    %1704 = vmatmul.mubr.bf16.gmra.mrb[0].mxu0 %v1271
    %v1705 = vpop.f32.mrb[0].mxu0
    %v1706 = vadd.f32 %v1344, %v1705
    %v1707 = vpop.f32.mrb[0].mxu0
    %v1708 = vadd.f32 %v1348, %v1707
    %v1709 = vpop.f32.mrb[0].mxu0
    %v1710 = vadd.f32 %v1344, %v1709
    %v1711 = vpop.f32.mrb[0].mxu0
    %v1712 = vadd.f32 %v1348, %v1711
    %1713 = vdwg.mxu0
    %1714 = vmatprep.subr.bf16.mxu0 %v1576
    %1715 = vmatpush1.bf16.msra.mxu0 %v1575
    %1716 = vmatprep.subr.bf16.mxu0 %v1578
    %1717 = vmatpush1.bf16.msra.mxu0 %v1577
    %1718 = vmatprep.subr.bf16.mxu0 %v1580
    %1719 = vmatpush1.bf16.msra.mxu0 %v1579
    %1720 = vmatprep.subr.bf16.mxu0 %v1582
    %1721 = vmatpush1.bf16.msra.mxu0 %v1581
    %1722 = vmatprep.subr.bf16.mxu0 %v1584
    %1723 = vmatpush1.bf16.msra.mxu0 %v1583
    %1724 = vmatprep.subr.bf16.mxu0 %v1586
    %1725 = vmatpush1.bf16.msra.mxu0 %v1585
    %1726 = vmatprep.subr.bf16.mxu0 %v1588
    %1727 = vmatpush1.bf16.msra.mxu0 %v1587
    %1728 = vmatprep.subr.bf16.mxu0 %v1590
    %1729 = vmatpush1.bf16.msra.mxu0 %v1589
    %1730 = vmatprep.subr.bf16.mxu0 %v1592
    %1731 = vmatpush1.bf16.msra.mxu0 %v1591
    %1732 = vmatprep.subr.bf16.mxu0 %v1594
    %1733 = vmatpush1.bf16.msra.mxu0 %v1593
    %1734 = vmatprep.subr.bf16.mxu0 %v1596
    %1735 = vmatpush1.bf16.msra.mxu0 %v1595
    %1736 = vmatprep.subr.bf16.mxu0 %v1598
    %1737 = vmatpush1.bf16.msra.mxu0 %v1597
    %1738 = vmatprep.subr.bf16.mxu0 %v1600
    %1739 = vmatpush1.bf16.msra.mxu0 %v1599
    %1740 = vmatprep.subr.bf16.mxu0 %v1602
    %1741 = vmatpush1.bf16.msra.mxu0 %v1601
    %1742 = vmatprep.subr.bf16.mxu0 %v1604
    %1743 = vmatpush1.bf16.msra.mxu0 %v1603
    %1744 = vmatprep.subr.bf16.mxu0 %v1606
    %1745 = vmatpush1.bf16.msra.mxu0 %v1605
    %1746 = vmatprep.mubr.bf16.mxu0 %v1274
    %1747 = vmatmul.mubr.bf16.gmra.mrb[0].mxu0 %v1273
    %v1748 = vpop.f32.mrb[0].mxu0
    %v1749 = vadd.f32 %v1706, %v1748
    %v1750 = vpop.f32.mrb[0].mxu0
    %v1751 = vadd.f32 %v1708, %v1750
    %v1752 = vpop.f32.mrb[0].mxu0
    %v1753 = vadd.f32 %v1710, %v1752
    %v1754 = vpop.f32.mrb[0].mxu0
    %v1755 = vadd.f32 %v1712, %v1754
    %1756 = vdwg.mxu0
    %v1757 = vmax.f32 %v1749, 0.0
    %v1758 = vmax.f32 %v1751, 0.0
    %v1759 = vmax.f32 %v1753, 0.0
    %v1760 = vmax.f32 %v1755, 0.0
    %v1761 = vpack.c.bf16 %v1759, %v1757
    %v1762 = vpack.c.bf16 %v1760, %v1758
    %v1763 = vld [vmem:[#allocation10] sm:$0xf]
    %v1764 = vld [vmem:[#allocation10 + $0x4] sm:$0xf]
    %v1765 = vld [vmem:[#allocation10 + $0x8] sm:$0xf]
    %v1766 = vld [vmem:[#allocation10 + $0xc] sm:$0xf]
    %v1767 = vld [vmem:[#allocation10 + $0x10] sm:$0xf]
    %v1768 = vld [vmem:[#allocation10 + $0x14] sm:$0xf]
    %v1769 = vld [vmem:[#allocation10 + $0x18] sm:$0xf]
    %v1770 = vld [vmem:[#allocation10 + $0x1c] sm:$0xf]
    %v1771 = vld [vmem:[#allocation10 + $0x20] sm:$0xf]
    %v1772 = vld [vmem:[#allocation10 + $0x24] sm:$0xf]
    %v1773 = vld [vmem:[#allocation10 + $0x28] sm:$0xf]
    %v1774 = vld [vmem:[#allocation10 + $0x2c] sm:$0xf]
    %v1775 = vld [vmem:[#allocation10 + $0x30] sm:$0xf]
    %v1776 = vld [vmem:[#allocation10 + $0x34] sm:$0xf]
    %v1777 = vld [vmem:[#allocation10 + $0x38] sm:$0xf]
    %v1778 = vld [vmem:[#allocation10 + $0x3c] sm:$0xf]
    %v1779 = vld [vmem:[#allocation10 + $0x40] sm:$0xf]
    %v1780 = vld [vmem:[#allocation10 + $0x44] sm:$0xf]
    %v1781 = vld [vmem:[#allocation10 + $0x48] sm:$0xf]
    %v1782 = vld [vmem:[#allocation10 + $0x4c] sm:$0xf]
    %v1783 = vld [vmem:[#allocation10 + $0x50] sm:$0xf]
    %v1784 = vld [vmem:[#allocation10 + $0x54] sm:$0xf]
    %v1785 = vld [vmem:[#allocation10 + $0x58] sm:$0xf]
    %v1786 = vld [vmem:[#allocation10 + $0x5c] sm:$0xf]
    %v1787 = vld [vmem:[#allocation10 + $0x60] sm:$0xf]
    %v1788 = vld [vmem:[#allocation10 + $0x64] sm:$0xf]
    %v1789 = vld [vmem:[#allocation10 + $0x68] sm:$0xf]
    %v1790 = vld [vmem:[#allocation10 + $0x6c] sm:$0xf]
    %v1791 = vld [vmem:[#allocation10 + $0x70] sm:$0xf]
    %v1792 = vld [vmem:[#allocation10 + $0x74] sm:$0xf]
    %v1793 = vld [vmem:[#allocation10 + $0x78] sm:$0xf]
    %v1794 = vld [vmem:[#allocation10 + $0x7c] sm:$0xf]
    %v1795 = vld [vmem:[%s8] sm:$0x1]
    %v1797 = vlaneseq
    %v1798 = vshrl.u32 %v1797, 7
    %v1799 = vsub.s32 0, %v1798
    %v1800 = vrot.slane %v1795, %v1799
    %v1834 = vunpack.c.l.b16 %v1763
    %v1835 = vunpack.c.l.b16 %v1764
    %v1836 = vunpack.c.l.b16 %v1765
    %v1837 = vunpack.c.l.b16 %v1766
    %v1838 = vunpack.c.l.b16 %v1767
    %v1839 = vunpack.c.l.b16 %v1768
    %v1840 = vunpack.c.l.b16 %v1769
    %v1841 = vunpack.c.l.b16 %v1770
    %v1842 = vunpack.c.l.b16 %v1771
    %v1843 = vunpack.c.l.b16 %v1772
    %v1844 = vunpack.c.l.b16 %v1773
    %v1845 = vunpack.c.l.b16 %v1774
    %v1846 = vunpack.c.l.b16 %v1775
    %v1847 = vunpack.c.l.b16 %v1776
    %v1848 = vunpack.c.l.b16 %v1777
    %v1849 = vunpack.c.l.b16 %v1778
    %v1850 = vunpack.c.l.b16 %v1779
    %v1851 = vunpack.c.l.b16 %v1780
    %v1852 = vunpack.c.l.b16 %v1781
    %v1853 = vunpack.c.l.b16 %v1782
    %v1854 = vunpack.c.l.b16 %v1783
    %v1855 = vunpack.c.l.b16 %v1784
    %v1856 = vunpack.c.l.b16 %v1785
    %v1857 = vunpack.c.l.b16 %v1786
    %v1858 = vunpack.c.l.b16 %v1787
    %v1859 = vunpack.c.l.b16 %v1788
    %v1860 = vunpack.c.l.b16 %v1789
    %v1861 = vunpack.c.l.b16 %v1790
    %v1862 = vunpack.c.l.b16 %v1791
    %v1863 = vunpack.c.l.b16 %v1792
    %v1864 = vunpack.c.l.b16 %v1793
    %v1865 = vunpack.c.l.b16 %v1794
    %v1866 = vpack.c.b16 %v1835, %v1834
    %v1867 = vpack.c.b16 %v1837, %v1836
    %v1868 = vpack.c.b16 %v1839, %v1838
    %v1869 = vpack.c.b16 %v1841, %v1840
    %v1870 = vpack.c.b16 %v1843, %v1842
    %v1871 = vpack.c.b16 %v1845, %v1844
    %v1872 = vpack.c.b16 %v1847, %v1846
    %v1873 = vpack.c.b16 %v1849, %v1848
    %v1874 = vpack.c.b16 %v1851, %v1850
    %v1875 = vpack.c.b16 %v1853, %v1852
    %v1876 = vpack.c.b16 %v1855, %v1854
    %v1877 = vpack.c.b16 %v1857, %v1856
    %v1878 = vpack.c.b16 %v1859, %v1858
    %v1879 = vpack.c.b16 %v1861, %v1860
    %v1880 = vpack.c.b16 %v1863, %v1862
    %v1881 = vpack.c.b16 %v1865, %v1864
    %1898 = vmatprep.subr.bf16.mxu0 0
    %1899 = vmatpush1.bf16.msra.mxu0 %v1866
    %1900 = vmatprep.subr.bf16.mxu0 0
    %1901 = vmatpush1.bf16.msra.mxu0 %v1867
    %1902 = vmatprep.subr.bf16.mxu0 0
    %1903 = vmatpush1.bf16.msra.mxu0 %v1868
    %1904 = vmatprep.subr.bf16.mxu0 0
    %1905 = vmatpush1.bf16.msra.mxu0 %v1869
    %1906 = vmatprep.subr.bf16.mxu0 0
    %1907 = vmatpush1.bf16.msra.mxu0 %v1870
    %1908 = vmatprep.subr.bf16.mxu0 0
    %1909 = vmatpush1.bf16.msra.mxu0 %v1871
    %1910 = vmatprep.subr.bf16.mxu0 0
    %1911 = vmatpush1.bf16.msra.mxu0 %v1872
    %1912 = vmatprep.subr.bf16.mxu0 0
    %1913 = vmatpush1.bf16.msra.mxu0 %v1873
    %1914 = vmatprep.subr.bf16.mxu0 0
    %1915 = vmatpush1.bf16.msra.mxu0 %v1874
    %1916 = vmatprep.subr.bf16.mxu0 0
    %1917 = vmatpush1.bf16.msra.mxu0 %v1875
    %1918 = vmatprep.subr.bf16.mxu0 0
    %1919 = vmatpush1.bf16.msra.mxu0 %v1876
    %1920 = vmatprep.subr.bf16.mxu0 0
    %1921 = vmatpush1.bf16.msra.mxu0 %v1877
    %1922 = vmatprep.subr.bf16.mxu0 0
    %1923 = vmatpush1.bf16.msra.mxu0 %v1878
    %1924 = vmatprep.subr.bf16.mxu0 0
    %1925 = vmatpush1.bf16.msra.mxu0 %v1879
    %1926 = vmatprep.subr.bf16.mxu0 0
    %1927 = vmatpush1.bf16.msra.mxu0 %v1880
    %1928 = vmatprep.subr.bf16.mxu0 0
    %1929 = vmatpush1.bf16.msra.mxu0 %v1881
    %1930 = vmatprep.mubr.bf16.mxu0 %v1762
    %1931 = vmatmul.mubr.bf16.gmra.mrb[0].mxu0 %v1761
    %v1932 = vpop.f32.mrb[0].mxu0
    %v1933 = vadd.f32 %v1800, %v1932
    %v1934 = vpop.f32.mrb[0].mxu0
    %v1935 = vpop.f32.mrb[0].mxu0
    %v1936 = vadd.f32 %v1800, %v1935
    %v1937 = vpop.f32.mrb[0].mxu0
    %1938 = vdwg.mxu0
    %v1939 = vmax.f32 %v1933, 0.0
    %v1940 = vmax.f32 %v1936, 0.0
    %v1941 = vpack.c.bf16 %v1940, %v1939
    %v1942 = vld [vmem:[#allocation11] sm:$0xf]
    %v1943 = vld [vmem:[#allocation11 + $0x4] sm:$0xf]
    %v1944 = vld [vmem:[#allocation11 + $0x8] sm:$0xf]
    %v1945 = vld [vmem:[#allocation11 + $0xc] sm:$0xf]
    %v1946 = vld [vmem:[#allocation11 + $0x10] sm:$0xf]
    %v1947 = vld [vmem:[#allocation11 + $0x14] sm:$0xf]
    %v1948 = vld [vmem:[#allocation11 + $0x18] sm:$0xf]
    %v1949 = vld [vmem:[#allocation11 + $0x1c] sm:$0xf]
    %v1950 = vld [vmem:[#allocation11 + $0x20] sm:$0xf]
    %v1951 = vld [vmem:[#allocation11 + $0x24] sm:$0xf]
    %v1952 = vld [vmem:[#allocation11 + $0x28] sm:$0xf]
    %v1953 = vld [vmem:[#allocation11 + $0x2c] sm:$0xf]
    %v1954 = vld [vmem:[#allocation11 + $0x30] sm:$0xf]
    %v1955 = vld [vmem:[#allocation11 + $0x34] sm:$0xf]
    %v1956 = vld [vmem:[#allocation11 + $0x38] sm:$0xf]
    %v1957 = vld [vmem:[#allocation11 + $0x3c] sm:$0xf]
    %v1958 = vld [vmem:[%s10] sm:$0x1]
    %v1960 = vlaneseq
    %v1961 = vshrl.u32 %v1960, 7
    %v1962 = vsub.s32 0, %v1961
    %v1963 = vrot.slane %v1958, %v1962
    %v1981 = vunpack.c.l.b16 %v1942
    %v1982 = vunpack.c.l.b16 %v1943
    %v1983 = vunpack.c.l.b16 %v1944
    %v1984 = vunpack.c.l.b16 %v1945
    %v1985 = vunpack.c.l.b16 %v1946
    %v1986 = vunpack.c.l.b16 %v1947
    %v1987 = vunpack.c.l.b16 %v1948
    %v1988 = vunpack.c.l.b16 %v1949
    %v1989 = vunpack.c.l.b16 %v1950
    %v1990 = vunpack.c.l.b16 %v1951
    %v1991 = vunpack.c.l.b16 %v1952
    %v1992 = vunpack.c.l.b16 %v1953
    %v1993 = vunpack.c.l.b16 %v1954
    %v1994 = vunpack.c.l.b16 %v1955
    %v1995 = vunpack.c.l.b16 %v1956
    %v1996 = vunpack.c.l.b16 %v1957
    %v1997 = vpack.c.b16 %v1982, %v1981
    %v1998 = vpack.c.b16 %v1984, %v1983
    %v1999 = vpack.c.b16 %v1986, %v1985
    %v2000 = vpack.c.b16 %v1988, %v1987
    %v2001 = vpack.c.b16 %v1990, %v1989
    %v2002 = vpack.c.b16 %v1992, %v1991
    %v2003 = vpack.c.b16 %v1994, %v1993
    %v2004 = vpack.c.b16 %v1996, %v1995
    %2013 = vmatprep.subr.bf16.mxu0 0
    %2014 = vmatpush1.bf16.msra.mxu0 %v1997
    %2015 = vmatprep.subr.bf16.mxu0 0
    %2016 = vmatpush1.bf16.msra.mxu0 %v1998
    %2017 = vmatprep.subr.bf16.mxu0 0
    %2018 = vmatpush1.bf16.msra.mxu0 %v1999
    %2019 = vmatprep.subr.bf16.mxu0 0
    %2020 = vmatpush1.bf16.msra.mxu0 %v2000
    %2021 = vmatprep.subr.bf16.mxu0 0
    %2022 = vmatpush1.bf16.msra.mxu0 %v2001
    %2023 = vmatprep.subr.bf16.mxu0 0
    %2024 = vmatpush1.bf16.msra.mxu0 %v2002
    %2025 = vmatprep.subr.bf16.mxu0 0
    %2026 = vmatpush1.bf16.msra.mxu0 %v2003
    %2027 = vmatprep.subr.bf16.mxu0 0
    %2028 = vmatpush1.bf16.msra.mxu0 %v2004
    %2029 = vmatprep.subr.bf16.mxu0 0
    %2030 = vmatpush1.bf16.msra.mxu0 0
    %2031 = vmatprep.subr.bf16.mxu0 0
    %2032 = vmatpush1.bf16.msra.mxu0 0
    %2033 = vmatprep.subr.bf16.mxu0 0
    %2034 = vmatpush1.bf16.msra.mxu0 0
    %2035 = vmatprep.subr.bf16.mxu0 0
    %2036 = vmatpush1.bf16.msra.mxu0 0
    %2037 = vmatprep.subr.bf16.mxu0 0
    %2038 = vmatpush1.bf16.msra.mxu0 0
    %2039 = vmatprep.subr.bf16.mxu0 0
    %2040 = vmatpush1.bf16.msra.mxu0 0
    %2041 = vmatprep.subr.bf16.mxu0 0
    %2042 = vmatpush1.bf16.msra.mxu0 0
    %2043 = vmatprep.subr.bf16.mxu0 0
    %2044 = vmatpush1.bf16.msra.mxu0 0
    %2045 = vmatprep.mubr.bf16.mxu0 0
    %2046 = vmatmul.mubr.bf16.gmra.mrb[0].mxu0 %v1941
    %v2047 = vpop.f32.mrb[0].mxu0
    %v2048 = vadd.f32 %v1963, %v2047
    %v2049 = vpop.f32.mrb[0].mxu0
    %v2050 = vpop.f32.mrb[0].mxu0
    %v2051 = vadd.f32 %v1963, %v2050
    %v2052 = vpop.f32.mrb[0].mxu0
    %2053 = vdwg.mxu0
    %v2054 = vpack.c.bf16 %v2051, %v2048
    %v2056 = vunpack.c.l.b16 %v2054
    %v2057 = vunpack.c.h.b16 %v2054
    %v2058 = vpack.c.b16 %v2056, %v2056
    %v2059 = vpack.c.b16 %v2057, %v2057
    %2062 = vst [vmem:[#allocation13] sm:$0xf] %v2058
    %2063 = vst [vmem:[#allocation13 + $0x4] sm:$0xf] %v2059
    // Predicated region
    $region70: #{tpu_custom_call.1} parent=1 // pred_check
      _
    $region71: #{tpu_custom_call.1} parent=1 // pred_check_branch
      %2065 = sbr.rel (0) target = $region73
    $region72: #{tpu_custom_call.1} parent=1 // pred_region
      %s2067 = ssub.s32 128, 128
      %2068 = vsyncadd [#allocation4], %s2067
      %s2069 = sshll.u32 [#allocation13], 4
      %s2070 = int_to_ptr.vmem [resolvable:$true] %s2069
      %2075 = dma.vmem_to_hbm [thread:$0]  %s2070, 128, %s11, [#allocation4], 64, 64, 4
    $region73: #{tpu_custom_call.1} parent=1 // pred_fallthru
      _
    // Predicated region
    $region74: #{tpu_custom_call.1} parent=1 // pred_check
      _
    $region75: #{tpu_custom_call.1} parent=1 // pred_check_branch
      %2077 = sbr.rel (0) target = $region77
    $region76: #{tpu_custom_call.1} parent=1 // pred_region
      %2078 = dma.done [#allocation4], 128
    $region77: #{tpu_custom_call.1} parent=1 // pred_fallthru
      _
    %2079 = vsyncpa [#allocation3], 1
    %2080 = vsyncpa [#allocation6], 1
    %2081 = vsyncpa [#allocation9], 1
    %2082 = vsyncpa [#allocation12], 1
    %2083 = vsyncpa [#allocation4], 1

// kernel: tpu_custom_call.1
$region0: #{tpu_custom_call.1}
  #allocation0 [shape = 'u32[]', space=smem, size = 0x4, offset = 0x4, fixed_abs, tag = 'smem constant byte address 0x4 - core index']
  #allocation1 [shape = 'u32[144,128]{1,0:T(1,128)}', space=vmem, size = 0x12000, scoped, tag = 'internal scratch']
  %s0 = inlined_call_operand.hbm [shape: bf16[16,32], index: 0, kind: input, shape index: {}]
  %s1 = inlined_call_operand.hbm [shape: bf16[32,512], index: 1, kind: input, shape index: {}]
  %s2 = inlined_call_operand.vmem [shape: f32[1,512], index: 2, kind: input, shape index: {}]
  %s3 = inlined_call_operand.hbm [shape: bf16[512,512], index: 3, kind: input, shape index: {}]
  %s4 = inlined_call_operand.vmem [shape: f32[1,512], index: 4, kind: input, shape index: {}]
  %s5 = inlined_call_operand.hbm [shape: bf16[512,256], index: 5, kind: input, shape index: {}]
  %s6 = inlined_call_operand.vmem [shape: f32[1,256], index: 6, kind: input, shape index: {}]
  %s7 = inlined_call_operand.hbm [shape: bf16[256,128], index: 7, kind: input, shape index: {}]
  %s8 = inlined_call_operand.vmem [shape: f32[1,128], index: 8, kind: input, shape index: {}]
  %s9 = inlined_call_operand.hbm [shape: bf16[128,128], index: 9, kind: input, shape index: {}]
  %s10 = inlined_call_operand.vmem [shape: f32[1,128], index: 10, kind: input, shape index: {}]
  %s11 = inlined_call_operand.hbm [shape: bf16[16,128], index: 11, kind: output, shape index: {}]
  %s12 = sld [smem:[#allocation0]]
  $region78: #{tpu_custom_call.1} parent=0
    _
  %s14 = ssub.s32 1, %s12
  %s15 = scalar_select 0, %s14, %s12
  $region1: #{tpu_custom_call.1} parent=0
    #allocation2 [shape = 'u8[4096]{0}', space=vmem, size = 0x1000, scoped, tag = 'input window, operand 0, single buffered']
    #allocation3 [shape = 's32[1]{0}', space=sflag, size = 0x4, scoped, tag = 'scoped memory for tpu_custom_call.1']
    #allocation4 [shape = 's32[1]{0}', space=sflag, size = 0x4, scoped, tag = 'scoped memory for tpu_custom_call.1']
    #allocation5 [shape = 'u8[32768]{0}', space=vmem, size = 0x8000, scoped, tag = 'input window, operand 1, single buffered']
    #allocation6 [shape = 's32[1]{0}', space=sflag, size = 0x4, scoped, tag = 'scoped memory for tpu_custom_call.1']
    #allocation7 [shape = 'u8[524288]{0}', space=vmem, size = 0x80000, scoped, tag = 'input window, operand 3, single buffered']
    #allocation8 [shape = 'u8[262144]{0}', space=vmem, size = 0x40000, scoped, tag = 'input window, operand 5, single buffered']
    #allocation9 [shape = 's32[1]{0}', space=sflag, size = 0x4, scoped, tag = 'scoped memory for tpu_custom_call.1']
    #allocation10 [shape = 'u8[65536]{0}', space=vmem, size = 0x10000, scoped, tag = 'input window, operand 7, single buffered']
    #allocation11 [shape = 'u8[32768]{0}', space=vmem, size = 0x8000, scoped, tag = 'input window, operand 9, single buffered']
    #allocation12 [shape = 's32[1]{0}', space=sflag, size = 0x4, scoped, tag = 'scoped memory for tpu_custom_call.1']
    #allocation13 [shape = 'u8[4096]{0}', space=vmem, size = 0x1000, scoped, tag = 'output window, operand 0, single buffered']
    %16 = vsyncpa [#allocation3], 0
    %17 = vsyncpa [#allocation6], 0
    %18 = vsyncpa [#allocation9], 0
    %19 = vsyncpa [#allocation12], 0
    %20 = vsyncpa [#allocation4], 0
    // Predicated region
    $region2: #{tpu_custom_call.1} parent=1 // pred_check
      _
    $region3: #{tpu_custom_call.1} parent=1 // pred_check_branch
      %22 = sbr.rel (0) target = $region5
    $region4: #{tpu_custom_call.1} parent=1 // pred_region
      %s24 = ssub.s32 128, 128
      %25 = vsyncadd [#allocation3], %s24
      %s26 = sshll.u32 [#allocation2], 4
      %s27 = int_to_ptr.vmem [resolvable:$true] %s26
      %32 = dma.hbm_to_vmem [thread:$0]  %s0, 128, %s27, [#allocation3], 64, 64, 4
    $region5: #{tpu_custom_call.1} parent=1 // pred_fallthru
      _
    // Predicated region
    $region6: #{tpu_custom_call.1} parent=1 // pred_check
      _
    $region7: #{tpu_custom_call.1} parent=1 // pred_check_branch
      %34 = sbr.rel (0) target = $region9
    $region8: #{tpu_custom_call.1} parent=1 // pred_region
      %s36 = ssub.s32 1024, 1024
      %37 = vsyncadd [#allocation6], %s36
      %s38 = sshll.u32 [#allocation5], 4
      %s39 = int_to_ptr.vmem [resolvable:$true] %s38
      %44 = dma.hbm_to_vmem [thread:$0]  %s1, 1024, %s39, [#allocation6], 256, 256, 16
    $region9: #{tpu_custom_call.1} parent=1 // pred_fallthru
      _
    // Predicated region
    $region10: #{tpu_custom_call.1} parent=1 // pred_check
      _
    $region11: #{tpu_custom_call.1} parent=1 // pred_check_branch
      %46 = sbr.rel (0) target = $region13
    $region12: #{tpu_custom_call.1} parent=1 // pred_region
      _
    $region13: #{tpu_custom_call.1} parent=1 // pred_fallthru
      _
    // Predicated region
    $region14: #{tpu_custom_call.1} parent=1 // pred_check
      _
    $region15: #{tpu_custom_call.1} parent=1 // pred_check_branch
      %48 = sbr.rel (0) target = $region17
    $region16: #{tpu_custom_call.1} parent=1 // pred_region
      %s50 = ssub.s32 16384, 16384
      %51 = vsyncadd [#allocation6], %s50
      %s52 = sshll.u32 [#allocation7], 4
      %s53 = int_to_ptr.vmem [resolvable:$true] %s52
      %58 = dma.hbm_to_vmem [thread:$0]  %s3, 16384, %s53, [#allocation6], 256, 256, 16
    $region17: #{tpu_custom_call.1} parent=1 // pred_fallthru
      _
    // Predicated region
    $region18: #{tpu_custom_call.1} parent=1 // pred_check
      _
    $region19: #{tpu_custom_call.1} parent=1 // pred_check_branch
      %60 = sbr.rel (0) target = $region21
    $region20: #{tpu_custom_call.1} parent=1 // pred_region
      _
    $region21: #{tpu_custom_call.1} parent=1 // pred_fallthru
      _
    // Predicated region
    $region22: #{tpu_custom_call.1} parent=1 // pred_check
      _
    $region23: #{tpu_custom_call.1} parent=1 // pred_check_branch
      %62 = sbr.rel (0) target = $region25
    $region24: #{tpu_custom_call.1} parent=1 // pred_region
      %s64 = ssub.s32 8192, 8192
      %65 = vsyncadd [#allocation9], %s64
      %s66 = sshll.u32 [#allocation8], 4
      %s67 = int_to_ptr.vmem [resolvable:$true] %s66
      %72 = dma.hbm_to_vmem [thread:$0]  %s5, 8192, %s67, [#allocation9], 128, 128, 8
    $region25: #{tpu_custom_call.1} parent=1 // pred_fallthru
      _
    // Predicated region
    $region26: #{tpu_custom_call.1} parent=1 // pred_check
      _
    $region27: #{tpu_custom_call.1} parent=1 // pred_check_branch
      %74 = sbr.rel (0) target = $region29
    $region28: #{tpu_custom_call.1} parent=1 // pred_region
      _
    $region29: #{tpu_custom_call.1} parent=1 // pred_fallthru
      _
    // Predicated region
    $region30: #{tpu_custom_call.1} parent=1 // pred_check
      _
    $region31: #{tpu_custom_call.1} parent=1 // pred_check_branch
      %76 = sbr.rel (0) target = $region33
    $region32: #{tpu_custom_call.1} parent=1 // pred_region
      %s78 = ssub.s32 2048, 2048
      %79 = vsyncadd [#allocation9], %s78
      %s80 = sshll.u32 [#allocation10], 4
      %s81 = int_to_ptr.vmem [resolvable:$true] %s80
      %86 = dma.hbm_to_vmem [thread:$0]  %s7, 2048, %s81, [#allocation9], 64, 64, 4
    $region33: #{tpu_custom_call.1} parent=1 // pred_fallthru
      _
    // Predicated region
    $region34: #{tpu_custom_call.1} parent=1 // pred_check
      _
    $region35: #{tpu_custom_call.1} parent=1 // pred_check_branch
      %88 = sbr.rel (0) target = $region37
    $region36: #{tpu_custom_call.1} parent=1 // pred_region
      _
    $region37: #{tpu_custom_call.1} parent=1 // pred_fallthru
      _
    // Predicated region
    $region38: #{tpu_custom_call.1} parent=1 // pred_check
      _
    $region39: #{tpu_custom_call.1} parent=1 // pred_check_branch
      %90 = sbr.rel (0) target = $region41
    $region40: #{tpu_custom_call.1} parent=1 // pred_region
      %s92 = ssub.s32 1024, 1024
      %93 = vsyncadd [#allocation12], %s92
      %s94 = sshll.u32 [#allocation11], 4
      %s95 = int_to_ptr.vmem [resolvable:$true] %s94
      %100 = dma.hbm_to_vmem [thread:$0]  %s9, 1024, %s95, [#allocation12], 64, 64, 4
    $region41: #{tpu_custom_call.1} parent=1 // pred_fallthru
      _
    // Predicated region
    $region42: #{tpu_custom_call.1} parent=1 // pred_check
      _
    $region43: #{tpu_custom_call.1} parent=1 // pred_check_branch
      %102 = sbr.rel (0) target = $region45
    $region44: #{tpu_custom_call.1} parent=1 // pred_region
      _
    $region45: #{tpu_custom_call.1} parent=1 // pred_fallthru
      _
    // Predicated region
    $region46: #{tpu_custom_call.1} parent=1 // pred_check
      _
    $region47: #{tpu_custom_call.1} parent=1 // pred_check_branch
      %104 = sbr.rel (0) target = $region49
    $region48: #{tpu_custom_call.1} parent=1 // pred_region
      %105 = dma.done [#allocation3], 128
    $region49: #{tpu_custom_call.1} parent=1 // pred_fallthru
      _
    // Predicated region
    $region50: #{tpu_custom_call.1} parent=1 // pred_check
      _
    $region51: #{tpu_custom_call.1} parent=1 // pred_check_branch
      %107 = sbr.rel (0) target = $region53
    $region52: #{tpu_custom_call.1} parent=1 // pred_region
      %108 = dma.done [#allocation6], 1024
    $region53: #{tpu_custom_call.1} parent=1 // pred_fallthru
      _
    // Predicated region
    $region54: #{tpu_custom_call.1} parent=1 // pred_check
      _
    $region55: #{tpu_custom_call.1} parent=1 // pred_check_branch
      %110 = sbr.rel (0) target = $region57
    $region56: #{tpu_custom_call.1} parent=1 // pred_region
      %111 = dma.done [#allocation6], 16384
    $region57: #{tpu_custom_call.1} parent=1 // pred_fallthru
      _
    // Predicated region
    $region58: #{tpu_custom_call.1} parent=1 // pred_check
      _
    $region59: #{tpu_custom_call.1} parent=1 // pred_check_branch
      %113 = sbr.rel (0) target = $region61
    $region60: #{tpu_custom_call.1} parent=1 // pred_region
      %114 = dma.done [#allocation9], 8192
    $region61: #{tpu_custom_call.1} parent=1 // pred_fallthru
      _
    // Predicated region
    $region62: #{tpu_custom_call.1} parent=1 // pred_check
      _
    $region63: #{tpu_custom_call.1} parent=1 // pred_check_branch
      %116 = sbr.rel (0) target = $region65
    $region64: #{tpu_custom_call.1} parent=1 // pred_region
      %117 = dma.done [#allocation9], 2048
    $region65: #{tpu_custom_call.1} parent=1 // pred_fallthru
      _
    // Predicated region
    $region66: #{tpu_custom_call.1} parent=1 // pred_check
      _
    $region67: #{tpu_custom_call.1} parent=1 // pred_check_branch
      %119 = sbr.rel (0) target = $region69
    $region68: #{tpu_custom_call.1} parent=1 // pred_region
      %120 = dma.done [#allocation12], 1024
    $region69: #{tpu_custom_call.1} parent=1 // pred_fallthru
      _
    %v122 = vld [vmem:[#allocation2] sm:$0xf]
    %v123 = vld [vmem:[#allocation2 + $0x4] sm:$0xf]
    %v124 = vld [vmem:[#allocation5] sm:$0xff]
    %v125 = vld [vmem:[#allocation5 + $0x8] sm:$0xff]
    %v126 = vld [vmem:[#allocation5 + $0x10] sm:$0xff]
    %v127 = vld [vmem:[#allocation5 + $0x18] sm:$0xff]
    %v128 = vld [vmem:[#allocation5 + $0x20] sm:$0xff]
    %v129 = vld [vmem:[#allocation5 + $0x28] sm:$0xff]
    %v130 = vld [vmem:[#allocation5 + $0x30] sm:$0xff]
    %v131 = vld [vmem:[#allocation5 + $0x38] sm:$0xff]
    %v132 = vld [vmem:[%s2] sm:$0xf]
    %v134 = vlaneseq
    %v135 = vshrl.u32 %v134, 7
    %v136 = vsub.s32 0, %v135
    %v137 = vrot.slane %v132, %v136
    %v138 = vlaneseq
    %v139 = vshrl.u32 %v138, 7
    %v140 = vsub.s32 1, %v139
    %v141 = vrot.slane %v132, %v140
    %v142 = vlaneseq
    %v143 = vshrl.u32 %v142, 7
    %v144 = vsub.s32 2, %v143
    %v145 = vrot.slane %v132, %v144
    %v146 = vlaneseq
    %v147 = vshrl.u32 %v146, 7
    %v148 = vsub.s32 3, %v147
    %v149 = vrot.slane %v132, %v148
    %v156 = vunpack.c.l.b16 %v122
    %v157 = vunpack.c.l.b16 %v123
    %v158 = vpack.c.b16 %v157, %v156
    %v167 = vunpack.c.l.b16 %v124
    %v168 = vunpack.c.h.b16 %v124
    %v169 = vunpack.c.l.b16 %v125
    %v170 = vunpack.c.h.b16 %v125
    %v171 = vunpack.c.l.b16 %v126
    %v172 = vunpack.c.h.b16 %v126
    %v173 = vunpack.c.l.b16 %v127
    %v174 = vunpack.c.h.b16 %v127
    %v175 = vunpack.c.l.b16 %v128
    %v176 = vunpack.c.h.b16 %v128
    %v177 = vunpack.c.l.b16 %v129
    %v178 = vunpack.c.h.b16 %v129
    %v179 = vunpack.c.l.b16 %v130
    %v180 = vunpack.c.h.b16 %v130
    %v181 = vunpack.c.l.b16 %v131
    %v182 = vunpack.c.h.b16 %v131
    %v183 = vpack.c.b16 %v171, %v167
    %v184 = vpack.c.b16 %v172, %v168
    %v185 = vpack.c.b16 %v173, %v169
    %v186 = vpack.c.b16 %v174, %v170
    %v187 = vpack.c.b16 %v179, %v175
    %v188 = vpack.c.b16 %v180, %v176
    %v189 = vpack.c.b16 %v181, %v177
    %v190 = vpack.c.b16 %v182, %v178
    %vm199 = vcmask 261120
    %v201 = vsel %vm199, %v158, 0
    %203 = vmatprep.subr.bf16.mxu0 %v184
    %204 = vmatpush1.bf16.msra.mxu0 %v183
    %205 = vmatprep.subr.bf16.mxu0 %v188
    %206 = vmatpush1.bf16.msra.mxu0 %v187
    %207 = vmatprep.subr.bf16.mxu0 0
    %208 = vmatpush1.bf16.msra.mxu0 0
    %209 = vmatprep.subr.bf16.mxu0 0
    %210 = vmatpush1.bf16.msra.mxu0 0
    %211 = vmatprep.subr.bf16.mxu0 0
    %212 = vmatpush1.bf16.msra.mxu0 0
    %213 = vmatprep.subr.bf16.mxu0 0
    %214 = vmatpush1.bf16.msra.mxu0 0
    %215 = vmatprep.subr.bf16.mxu0 0
    %216 = vmatpush1.bf16.msra.mxu0 0
    %217 = vmatprep.subr.bf16.mxu0 0
    %218 = vmatpush1.bf16.msra.mxu0 0
    %219 = vmatprep.subr.bf16.mxu0 0
    %220 = vmatpush1.bf16.msra.mxu0 0
    %221 = vmatprep.subr.bf16.mxu0 0
    %222 = vmatpush1.bf16.msra.mxu0 0
    %223 = vmatprep.subr.bf16.mxu0 0
    %224 = vmatpush1.bf16.msra.mxu0 0
    %225 = vmatprep.subr.bf16.mxu0 0
    %226 = vmatpush1.bf16.msra.mxu0 0
    %227 = vmatprep.subr.bf16.mxu0 0
    %228 = vmatpush1.bf16.msra.mxu0 0
    %229 = vmatprep.subr.bf16.mxu0 0
    %230 = vmatpush1.bf16.msra.mxu0 0
    %231 = vmatprep.subr.bf16.mxu0 0
    %232 = vmatpush1.bf16.msra.mxu0 0
    %233 = vmatprep.subr.bf16.mxu0 0
    %234 = vmatpush1.bf16.msra.mxu0 0
    %235 = vmatprep.mubr.bf16.mxu0 0
    %236 = vmatmul.mubr.bf16.gmra.mrb[0].mxu0 %v201
    %v237 = vpop.f32.mrb[0].mxu0
    %v238 = vadd.f32 %v137, %v237
    %v239 = vpop.f32.mrb[0].mxu0
    %v240 = vadd.f32 %v141, %v239
    %v241 = vpop.f32.mrb[0].mxu0
    %v242 = vadd.f32 %v137, %v241
    %v243 = vpop.f32.mrb[0].mxu0
    %v244 = vadd.f32 %v141, %v243
    %245 = vdwg.mxu0
    %246 = vmatprep.subr.bf16.mxu0 %v186
    %247 = vmatpush1.bf16.msra.mxu0 %v185
    %248 = vmatprep.subr.bf16.mxu0 %v190
    %249 = vmatpush1.bf16.msra.mxu0 %v189
    %250 = vmatprep.subr.bf16.mxu0 0
    %251 = vmatpush1.bf16.msra.mxu0 0
    %252 = vmatprep.subr.bf16.mxu0 0
    %253 = vmatpush1.bf16.msra.mxu0 0
    %254 = vmatprep.subr.bf16.mxu0 0
    %255 = vmatpush1.bf16.msra.mxu0 0
    %256 = vmatprep.subr.bf16.mxu0 0
    %257 = vmatpush1.bf16.msra.mxu0 0
    %258 = vmatprep.subr.bf16.mxu0 0
    %259 = vmatpush1.bf16.msra.mxu0 0
    %260 = vmatprep.subr.bf16.mxu0 0
    %261 = vmatpush1.bf16.msra.mxu0 0
    %262 = vmatprep.subr.bf16.mxu0 0
    %263 = vmatpush1.bf16.msra.mxu0 0
    %264 = vmatprep.subr.bf16.mxu0 0
    %265 = vmatpush1.bf16.msra.mxu0 0
    %266 = vmatprep.subr.bf16.mxu0 0
    %267 = vmatpush1.bf16.msra.mxu0 0
    %268 = vmatprep.subr.bf16.mxu0 0
    %269 = vmatpush1.bf16.msra.mxu0 0
    %270 = vmatprep.subr.bf16.mxu0 0
    %271 = vmatpush1.bf16.msra.mxu0 0
    %272 = vmatprep.subr.bf16.mxu0 0
    %273 = vmatpush1.bf16.msra.mxu0 0
    %274 = vmatprep.subr.bf16.mxu0 0
    %275 = vmatpush1.bf16.msra.mxu0 0
    %276 = vmatprep.subr.bf16.mxu0 0
    %277 = vmatpush1.bf16.msra.mxu0 0
    %278 = vmatprep.mubr.bf16.mxu0 0
    %279 = vmatmul.mubr.bf16.gmra.mrb[0].mxu0 %v201
    %v280 = vpop.f32.mrb[0].mxu0
    %v281 = vadd.f32 %v145, %v280
    %v282 = vpop.f32.mrb[0].mxu0
    %v283 = vadd.f32 %v149, %v282
    %v284 = vpop.f32.mrb[0].mxu0
    %v285 = vadd.f32 %v145, %v284
    %v286 = vpop.f32.mrb[0].mxu0
    %v287 = vadd.f32 %v149, %v286
    %288 = vdwg.mxu0
    %v289 = vmax.f32 %v238, 0.0
    %v290 = vmax.f32 %v240, 0.0
    %v291 = vmax.f32 %v281, 0.0
    %v292 = vmax.f32 %v283, 0.0
    %v293 = vmax.f32 %v242, 0.0
    %v294 = vmax.f32 %v244, 0.0
    %v295 = vmax.f32 %v285, 0.0
    %v296 = vmax.f32 %v287, 0.0
    %v297 = vpack.c.bf16 %v293, %v289
    %v298 = vpack.c.bf16 %v294, %v290
    %v299 = vpack.c.bf16 %v295, %v291
    %v300 = vpack.c.bf16 %v296, %v292
    %v301 = vld [vmem:[#allocation7] sm:$0xff]
    %v302 = vld [vmem:[#allocation7 + $0x8] sm:$0xff]
    %v303 = vld [vmem:[#allocation7 + $0x10] sm:$0xff]
    %v304 = vld [vmem:[#allocation7 + $0x18] sm:$0xff]
    %v305 = vld [vmem:[#allocation7 + $0x20] sm:$0xff]
    %v306 = vld [vmem:[#allocation7 + $0x28] sm:$0xff]
    %v307 = vld [vmem:[#allocation7 + $0x30] sm:$0xff]
    %v308 = vld [vmem:[#allocation7 + $0x38] sm:$0xff]
    %v309 = vld [vmem:[#allocation7 + $0x40] sm:$0xff]
    %v310 = vld [vmem:[#allocation7 + $0x48] sm:$0xff]
    %v311 = vld [vmem:[#allocation7 + $0x50] sm:$0xff]
    %v312 = vld [vmem:[#allocation7 + $0x58] sm:$0xff]
    %v313 = vld [vmem:[#allocation7 + $0x60] sm:$0xff]
    %v314 = vld [vmem:[#allocation7 + $0x68] sm:$0xff]
    %v315 = vld [vmem:[#allocation7 + $0x70] sm:$0xff]
    %v316 = vld [vmem:[#allocation7 + $0x78] sm:$0xff]
    %v317 = vld [vmem:[#allocation7 + $0x80] sm:$0xff]
    %v318 = vld [vmem:[#allocation7 + $0x88] sm:$0xff]
    %v319 = vld [vmem:[#allocation7 + $0x90] sm:$0xff]
    %v320 = vld [vmem:[#allocation7 + $0x98] sm:$0xff]
    %v321 = vld [vmem:[#allocation7 + $0xa0] sm:$0xff]
    %v322 = vld [vmem:[#allocation7 + $0xa8] sm:$0xff]
    %v323 = vld [vmem:[#allocation7 + $0xb0] sm:$0xff]
    %v324 = vld [vmem:[#allocation7 + $0xb8] sm:$0xff]
    %v325 = vld [vmem:[#allocation7 + $0xc0] sm:$0xff]
    %v326 = vld [vmem:[#allocation7 + $0xc8] sm:$0xff]
    %v327 = vld [vmem:[#allocation7 + $0xd0] sm:$0xff]
    %v328 = vld [vmem:[#allocation7 + $0xd8] sm:$0xff]
    %v329 = vld [vmem:[#allocation7 + $0xe0] sm:$0xff]
    %v330 = vld [vmem:[#allocation7 + $0xe8] sm:$0xff]
    %v331 = vld [vmem:[#allocation7 + $0xf0] sm:$0xff]
    %v332 = vld [vmem:[#allocation7 + $0xf8] sm:$0xff]
    %v333 = vld [vmem:[#allocation7 + $0x100] sm:$0xff]
    %v334 = vld [vmem:[#allocation7 + $0x108] sm:$0xff]
    %v335 = vld [vmem:[#allocation7 + $0x110] sm:$0xff]
    %v336 = vld [vmem:[#allocation7 + $0x118] sm:$0xff]
    %v337 = vld [vmem:[#allocation7 + $0x120] sm:$0xff]
    %v338 = vld [vmem:[#allocation7 + $0x128] sm:$0xff]
    %v339 = vld [vmem:[#allocation7 + $0x130] sm:$0xff]
    %v340 = vld [vmem:[#allocation7 + $0x138] sm:$0xff]
    %v341 = vld [vmem:[#allocation7 + $0x140] sm:$0xff]
    %v342 = vld [vmem:[#allocation7 + $0x148] sm:$0xff]
    %v343 = vld [vmem:[#allocation7 + $0x150] sm:$0xff]
    %v344 = vld [vmem:[#allocation7 + $0x158] sm:$0xff]
    %v345 = vld [vmem:[#allocation7 + $0x160] sm:$0xff]
    %v346 = vld [vmem:[#allocation7 + $0x168] sm:$0xff]
    %v347 = vld [vmem:[#allocation7 + $0x170] sm:$0xff]
    %v348 = vld [vmem:[#allocation7 + $0x178] sm:$0xff]
    %v349 = vld [vmem:[#allocation7 + $0x180] sm:$0xff]
    %v350 = vld [vmem:[#allocation7 + $0x188] sm:$0xff]
    %v351 = vld [vmem:[#allocation7 + $0x190] sm:$0xff]
    %v352 = vld [vmem:[#allocation7 + $0x198] sm:$0xff]
    %v353 = vld [vmem:[#allocation7 + $0x1a0] sm:$0xff]
    %v354 = vld [vmem:[#allocation7 + $0x1a8] sm:$0xff]
    %v355 = vld [vmem:[#allocation7 + $0x1b0] sm:$0xff]
    %v356 = vld [vmem:[#allocation7 + $0x1b8] sm:$0xff]
    %v357 = vld [vmem:[#allocation7 + $0x1c0] sm:$0xff]
    %v358 = vld [vmem:[#allocation7 + $0x1c8] sm:$0xff]
    %v359 = vld [vmem:[#allocation7 + $0x1d0] sm:$0xff]
    %v360 = vld [vmem:[#allocation7 + $0x1d8] sm:$0xff]
    %v361 = vld [vmem:[#allocation7 + $0x1e0] sm:$0xff]
    %v362 = vld [vmem:[#allocation7 + $0x1e8] sm:$0xff]
    %v363 = vld [vmem:[#allocation7 + $0x1f0] sm:$0xff]
    %v364 = vld [vmem:[#allocation7 + $0x1f8] sm:$0xff]
    %v365 = vld [vmem:[#allocation7 + $0x200] sm:$0xff]
    %v366 = vld [vmem:[#allocation7 + $0x208] sm:$0xff]
    %v367 = vld [vmem:[#allocation7 + $0x210] sm:$0xff]
    %v368 = vld [vmem:[#allocation7 + $0x218] sm:$0xff]
    %v369 = vld [vmem:[#allocation7 + $0x220] sm:$0xff]
    %v370 = vld [vmem:[#allocation7 + $0x228] sm:$0xff]
    %v371 = vld [vmem:[#allocation7 + $0x230] sm:$0xff]
    %v372 = vld [vmem:[#allocation7 + $0x238] sm:$0xff]
    %v373 = vld [vmem:[#allocation7 + $0x240] sm:$0xff]
    %v374 = vld [vmem:[#allocation7 + $0x248] sm:$0xff]
    %v375 = vld [vmem:[#allocation7 + $0x250] sm:$0xff]
    %v376 = vld [vmem:[#allocation7 + $0x258] sm:$0xff]
    %v377 = vld [vmem:[#allocation7 + $0x260] sm:$0xff]
    %v378 = vld [vmem:[#allocation7 + $0x268] sm:$0xff]
    %v379 = vld [vmem:[#allocation7 + $0x270] sm:$0xff]
    %v380 = vld [vmem:[#allocation7 + $0x278] sm:$0xff]
    %v381 = vld [vmem:[#allocation7 + $0x280] sm:$0xff]
    %v382 = vld [vmem:[#allocation7 + $0x288] sm:$0xff]
    %v383 = vld [vmem:[#allocation7 + $0x290] sm:$0xff]
    %v384 = vld [vmem:[#allocation7 + $0x298] sm:$0xff]
    %v385 = vld [vmem:[#allocation7 + $0x2a0] sm:$0xff]
    %v386 = vld [vmem:[#allocation7 + $0x2a8] sm:$0xff]
    %v387 = vld [vmem:[#allocation7 + $0x2b0] sm:$0xff]
    %v388 = vld [vmem:[#allocation7 + $0x2b8] sm:$0xff]
    %v389 = vld [vmem:[#allocation7 + $0x2c0] sm:$0xff]
    %v390 = vld [vmem:[#allocation7 + $0x2c8] sm:$0xff]
    %v391 = vld [vmem:[#allocation7 + $0x2d0] sm:$0xff]
    %v392 = vld [vmem:[#allocation7 + $0x2d8] sm:$0xff]
    %v393 = vld [vmem:[#allocation7 + $0x2e0] sm:$0xff]
    %v394 = vld [vmem:[#allocation7 + $0x2e8] sm:$0xff]
    %v395 = vld [vmem:[#allocation7 + $0x2f0] sm:$0xff]
    %v396 = vld [vmem:[#allocation7 + $0x2f8] sm:$0xff]
    %v397 = vld [vmem:[#allocation7 + $0x300] sm:$0xff]
    %v398 = vld [vmem:[#allocation7 + $0x308] sm:$0xff]
    %v399 = vld [vmem:[#allocation7 + $0x310] sm:$0xff]
    %v400 = vld [vmem:[#allocation7 + $0x318] sm:$0xff]
    %v401 = vld [vmem:[#allocation7 + $0x320] sm:$0xff]
    %v402 = vld [vmem:[#allocation7 + $0x328] sm:$0xff]
    %v403 = vld [vmem:[#allocation7 + $0x330] sm:$0xff]
    %v404 = vld [vmem:[#allocation7 + $0x338] sm:$0xff]
    %v405 = vld [vmem:[#allocation7 + $0x340] sm:$0xff]
    %v406 = vld [vmem:[#allocation7 + $0x348] sm:$0xff]
    %v407 = vld [vmem:[#allocation7 + $0x350] sm:$0xff]
    %v408 = vld [vmem:[#allocation7 + $0x358] sm:$0xff]
    %v409 = vld [vmem:[#allocation7 + $0x360] sm:$0xff]
    %v410 = vld [vmem:[#allocation7 + $0x368] sm:$0xff]
    %v411 = vld [vmem:[#allocation7 + $0x370] sm:$0xff]
    %v412 = vld [vmem:[#allocation7 + $0x378] sm:$0xff]
    %v413 = vld [vmem:[#allocation7 + $0x380] sm:$0xff]
    %v414 = vld [vmem:[#allocation7 + $0x388] sm:$0xff]
    %v415 = vld [vmem:[#allocation7 + $0x390] sm:$0xff]
    %v416 = vld [vmem:[#allocation7 + $0x398] sm:$0xff]
    %v417 = vld [vmem:[#allocation7 + $0x3a0] sm:$0xff]
    %v418 = vld [vmem:[#allocation7 + $0x3a8] sm:$0xff]
    %v419 = vld [vmem:[#allocation7 + $0x3b0] sm:$0xff]
    %v420 = vld [vmem:[#allocation7 + $0x3b8] sm:$0xff]
    %v421 = vld [vmem:[#allocation7 + $0x3c0] sm:$0xff]
    %v422 = vld [vmem:[#allocation7 + $0x3c8] sm:$0xff]
    %v423 = vld [vmem:[#allocation7 + $0x3d0] sm:$0xff]
    %v424 = vld [vmem:[#allocation7 + $0x3d8] sm:$0xff]
    %v425 = vld [vmem:[#allocation7 + $0x3e0] sm:$0xff]
    %v426 = vld [vmem:[#allocation7 + $0x3e8] sm:$0xff]
    %v427 = vld [vmem:[#allocation7 + $0x3f0] sm:$0xff]
    %v428 = vld [vmem:[#allocation7 + $0x3f8] sm:$0xff]
    %v429 = vld [vmem:[%s4] sm:$0xf]
    %v431 = vlaneseq
    %v432 = vshrl.u32 %v431, 7
    %v433 = vsub.s32 0, %v432
    %v434 = vrot.slane %v429, %v433
    %v435 = vlaneseq
    %v436 = vshrl.u32 %v435, 7
    %v437 = vsub.s32 1, %v436
    %v438 = vrot.slane %v429, %v437
    %v439 = vlaneseq
    %v440 = vshrl.u32 %v439, 7
    %v441 = vsub.s32 2, %v440
    %v442 = vrot.slane %v429, %v441
    %v443 = vlaneseq
    %v444 = vshrl.u32 %v443, 7
    %v445 = vsub.s32 3, %v444
    %v446 = vrot.slane %v429, %v445
    %v579 = vunpack.c.l.b16 %v301
    %v580 = vunpack.c.h.b16 %v301
    %v581 = vunpack.c.l.b16 %v302
    %v582 = vunpack.c.h.b16 %v302
    %v583 = vunpack.c.l.b16 %v303
    %v584 = vunpack.c.h.b16 %v303
    %v585 = vunpack.c.l.b16 %v304
    %v586 = vunpack.c.h.b16 %v304
    %v587 = vunpack.c.l.b16 %v305
    %v588 = vunpack.c.h.b16 %v305
    %v589 = vunpack.c.l.b16 %v306
    %v590 = vunpack.c.h.b16 %v306
    %v591 = vunpack.c.l.b16 %v307
    %v592 = vunpack.c.h.b16 %v307
    %v593 = vunpack.c.l.b16 %v308
    %v594 = vunpack.c.h.b16 %v308
    %v595 = vunpack.c.l.b16 %v309
    %v596 = vunpack.c.h.b16 %v309
    %v597 = vunpack.c.l.b16 %v310
    %v598 = vunpack.c.h.b16 %v310
    %v599 = vunpack.c.l.b16 %v311
    %v600 = vunpack.c.h.b16 %v311
    %v601 = vunpack.c.l.b16 %v312
    %v602 = vunpack.c.h.b16 %v312
    %v603 = vunpack.c.l.b16 %v313
    %v604 = vunpack.c.h.b16 %v313
    %v605 = vunpack.c.l.b16 %v314
    %v606 = vunpack.c.h.b16 %v314
    %v607 = vunpack.c.l.b16 %v315
    %v608 = vunpack.c.h.b16 %v315
    %v609 = vunpack.c.l.b16 %v316
    %v610 = vunpack.c.h.b16 %v316
    %v611 = vunpack.c.l.b16 %v317
    %v612 = vunpack.c.h.b16 %v317
    %v613 = vunpack.c.l.b16 %v318
    %v614 = vunpack.c.h.b16 %v318
    %v615 = vunpack.c.l.b16 %v319
    %v616 = vunpack.c.h.b16 %v319
    %v617 = vunpack.c.l.b16 %v320
    %v618 = vunpack.c.h.b16 %v320
    %v619 = vunpack.c.l.b16 %v321
    %v620 = vunpack.c.h.b16 %v321
    %v621 = vunpack.c.l.b16 %v322
    %v622 = vunpack.c.h.b16 %v322
    %v623 = vunpack.c.l.b16 %v323
    %v624 = vunpack.c.h.b16 %v323
    %v625 = vunpack.c.l.b16 %v324
    %v626 = vunpack.c.h.b16 %v324
    %v627 = vunpack.c.l.b16 %v325
    %v628 = vunpack.c.h.b16 %v325
    %v629 = vunpack.c.l.b16 %v326
    %v630 = vunpack.c.h.b16 %v326
    %v631 = vunpack.c.l.b16 %v327
    %v632 = vunpack.c.h.b16 %v327
    %v633 = vunpack.c.l.b16 %v328
    %v634 = vunpack.c.h.b16 %v328
    %v635 = vunpack.c.l.b16 %v329
    %v636 = vunpack.c.h.b16 %v329
    %v637 = vunpack.c.l.b16 %v330
    %v638 = vunpack.c.h.b16 %v330
    %v639 = vunpack.c.l.b16 %v331
    %v640 = vunpack.c.h.b16 %v331
    %v641 = vunpack.c.l.b16 %v332
    %v642 = vunpack.c.h.b16 %v332
    %v643 = vunpack.c.l.b16 %v333
    %v644 = vunpack.c.h.b16 %v333
    %v645 = vunpack.c.l.b16 %v334
    %v646 = vunpack.c.h.b16 %v334
    %v647 = vunpack.c.l.b16 %v335
    %v648 = vunpack.c.h.b16 %v335
    %v649 = vunpack.c.l.b16 %v336
    %v650 = vunpack.c.h.b16 %v336
    %v651 = vunpack.c.l.b16 %v337
    %v652 = vunpack.c.h.b16 %v337
    %v653 = vunpack.c.l.b16 %v338
    %v654 = vunpack.c.h.b16 %v338
    %v655 = vunpack.c.l.b16 %v339
    %v656 = vunpack.c.h.b16 %v339
    %v657 = vunpack.c.l.b16 %v340
    %v658 = vunpack.c.h.b16 %v340
    %v659 = vunpack.c.l.b16 %v341
    %v660 = vunpack.c.h.b16 %v341
    %v661 = vunpack.c.l.b16 %v342
    %v662 = vunpack.c.h.b16 %v342
    %v663 = vunpack.c.l.b16 %v343
    %v664 = vunpack.c.h.b16 %v343
    %v665 = vunpack.c.l.b16 %v344
    %v666 = vunpack.c.h.b16 %v344
    %v667 = vunpack.c.l.b16 %v345
    %v668 = vunpack.c.h.b16 %v345
    %v669 = vunpack.c.l.b16 %v346
    %v670 = vunpack.c.h.b16 %v346
    %v671 = vunpack.c.l.b16 %v347
    %v672 = vunpack.c.h.b16 %v347
    %v673 = vunpack.c.l.b16 %v348
    %v674 = vunpack.c.h.b16 %v348
    %v675 = vunpack.c.l.b16 %v349
    %v676 = vunpack.c.h.b16 %v349
    %v677 = vunpack.c.l.b16 %v350
    %v678 = vunpack.c.h.b16 %v350
    %v679 = vunpack.c.l.b16 %v351
    %v680 = vunpack.c.h.b16 %v351
    %v681 = vunpack.c.l.b16 %v352
    %v682 = vunpack.c.h.b16 %v352
    %v683 = vunpack.c.l.b16 %v353
    %v684 = vunpack.c.h.b16 %v353
    %v685 = vunpack.c.l.b16 %v354
    %v686 = vunpack.c.h.b16 %v354
    %v687 = vunpack.c.l.b16 %v355
    %v688 = vunpack.c.h.b16 %v355
    %v689 = vunpack.c.l.b16 %v356
    %v690 = vunpack.c.h.b16 %v356
    %v691 = vunpack.c.l.b16 %v357
    %v692 = vunpack.c.h.b16 %v357
    %v693 = vunpack.c.l.b16 %v358
    %v694 = vunpack.c.h.b16 %v358
    %v695 = vunpack.c.l.b16 %v359
    %v696 = vunpack.c.h.b16 %v359
    %v697 = vunpack.c.l.b16 %v360
    %v698 = vunpack.c.h.b16 %v360
    %v699 = vunpack.c.l.b16 %v361
    %v700 = vunpack.c.h.b16 %v361
    %v701 = vunpack.c.l.b16 %v362
    %v702 = vunpack.c.h.b16 %v362
    %v703 = vunpack.c.l.b16 %v363
    %v704 = vunpack.c.h.b16 %v363
    %v705 = vunpack.c.l.b16 %v364
    %v706 = vunpack.c.h.b16 %v364
    %v707 = vunpack.c.l.b16 %v365
    %v708 = vunpack.c.h.b16 %v365
    %v709 = vunpack.c.l.b16 %v366
    %v710 = vunpack.c.h.b16 %v366
    %v711 = vunpack.c.l.b16 %v367
    %v712 = vunpack.c.h.b16 %v367
    %v713 = vunpack.c.l.b16 %v368
    %v714 = vunpack.c.h.b16 %v368
    %v715 = vunpack.c.l.b16 %v369
    %v716 = vunpack.c.h.b16 %v369
    %v717 = vunpack.c.l.b16 %v370
    %v718 = vunpack.c.h.b16 %v370
    %v719 = vunpack.c.l.b16 %v371
    %v720 = vunpack.c.h.b16 %v371
    %v721 = vunpack.c.l.b16 %v372
    %v722 = vunpack.c.h.b16 %v372
    %v723 = vunpack.c.l.b16 %v373
    %v724 = vunpack.c.h.b16 %v373
    %v725 = vunpack.c.l.b16 %v374
    %v726 = vunpack.c.h.b16 %v374
    %v727 = vunpack.c.l.b16 %v375
    %v728 = vunpack.c.h.b16 %v375
    %v729 = vunpack.c.l.b16 %v376
    %v730 = vunpack.c.h.b16 %v376
    %v731 = vunpack.c.l.b16 %v377
    %v732 = vunpack.c.h.b16 %v377
    %v733 = vunpack.c.l.b16 %v378
    %v734 = vunpack.c.h.b16 %v378
    %v735 = vunpack.c.l.b16 %v379
    %v736 = vunpack.c.h.b16 %v379
    %v737 = vunpack.c.l.b16 %v380
    %v738 = vunpack.c.h.b16 %v380
    %v739 = vunpack.c.l.b16 %v381
    %v740 = vunpack.c.h.b16 %v381
    %v741 = vunpack.c.l.b16 %v382
    %v742 = vunpack.c.h.b16 %v382
    %v743 = vunpack.c.l.b16 %v383
    %v744 = vunpack.c.h.b16 %v383
    %v745 = vunpack.c.l.b16 %v384
    %v746 = vunpack.c.h.b16 %v384
    %v747 = vunpack.c.l.b16 %v385
    %v748 = vunpack.c.h.b16 %v385
    %v749 = vunpack.c.l.b16 %v386
    %v750 = vunpack.c.h.b16 %v386
    %v751 = vunpack.c.l.b16 %v387
    %v752 = vunpack.c.h.b16 %v387
    %v753 = vunpack.c.l.b16 %v388
    %v754 = vunpack.c.h.b16 %v388
    %v755 = vunpack.c.l.b16 %v389
    %v756 = vunpack.c.h.b16 %v389
    %v757 = vunpack.c.l.b16 %v390
    %v758 = vunpack.c.h.b16 %v390
    %v759 = vunpack.c.l.b16 %v391
    %v760 = vunpack.c.h.b16 %v391
    %v761 = vunpack.c.l.b16 %v392
    %v762 = vunpack.c.h.b16 %v392
    %v763 = vunpack.c.l.b16 %v393
    %v764 = vunpack.c.h.b16 %v393
    %v765 = vunpack.c.l.b16 %v394
    %v766 = vunpack.c.h.b16 %v394
    %v767 = vunpack.c.l.b16 %v395
    %v768 = vunpack.c.h.b16 %v395
    %v769 = vunpack.c.l.b16 %v396
    %v770 = vunpack.c.h.b16 %v396
    %v771 = vunpack.c.l.b16 %v397
    %v772 = vunpack.c.h.b16 %v397
    %v773 = vunpack.c.l.b16 %v398
    %v774 = vunpack.c.h.b16 %v398
    %v775 = vunpack.c.l.b16 %v399
    %v776 = vunpack.c.h.b16 %v399
    %v777 = vunpack.c.l.b16 %v400
    %v778 = vunpack.c.h.b16 %v400
    %v779 = vunpack.c.l.b16 %v401
    %v780 = vunpack.c.h.b16 %v401
    %v781 = vunpack.c.l.b16 %v402
    %v782 = vunpack.c.h.b16 %v402
    %v783 = vunpack.c.l.b16 %v403
    %v784 = vunpack.c.h.b16 %v403
    %v785 = vunpack.c.l.b16 %v404
    %v786 = vunpack.c.h.b16 %v404
    %v787 = vunpack.c.l.b16 %v405
    %v788 = vunpack.c.h.b16 %v405
    %v789 = vunpack.c.l.b16 %v406
    %v790 = vunpack.c.h.b16 %v406
    %v791 = vunpack.c.l.b16 %v407
    %v792 = vunpack.c.h.b16 %v407
    %v793 = vunpack.c.l.b16 %v408
    %v794 = vunpack.c.h.b16 %v408
    %v795 = vunpack.c.l.b16 %v409
    %v796 = vunpack.c.h.b16 %v409
    %v797 = vunpack.c.l.b16 %v410
    %v798 = vunpack.c.h.b16 %v410
    %v799 = vunpack.c.l.b16 %v411
    %v800 = vunpack.c.h.b16 %v411
    %v801 = vunpack.c.l.b16 %v412
    %v802 = vunpack.c.h.b16 %v412
    %v803 = vunpack.c.l.b16 %v413
    %v804 = vunpack.c.h.b16 %v413
    %v805 = vunpack.c.l.b16 %v414
    %v806 = vunpack.c.h.b16 %v414
    %v807 = vunpack.c.l.b16 %v415
    %v808 = vunpack.c.h.b16 %v415
    %v809 = vunpack.c.l.b16 %v416
    %v810 = vunpack.c.h.b16 %v416
    %v811 = vunpack.c.l.b16 %v417
    %v812 = vunpack.c.h.b16 %v417
    %v813 = vunpack.c.l.b16 %v418
    %v814 = vunpack.c.h.b16 %v418
    %v815 = vunpack.c.l.b16 %v419
    %v816 = vunpack.c.h.b16 %v419
    %v817 = vunpack.c.l.b16 %v420
    %v818 = vunpack.c.h.b16 %v420
    %v819 = vunpack.c.l.b16 %v421
    %v820 = vunpack.c.h.b16 %v421
    %v821 = vunpack.c.l.b16 %v422
    %v822 = vunpack.c.h.b16 %v422
    %v823 = vunpack.c.l.b16 %v423
    %v824 = vunpack.c.h.b16 %v423
    %v825 = vunpack.c.l.b16 %v424
    %v826 = vunpack.c.h.b16 %v424
    %v827 = vunpack.c.l.b16 %v425
    %v828 = vunpack.c.h.b16 %v425
    %v829 = vunpack.c.l.b16 %v426
    %v830 = vunpack.c.h.b16 %v426
    %v831 = vunpack.c.l.b16 %v427
    %v832 = vunpack.c.h.b16 %v427
    %v833 = vunpack.c.l.b16 %v428
    %v834 = vunpack.c.h.b16 %v428
    %v835 = vpack.c.b16 %v583, %v579
    %v836 = vpack.c.b16 %v584, %v580
    %v837 = vpack.c.b16 %v585, %v581
    %v838 = vpack.c.b16 %v586, %v582
    %v839 = vpack.c.b16 %v591, %v587
    %v840 = vpack.c.b16 %v592, %v588
    %v841 = vpack.c.b16 %v593, %v589
    %v842 = vpack.c.b16 %v594, %v590
    %v843 = vpack.c.b16 %v599, %v595
    %v844 = vpack.c.b16 %v600, %v596
    %v845 = vpack.c.b16 %v601, %v597
    %v846 = vpack.c.b16 %v602, %v598
    %v847 = vpack.c.b16 %v607, %v603
    %v848 = vpack.c.b16 %v608, %v604
    %v849 = vpack.c.b16 %v609, %v605
    %v850 = vpack.c.b16 %v610, %v606
    %v851 = vpack.c.b16 %v615, %v611
    %v852 = vpack.c.b16 %v616, %v612
    %v853 = vpack.c.b16 %v617, %v613
    %v854 = vpack.c.b16 %v618, %v614
    %v855 = vpack.c.b16 %v623, %v619
    %v856 = vpack.c.b16 %v624, %v620
    %v857 = vpack.c.b16 %v625, %v621
    %v858 = vpack.c.b16 %v626, %v622
    %v859 = vpack.c.b16 %v631, %v627
    %v860 = vpack.c.b16 %v632, %v628
    %v861 = vpack.c.b16 %v633, %v629
    %v862 = vpack.c.b16 %v634, %v630
    %v863 = vpack.c.b16 %v639, %v635
    %v864 = vpack.c.b16 %v640, %v636
    %v865 = vpack.c.b16 %v641, %v637
    %v866 = vpack.c.b16 %v642, %v638
    %v867 = vpack.c.b16 %v647, %v643
    %v868 = vpack.c.b16 %v648, %v644
    %v869 = vpack.c.b16 %v649, %v645
    %v870 = vpack.c.b16 %v650, %v646
    %v871 = vpack.c.b16 %v655, %v651
    %v872 = vpack.c.b16 %v656, %v652
    %v873 = vpack.c.b16 %v657, %v653
    %v874 = vpack.c.b16 %v658, %v654
    %v875 = vpack.c.b16 %v663, %v659
    %v876 = vpack.c.b16 %v664, %v660
    %v877 = vpack.c.b16 %v665, %v661
    %v878 = vpack.c.b16 %v666, %v662
    %v879 = vpack.c.b16 %v671, %v667
    %v880 = vpack.c.b16 %v672, %v668
    %v881 = vpack.c.b16 %v673, %v669
    %v882 = vpack.c.b16 %v674, %v670
    %v883 = vpack.c.b16 %v679, %v675
    %v884 = vpack.c.b16 %v680, %v676
    %v885 = vpack.c.b16 %v681, %v677
    %v886 = vpack.c.b16 %v682, %v678
    %v887 = vpack.c.b16 %v687, %v683
    %v888 = vpack.c.b16 %v688, %v684
    %v889 = vpack.c.b16 %v689, %v685
    %v890 = vpack.c.b16 %v690, %v686
    %v891 = vpack.c.b16 %v695, %v691
    %v892 = vpack.c.b16 %v696, %v692
    %v893 = vpack.c.b16 %v697, %v693
    %v894 = vpack.c.b16 %v698, %v694
    %v895 = vpack.c.b16 %v703, %v699
    %v896 = vpack.c.b16 %v704, %v700
    %v897 = vpack.c.b16 %v705, %v701
    %v898 = vpack.c.b16 %v706, %v702
    %v899 = vpack.c.b16 %v711, %v707
    %v900 = vpack.c.b16 %v712, %v708
    %v901 = vpack.c.b16 %v713, %v709
    %v902 = vpack.c.b16 %v714, %v710
    %v903 = vpack.c.b16 %v719, %v715
    %v904 = vpack.c.b16 %v720, %v716
    %v905 = vpack.c.b16 %v721, %v717
    %v906 = vpack.c.b16 %v722, %v718
    %v907 = vpack.c.b16 %v727, %v723
    %v908 = vpack.c.b16 %v728, %v724
    %v909 = vpack.c.b16 %v729, %v725
    %v910 = vpack.c.b16 %v730, %v726
    %v911 = vpack.c.b16 %v735, %v731
    %v912 = vpack.c.b16 %v736, %v732
    %v913 = vpack.c.b16 %v737, %v733
    %v914 = vpack.c.b16 %v738, %v734
    %v915 = vpack.c.b16 %v743, %v739
    %v916 = vpack.c.b16 %v744, %v740
    %v917 = vpack.c.b16 %v745, %v741
    %v918 = vpack.c.b16 %v746, %v742
    %v919 = vpack.c.b16 %v751, %v747
    %v920 = vpack.c.b16 %v752, %v748
    %v921 = vpack.c.b16 %v753, %v749
    %v922 = vpack.c.b16 %v754, %v750
    %v923 = vpack.c.b16 %v759, %v755
    %v924 = vpack.c.b16 %v760, %v756
    %v925 = vpack.c.b16 %v761, %v757
    %v926 = vpack.c.b16 %v762, %v758
    %v927 = vpack.c.b16 %v767, %v763
    %v928 = vpack.c.b16 %v768, %v764
    %v929 = vpack.c.b16 %v769, %v765
    %v930 = vpack.c.b16 %v770, %v766
    %v931 = vpack.c.b16 %v775, %v771
    %v932 = vpack.c.b16 %v776, %v772
    %v933 = vpack.c.b16 %v777, %v773
    %v934 = vpack.c.b16 %v778, %v774
    %v935 = vpack.c.b16 %v783, %v779
    %v936 = vpack.c.b16 %v784, %v780
    %v937 = vpack.c.b16 %v785, %v781
    %v938 = vpack.c.b16 %v786, %v782
    %v939 = vpack.c.b16 %v791, %v787
    %v940 = vpack.c.b16 %v792, %v788
    %v941 = vpack.c.b16 %v793, %v789
    %v942 = vpack.c.b16 %v794, %v790
    %v943 = vpack.c.b16 %v799, %v795
    %v944 = vpack.c.b16 %v800, %v796
    %v945 = vpack.c.b16 %v801, %v797
    %v946 = vpack.c.b16 %v802, %v798
    %v947 = vpack.c.b16 %v807, %v803
    %v948 = vpack.c.b16 %v808, %v804
    %v949 = vpack.c.b16 %v809, %v805
    %v950 = vpack.c.b16 %v810, %v806
    %v951 = vpack.c.b16 %v815, %v811
    %v952 = vpack.c.b16 %v816, %v812
    %v953 = vpack.c.b16 %v817, %v813
    %v954 = vpack.c.b16 %v818, %v814
    %v955 = vpack.c.b16 %v823, %v819
    %v956 = vpack.c.b16 %v824, %v820
    %v957 = vpack.c.b16 %v825, %v821
    %v958 = vpack.c.b16 %v826, %v822
    %v959 = vpack.c.b16 %v831, %v827
    %v960 = vpack.c.b16 %v832, %v828
    %v961 = vpack.c.b16 %v833, %v829
    %v962 = vpack.c.b16 %v834, %v830
    %1091 = vmatprep.subr.bf16.mxu0 %v836
    %1092 = vmatpush1.bf16.msra.mxu0 %v835
    %1093 = vmatprep.subr.bf16.mxu0 %v840
    %1094 = vmatpush1.bf16.msra.mxu0 %v839
    %1095 = vmatprep.subr.bf16.mxu0 %v844
    %1096 = vmatpush1.bf16.msra.mxu0 %v843
    %1097 = vmatprep.subr.bf16.mxu0 %v848
    %1098 = vmatpush1.bf16.msra.mxu0 %v847
    %1099 = vmatprep.subr.bf16.mxu0 %v852
    %1100 = vmatpush1.bf16.msra.mxu0 %v851
    %1101 = vmatprep.subr.bf16.mxu0 %v856
    %1102 = vmatpush1.bf16.msra.mxu0 %v855
    %1103 = vmatprep.subr.bf16.mxu0 %v860
    %1104 = vmatpush1.bf16.msra.mxu0 %v859
    %1105 = vmatprep.subr.bf16.mxu0 %v864
    %1106 = vmatpush1.bf16.msra.mxu0 %v863
    %1107 = vmatprep.subr.bf16.mxu0 %v868
    %1108 = vmatpush1.bf16.msra.mxu0 %v867
    %1109 = vmatprep.subr.bf16.mxu0 %v872
    %1110 = vmatpush1.bf16.msra.mxu0 %v871
    %1111 = vmatprep.subr.bf16.mxu0 %v876
    %1112 = vmatpush1.bf16.msra.mxu0 %v875
    %1113 = vmatprep.subr.bf16.mxu0 %v880
    %1114 = vmatpush1.bf16.msra.mxu0 %v879
    %1115 = vmatprep.subr.bf16.mxu0 %v884
    %1116 = vmatpush1.bf16.msra.mxu0 %v883
    %1117 = vmatprep.subr.bf16.mxu0 %v888
    %1118 = vmatpush1.bf16.msra.mxu0 %v887
    %1119 = vmatprep.subr.bf16.mxu0 %v892
    %1120 = vmatpush1.bf16.msra.mxu0 %v891
    %1121 = vmatprep.subr.bf16.mxu0 %v896
    %1122 = vmatpush1.bf16.msra.mxu0 %v895
    %1123 = vmatprep.mubr.bf16.mxu0 %v298
    %1124 = vmatmul.mubr.bf16.gmra.mrb[0].mxu0 %v297
    %v1125 = vpop.f32.mrb[0].mxu0
    %v1126 = vadd.f32 %v434, %v1125
    %v1127 = vpop.f32.mrb[0].mxu0
    %v1128 = vadd.f32 %v438, %v1127
    %v1129 = vpop.f32.mrb[0].mxu0
    %v1130 = vadd.f32 %v434, %v1129
    %v1131 = vpop.f32.mrb[0].mxu0
    %v1132 = vadd.f32 %v438, %v1131
    %1133 = vdwg.mxu0
    %1134 = vmatprep.subr.bf16.mxu0 %v900
    %1135 = vmatpush1.bf16.msra.mxu0 %v899
    %1136 = vmatprep.subr.bf16.mxu0 %v904
    %1137 = vmatpush1.bf16.msra.mxu0 %v903
    %1138 = vmatprep.subr.bf16.mxu0 %v908
    %1139 = vmatpush1.bf16.msra.mxu0 %v907
    %1140 = vmatprep.subr.bf16.mxu0 %v912
    %1141 = vmatpush1.bf16.msra.mxu0 %v911
    %1142 = vmatprep.subr.bf16.mxu0 %v916
    %1143 = vmatpush1.bf16.msra.mxu0 %v915
    %1144 = vmatprep.subr.bf16.mxu0 %v920
    %1145 = vmatpush1.bf16.msra.mxu0 %v919
    %1146 = vmatprep.subr.bf16.mxu0 %v924
    %1147 = vmatpush1.bf16.msra.mxu0 %v923
    %1148 = vmatprep.subr.bf16.mxu0 %v928
    %1149 = vmatpush1.bf16.msra.mxu0 %v927
    %1150 = vmatprep.subr.bf16.mxu0 %v932
    %1151 = vmatpush1.bf16.msra.mxu0 %v931
    %1152 = vmatprep.subr.bf16.mxu0 %v936
    %1153 = vmatpush1.bf16.msra.mxu0 %v935
    %1154 = vmatprep.subr.bf16.mxu0 %v940
    %1155 = vmatpush1.bf16.msra.mxu0 %v939
    %1156 = vmatprep.subr.bf16.mxu0 %v944
    %1157 = vmatpush1.bf16.msra.mxu0 %v943
    %1158 = vmatprep.subr.bf16.mxu0 %v948
    %1159 = vmatpush1.bf16.msra.mxu0 %v947
    %1160 = vmatprep.subr.bf16.mxu0 %v952
    %1161 = vmatpush1.bf16.msra.mxu0 %v951
    %1162 = vmatprep.subr.bf16.mxu0 %v956
    %1163 = vmatpush1.bf16.msra.mxu0 %v955
    %1164 = vmatprep.subr.bf16.mxu0 %v960
    %1165 = vmatpush1.bf16.msra.mxu0 %v959
    %1166 = vmatprep.mubr.bf16.mxu0 %v300
    %1167 = vmatmul.mubr.bf16.gmra.mrb[0].mxu0 %v299
    %v1168 = vpop.f32.mrb[0].mxu0
    %v1169 = vadd.f32 %v1126, %v1168
    %v1170 = vpop.f32.mrb[0].mxu0
    %v1171 = vadd.f32 %v1128, %v1170
    %v1172 = vpop.f32.mrb[0].mxu0
    %v1173 = vadd.f32 %v1130, %v1172
    %v1174 = vpop.f32.mrb[0].mxu0
    %v1175 = vadd.f32 %v1132, %v1174
    %1176 = vdwg.mxu0
    %1177 = vmatprep.subr.bf16.mxu0 %v838
    %1178 = vmatpush1.bf16.msra.mxu0 %v837
    %1179 = vmatprep.subr.bf16.mxu0 %v842
    %1180 = vmatpush1.bf16.msra.mxu0 %v841
    %1181 = vmatprep.subr.bf16.mxu0 %v846
    %1182 = vmatpush1.bf16.msra.mxu0 %v845
    %1183 = vmatprep.subr.bf16.mxu0 %v850
    %1184 = vmatpush1.bf16.msra.mxu0 %v849
    %1185 = vmatprep.subr.bf16.mxu0 %v854
    %1186 = vmatpush1.bf16.msra.mxu0 %v853
    %1187 = vmatprep.subr.bf16.mxu0 %v858
    %1188 = vmatpush1.bf16.msra.mxu0 %v857
    %1189 = vmatprep.subr.bf16.mxu0 %v862
    %1190 = vmatpush1.bf16.msra.mxu0 %v861
    %1191 = vmatprep.subr.bf16.mxu0 %v866
    %1192 = vmatpush1.bf16.msra.mxu0 %v865
    %1193 = vmatprep.subr.bf16.mxu0 %v870
    %1194 = vmatpush1.bf16.msra.mxu0 %v869
    %1195 = vmatprep.subr.bf16.mxu0 %v874
    %1196 = vmatpush1.bf16.msra.mxu0 %v873
    %1197 = vmatprep.subr.bf16.mxu0 %v878
    %1198 = vmatpush1.bf16.msra.mxu0 %v877
    %1199 = vmatprep.subr.bf16.mxu0 %v882
    %1200 = vmatpush1.bf16.msra.mxu0 %v881
    %1201 = vmatprep.subr.bf16.mxu0 %v886
    %1202 = vmatpush1.bf16.msra.mxu0 %v885
    %1203 = vmatprep.subr.bf16.mxu0 %v890
    %1204 = vmatpush1.bf16.msra.mxu0 %v889
    %1205 = vmatprep.subr.bf16.mxu0 %v894
    %1206 = vmatpush1.bf16.msra.mxu0 %v893
    %1207 = vmatprep.subr.bf16.mxu0 %v898
    %1208 = vmatpush1.bf16.msra.mxu0 %v897
    %1209 = vmatprep.mubr.bf16.mxu0 %v298
    %1210 = vmatmul.mubr.bf16.gmra.mrb[0].mxu0 %v297
    %v1211 = vpop.f32.mrb[0].mxu0
    %v1212 = vadd.f32 %v442, %v1211
    %v1213 = vpop.f32.mrb[0].mxu0
    %v1214 = vadd.f32 %v446, %v1213
    %v1215 = vpop.f32.mrb[0].mxu0
    %v1216 = vadd.f32 %v442, %v1215
    %v1217 = vpop.f32.mrb[0].mxu0
    %v1218 = vadd.f32 %v446, %v1217
    %1219 = vdwg.mxu0
    %1220 = vmatprep.subr.bf16.mxu0 %v902
    %1221 = vmatpush1.bf16.msra.mxu0 %v901
    %1222 = vmatprep.subr.bf16.mxu0 %v906
    %1223 = vmatpush1.bf16.msra.mxu0 %v905
    %1224 = vmatprep.subr.bf16.mxu0 %v910
    %1225 = vmatpush1.bf16.msra.mxu0 %v909
    %1226 = vmatprep.subr.bf16.mxu0 %v914
    %1227 = vmatpush1.bf16.msra.mxu0 %v913
    %1228 = vmatprep.subr.bf16.mxu0 %v918
    %1229 = vmatpush1.bf16.msra.mxu0 %v917
    %1230 = vmatprep.subr.bf16.mxu0 %v922
    %1231 = vmatpush1.bf16.msra.mxu0 %v921
    %1232 = vmatprep.subr.bf16.mxu0 %v926
    %1233 = vmatpush1.bf16.msra.mxu0 %v925
    %1234 = vmatprep.subr.bf16.mxu0 %v930
    %1235 = vmatpush1.bf16.msra.mxu0 %v929
    %1236 = vmatprep.subr.bf16.mxu0 %v934
    %1237 = vmatpush1.bf16.msra.mxu0 %v933
    %1238 = vmatprep.subr.bf16.mxu0 %v938
    %1239 = vmatpush1.bf16.msra.mxu0 %v937
    %1240 = vmatprep.subr.bf16.mxu0 %v942
    %1241 = vmatpush1.bf16.msra.mxu0 %v941
    %1242 = vmatprep.subr.bf16.mxu0 %v946
    %1243 = vmatpush1.bf16.msra.mxu0 %v945
    %1244 = vmatprep.subr.bf16.mxu0 %v950
    %1245 = vmatpush1.bf16.msra.mxu0 %v949
    %1246 = vmatprep.subr.bf16.mxu0 %v954
    %1247 = vmatpush1.bf16.msra.mxu0 %v953
    %1248 = vmatprep.subr.bf16.mxu0 %v958
    %1249 = vmatpush1.bf16.msra.mxu0 %v957
    %1250 = vmatprep.subr.bf16.mxu0 %v962
    %1251 = vmatpush1.bf16.msra.mxu0 %v961
    %1252 = vmatprep.mubr.bf16.mxu0 %v300
    %1253 = vmatmul.mubr.bf16.gmra.mrb[0].mxu0 %v299
    %v1254 = vpop.f32.mrb[0].mxu0
    %v1255 = vadd.f32 %v1212, %v1254
    %v1256 = vpop.f32.mrb[0].mxu0
    %v1257 = vadd.f32 %v1214, %v1256
    %v1258 = vpop.f32.mrb[0].mxu0
    %v1259 = vadd.f32 %v1216, %v1258
    %v1260 = vpop.f32.mrb[0].mxu0
    %v1261 = vadd.f32 %v1218, %v1260
    %1262 = vdwg.mxu0
    %v1263 = vmax.f32 %v1169, 0.0
    %v1264 = vmax.f32 %v1171, 0.0
    %v1265 = vmax.f32 %v1255, 0.0
    %v1266 = vmax.f32 %v1257, 0.0
    %v1267 = vmax.f32 %v1173, 0.0
    %v1268 = vmax.f32 %v1175, 0.0
    %v1269 = vmax.f32 %v1259, 0.0
    %v1270 = vmax.f32 %v1261, 0.0
    %v1271 = vpack.c.bf16 %v1267, %v1263
    %v1272 = vpack.c.bf16 %v1268, %v1264
    %v1273 = vpack.c.bf16 %v1269, %v1265
    %v1274 = vpack.c.bf16 %v1270, %v1266
    %v1275 = vld [vmem:[#allocation8] sm:$0xff]
    %v1276 = vld [vmem:[#allocation8 + $0x8] sm:$0xff]
    %v1277 = vld [vmem:[#allocation8 + $0x10] sm:$0xff]
    %v1278 = vld [vmem:[#allocation8 + $0x18] sm:$0xff]
    %v1279 = vld [vmem:[#allocation8 + $0x20] sm:$0xff]
    %v1280 = vld [vmem:[#allocation8 + $0x28] sm:$0xff]
    %v1281 = vld [vmem:[#allocation8 + $0x30] sm:$0xff]
    %v1282 = vld [vmem:[#allocation8 + $0x38] sm:$0xff]
    %v1283 = vld [vmem:[#allocation8 + $0x40] sm:$0xff]
    %v1284 = vld [vmem:[#allocation8 + $0x48] sm:$0xff]
    %v1285 = vld [vmem:[#allocation8 + $0x50] sm:$0xff]
    %v1286 = vld [vmem:[#allocation8 + $0x58] sm:$0xff]
    %v1287 = vld [vmem:[#allocation8 + $0x60] sm:$0xff]
    %v1288 = vld [vmem:[#allocation8 + $0x68] sm:$0xff]
    %v1289 = vld [vmem:[#allocation8 + $0x70] sm:$0xff]
    %v1290 = vld [vmem:[#allocation8 + $0x78] sm:$0xff]
    %v1291 = vld [vmem:[#allocation8 + $0x80] sm:$0xff]
    %v1292 = vld [vmem:[#allocation8 + $0x88] sm:$0xff]
    %v1293 = vld [vmem:[#allocation8 + $0x90] sm:$0xff]
    %v1294 = vld [vmem:[#allocation8 + $0x98] sm:$0xff]
    %v1295 = vld [vmem:[#allocation8 + $0xa0] sm:$0xff]
    %v1296 = vld [vmem:[#allocation8 + $0xa8] sm:$0xff]
    %v1297 = vld [vmem:[#allocation8 + $0xb0] sm:$0xff]
    %v1298 = vld [vmem:[#allocation8 + $0xb8] sm:$0xff]
    %v1299 = vld [vmem:[#allocation8 + $0xc0] sm:$0xff]
    %v1300 = vld [vmem:[#allocation8 + $0xc8] sm:$0xff]
    %v1301 = vld [vmem:[#allocation8 + $0xd0] sm:$0xff]
    %v1302 = vld [vmem:[#allocation8 + $0xd8] sm:$0xff]
    %v1303 = vld [vmem:[#allocation8 + $0xe0] sm:$0xff]
    %v1304 = vld [vmem:[#allocation8 + $0xe8] sm:$0xff]
    %v1305 = vld [vmem:[#allocation8 + $0xf0] sm:$0xff]
    %v1306 = vld [vmem:[#allocation8 + $0xf8] sm:$0xff]
    %v1307 = vld [vmem:[#allocation8 + $0x100] sm:$0xff]
    %v1308 = vld [vmem:[#allocation8 + $0x108] sm:$0xff]
    %v1309 = vld [vmem:[#allocation8 + $0x110] sm:$0xff]
    %v1310 = vld [vmem:[#allocation8 + $0x118] sm:$0xff]
    %v1311 = vld [vmem:[#allocation8 + $0x120] sm:$0xff]
    %v1312 = vld [vmem:[#allocation8 + $0x128] sm:$0xff]
    %v1313 = vld [vmem:[#allocation8 + $0x130] sm:$0xff]
    %v1314 = vld [vmem:[#allocation8 + $0x138] sm:$0xff]
    %v1315 = vld [vmem:[#allocation8 + $0x140] sm:$0xff]
    %v1316 = vld [vmem:[#allocation8 + $0x148] sm:$0xff]
    %v1317 = vld [vmem:[#allocation8 + $0x150] sm:$0xff]
    %v1318 = vld [vmem:[#allocation8 + $0x158] sm:$0xff]
    %v1319 = vld [vmem:[#allocation8 + $0x160] sm:$0xff]
    %v1320 = vld [vmem:[#allocation8 + $0x168] sm:$0xff]
    %v1321 = vld [vmem:[#allocation8 + $0x170] sm:$0xff]
    %v1322 = vld [vmem:[#allocation8 + $0x178] sm:$0xff]
    %v1323 = vld [vmem:[#allocation8 + $0x180] sm:$0xff]
    %v1324 = vld [vmem:[#allocation8 + $0x188] sm:$0xff]
    %v1325 = vld [vmem:[#allocation8 + $0x190] sm:$0xff]
    %v1326 = vld [vmem:[#allocation8 + $0x198] sm:$0xff]
    %v1327 = vld [vmem:[#allocation8 + $0x1a0] sm:$0xff]
    %v1328 = vld [vmem:[#allocation8 + $0x1a8] sm:$0xff]
    %v1329 = vld [vmem:[#allocation8 + $0x1b0] sm:$0xff]
    %v1330 = vld [vmem:[#allocation8 + $0x1b8] sm:$0xff]
    %v1331 = vld [vmem:[#allocation8 + $0x1c0] sm:$0xff]
    %v1332 = vld [vmem:[#allocation8 + $0x1c8] sm:$0xff]
    %v1333 = vld [vmem:[#allocation8 + $0x1d0] sm:$0xff]
    %v1334 = vld [vmem:[#allocation8 + $0x1d8] sm:$0xff]
    %v1335 = vld [vmem:[#allocation8 + $0x1e0] sm:$0xff]
    %v1336 = vld [vmem:[#allocation8 + $0x1e8] sm:$0xff]
    %v1337 = vld [vmem:[#allocation8 + $0x1f0] sm:$0xff]
    %v1338 = vld [vmem:[#allocation8 + $0x1f8] sm:$0xff]
    %v1339 = vld [vmem:[%s6] sm:$0x3]
    %v1341 = vlaneseq
    %v1342 = vshrl.u32 %v1341, 7
    %v1343 = vsub.s32 0, %v1342
    %v1344 = vrot.slane %v1339, %v1343
    %v1345 = vlaneseq
    %v1346 = vshrl.u32 %v1345, 7
    %v1347 = vsub.s32 1, %v1346
    %v1348 = vrot.slane %v1339, %v1347
    %v1415 = vunpack.c.l.b16 %v1275
    %v1416 = vunpack.c.h.b16 %v1275
    %v1417 = vunpack.c.l.b16 %v1276
    %v1418 = vunpack.c.h.b16 %v1276
    %v1419 = vunpack.c.l.b16 %v1277
    %v1420 = vunpack.c.h.b16 %v1277
    %v1421 = vunpack.c.l.b16 %v1278
    %v1422 = vunpack.c.h.b16 %v1278
    %v1423 = vunpack.c.l.b16 %v1279
    %v1424 = vunpack.c.h.b16 %v1279
    %v1425 = vunpack.c.l.b16 %v1280
    %v1426 = vunpack.c.h.b16 %v1280
    %v1427 = vunpack.c.l.b16 %v1281
    %v1428 = vunpack.c.h.b16 %v1281
    %v1429 = vunpack.c.l.b16 %v1282
    %v1430 = vunpack.c.h.b16 %v1282
    %v1431 = vunpack.c.l.b16 %v1283
    %v1432 = vunpack.c.h.b16 %v1283
    %v1433 = vunpack.c.l.b16 %v1284
    %v1434 = vunpack.c.h.b16 %v1284
    %v1435 = vunpack.c.l.b16 %v1285
    %v1436 = vunpack.c.h.b16 %v1285
    %v1437 = vunpack.c.l.b16 %v1286
    %v1438 = vunpack.c.h.b16 %v1286
    %v1439 = vunpack.c.l.b16 %v1287
    %v1440 = vunpack.c.h.b16 %v1287
    %v1441 = vunpack.c.l.b16 %v1288
    %v1442 = vunpack.c.h.b16 %v1288
    %v1443 = vunpack.c.l.b16 %v1289
    %v1444 = vunpack.c.h.b16 %v1289
    %v1445 = vunpack.c.l.b16 %v1290
    %v1446 = vunpack.c.h.b16 %v1290
    %v1447 = vunpack.c.l.b16 %v1291
    %v1448 = vunpack.c.h.b16 %v1291
    %v1449 = vunpack.c.l.b16 %v1292
    %v1450 = vunpack.c.h.b16 %v1292
    %v1451 = vunpack.c.l.b16 %v1293
    %v1452 = vunpack.c.h.b16 %v1293
    %v1453 = vunpack.c.l.b16 %v1294
    %v1454 = vunpack.c.h.b16 %v1294
    %v1455 = vunpack.c.l.b16 %v1295
    %v1456 = vunpack.c.h.b16 %v1295
    %v1457 = vunpack.c.l.b16 %v1296
    %v1458 = vunpack.c.h.b16 %v1296
    %v1459 = vunpack.c.l.b16 %v1297
    %v1460 = vunpack.c.h.b16 %v1297
    %v1461 = vunpack.c.l.b16 %v1298
    %v1462 = vunpack.c.h.b16 %v1298
    %v1463 = vunpack.c.l.b16 %v1299
    %v1464 = vunpack.c.h.b16 %v1299
    %v1465 = vunpack.c.l.b16 %v1300
    %v1466 = vunpack.c.h.b16 %v1300
    %v1467 = vunpack.c.l.b16 %v1301
    %v1468 = vunpack.c.h.b16 %v1301
    %v1469 = vunpack.c.l.b16 %v1302
    %v1470 = vunpack.c.h.b16 %v1302
    %v1471 = vunpack.c.l.b16 %v1303
    %v1472 = vunpack.c.h.b16 %v1303
    %v1473 = vunpack.c.l.b16 %v1304
    %v1474 = vunpack.c.h.b16 %v1304
    %v1475 = vunpack.c.l.b16 %v1305
    %v1476 = vunpack.c.h.b16 %v1305
    %v1477 = vunpack.c.l.b16 %v1306
    %v1478 = vunpack.c.h.b16 %v1306
    %v1479 = vunpack.c.l.b16 %v1307
    %v1480 = vunpack.c.h.b16 %v1307
    %v1481 = vunpack.c.l.b16 %v1308
    %v1482 = vunpack.c.h.b16 %v1308
    %v1483 = vunpack.c.l.b16 %v1309
    %v1484 = vunpack.c.h.b16 %v1309
    %v1485 = vunpack.c.l.b16 %v1310
    %v1486 = vunpack.c.h.b16 %v1310
    %v1487 = vunpack.c.l.b16 %v1311
    %v1488 = vunpack.c.h.b16 %v1311
    %v1489 = vunpack.c.l.b16 %v1312
    %v1490 = vunpack.c.h.b16 %v1312
    %v1491 = vunpack.c.l.b16 %v1313
    %v1492 = vunpack.c.h.b16 %v1313
    %v1493 = vunpack.c.l.b16 %v1314
    %v1494 = vunpack.c.h.b16 %v1314
    %v1495 = vunpack.c.l.b16 %v1315
    %v1496 = vunpack.c.h.b16 %v1315
    %v1497 = vunpack.c.l.b16 %v1316
    %v1498 = vunpack.c.h.b16 %v1316
    %v1499 = vunpack.c.l.b16 %v1317
    %v1500 = vunpack.c.h.b16 %v1317
    %v1501 = vunpack.c.l.b16 %v1318
    %v1502 = vunpack.c.h.b16 %v1318
    %v1503 = vunpack.c.l.b16 %v1319
    %v1504 = vunpack.c.h.b16 %v1319
    %v1505 = vunpack.c.l.b16 %v1320
    %v1506 = vunpack.c.h.b16 %v1320
    %v1507 = vunpack.c.l.b16 %v1321
    %v1508 = vunpack.c.h.b16 %v1321
    %v1509 = vunpack.c.l.b16 %v1322
    %v1510 = vunpack.c.h.b16 %v1322
    %v1511 = vunpack.c.l.b16 %v1323
    %v1512 = vunpack.c.h.b16 %v1323
    %v1513 = vunpack.c.l.b16 %v1324
    %v1514 = vunpack.c.h.b16 %v1324
    %v1515 = vunpack.c.l.b16 %v1325
    %v1516 = vunpack.c.h.b16 %v1325
    %v1517 = vunpack.c.l.b16 %v1326
    %v1518 = vunpack.c.h.b16 %v1326
    %v1519 = vunpack.c.l.b16 %v1327
    %v1520 = vunpack.c.h.b16 %v1327
    %v1521 = vunpack.c.l.b16 %v1328
    %v1522 = vunpack.c.h.b16 %v1328
    %v1523 = vunpack.c.l.b16 %v1329
    %v1524 = vunpack.c.h.b16 %v1329
    %v1525 = vunpack.c.l.b16 %v1330
    %v1526 = vunpack.c.h.b16 %v1330
    %v1527 = vunpack.c.l.b16 %v1331
    %v1528 = vunpack.c.h.b16 %v1331
    %v1529 = vunpack.c.l.b16 %v1332
    %v1530 = vunpack.c.h.b16 %v1332
    %v1531 = vunpack.c.l.b16 %v1333
    %v1532 = vunpack.c.h.b16 %v1333
    %v1533 = vunpack.c.l.b16 %v1334
    %v1534 = vunpack.c.h.b16 %v1334
    %v1535 = vunpack.c.l.b16 %v1335
    %v1536 = vunpack.c.h.b16 %v1335
    %v1537 = vunpack.c.l.b16 %v1336
    %v1538 = vunpack.c.h.b16 %v1336
    %v1539 = vunpack.c.l.b16 %v1337
    %v1540 = vunpack.c.h.b16 %v1337
    %v1541 = vunpack.c.l.b16 %v1338
    %v1542 = vunpack.c.h.b16 %v1338
    %v1543 = vpack.c.b16 %v1417, %v1415
    %v1544 = vpack.c.b16 %v1418, %v1416
    %v1545 = vpack.c.b16 %v1421, %v1419
    %v1546 = vpack.c.b16 %v1422, %v1420
    %v1547 = vpack.c.b16 %v1425, %v1423
    %v1548 = vpack.c.b16 %v1426, %v1424
    %v1549 = vpack.c.b16 %v1429, %v1427
    %v1550 = vpack.c.b16 %v1430, %v1428
    %v1551 = vpack.c.b16 %v1433, %v1431
    %v1552 = vpack.c.b16 %v1434, %v1432
    %v1553 = vpack.c.b16 %v1437, %v1435
    %v1554 = vpack.c.b16 %v1438, %v1436
    %v1555 = vpack.c.b16 %v1441, %v1439
    %v1556 = vpack.c.b16 %v1442, %v1440
    %v1557 = vpack.c.b16 %v1445, %v1443
    %v1558 = vpack.c.b16 %v1446, %v1444
    %v1559 = vpack.c.b16 %v1449, %v1447
    %v1560 = vpack.c.b16 %v1450, %v1448
    %v1561 = vpack.c.b16 %v1453, %v1451
    %v1562 = vpack.c.b16 %v1454, %v1452
    %v1563 = vpack.c.b16 %v1457, %v1455
    %v1564 = vpack.c.b16 %v1458, %v1456
    %v1565 = vpack.c.b16 %v1461, %v1459
    %v1566 = vpack.c.b16 %v1462, %v1460
    %v1567 = vpack.c.b16 %v1465, %v1463
    %v1568 = vpack.c.b16 %v1466, %v1464
    %v1569 = vpack.c.b16 %v1469, %v1467
    %v1570 = vpack.c.b16 %v1470, %v1468
    %v1571 = vpack.c.b16 %v1473, %v1471
    %v1572 = vpack.c.b16 %v1474, %v1472
    %v1573 = vpack.c.b16 %v1477, %v1475
    %v1574 = vpack.c.b16 %v1478, %v1476
    %v1575 = vpack.c.b16 %v1481, %v1479
    %v1576 = vpack.c.b16 %v1482, %v1480
    %v1577 = vpack.c.b16 %v1485, %v1483
    %v1578 = vpack.c.b16 %v1486, %v1484
    %v1579 = vpack.c.b16 %v1489, %v1487
    %v1580 = vpack.c.b16 %v1490, %v1488
    %v1581 = vpack.c.b16 %v1493, %v1491
    %v1582 = vpack.c.b16 %v1494, %v1492
    %v1583 = vpack.c.b16 %v1497, %v1495
    %v1584 = vpack.c.b16 %v1498, %v1496
    %v1585 = vpack.c.b16 %v1501, %v1499
    %v1586 = vpack.c.b16 %v1502, %v1500
    %v1587 = vpack.c.b16 %v1505, %v1503
    %v1588 = vpack.c.b16 %v1506, %v1504
    %v1589 = vpack.c.b16 %v1509, %v1507
    %v1590 = vpack.c.b16 %v1510, %v1508
    %v1591 = vpack.c.b16 %v1513, %v1511
    %v1592 = vpack.c.b16 %v1514, %v1512
    %v1593 = vpack.c.b16 %v1517, %v1515
    %v1594 = vpack.c.b16 %v1518, %v1516
    %v1595 = vpack.c.b16 %v1521, %v1519
    %v1596 = vpack.c.b16 %v1522, %v1520
    %v1597 = vpack.c.b16 %v1525, %v1523
    %v1598 = vpack.c.b16 %v1526, %v1524
    %v1599 = vpack.c.b16 %v1529, %v1527
    %v1600 = vpack.c.b16 %v1530, %v1528
    %v1601 = vpack.c.b16 %v1533, %v1531
    %v1602 = vpack.c.b16 %v1534, %v1532
    %v1603 = vpack.c.b16 %v1537, %v1535
    %v1604 = vpack.c.b16 %v1538, %v1536
    %v1605 = vpack.c.b16 %v1541, %v1539
    %v1606 = vpack.c.b16 %v1542, %v1540
    %1671 = vmatprep.subr.bf16.mxu0 %v1544
    %1672 = vmatpush1.bf16.msra.mxu0 %v1543
    %1673 = vmatprep.subr.bf16.mxu0 %v1546
    %1674 = vmatpush1.bf16.msra.mxu0 %v1545
    %1675 = vmatprep.subr.bf16.mxu0 %v1548
    %1676 = vmatpush1.bf16.msra.mxu0 %v1547
    %1677 = vmatprep.subr.bf16.mxu0 %v1550
    %1678 = vmatpush1.bf16.msra.mxu0 %v1549
    %1679 = vmatprep.subr.bf16.mxu0 %v1552
    %1680 = vmatpush1.bf16.msra.mxu0 %v1551
    %1681 = vmatprep.subr.bf16.mxu0 %v1554
    %1682 = vmatpush1.bf16.msra.mxu0 %v1553
    %1683 = vmatprep.subr.bf16.mxu0 %v1556
    %1684 = vmatpush1.bf16.msra.mxu0 %v1555
    %1685 = vmatprep.subr.bf16.mxu0 %v1558
    %1686 = vmatpush1.bf16.msra.mxu0 %v1557
    %1687 = vmatprep.subr.bf16.mxu0 %v1560
    %1688 = vmatpush1.bf16.msra.mxu0 %v1559
    %1689 = vmatprep.subr.bf16.mxu0 %v1562
    %1690 = vmatpush1.bf16.msra.mxu0 %v1561
    %1691 = vmatprep.subr.bf16.mxu0 %v1564
    %1692 = vmatpush1.bf16.msra.mxu0 %v1563
    %1693 = vmatprep.subr.bf16.mxu0 %v1566
    %1694 = vmatpush1.bf16.msra.mxu0 %v1565
    %1695 = vmatprep.subr.bf16.mxu0 %v1568
    %1696 = vmatpush1.bf16.msra.mxu0 %v1567
    %1697 = vmatprep.subr.bf16.mxu0 %v1570
    %1698 = vmatpush1.bf16.msra.mxu0 %v1569
    %1699 = vmatprep.subr.bf16.mxu0 %v1572
    %1700 = vmatpush1.bf16.msra.mxu0 %v1571
    %1701 = vmatprep.subr.bf16.mxu0 %v1574
    %1702 = vmatpush1.bf16.msra.mxu0 %v1573
    %1703 = vmatprep.mubr.bf16.mxu0 %v1272
    %1704 = vmatmul.mubr.bf16.gmra.mrb[0].mxu0 %v1271
    %v1705 = vpop.f32.mrb[0].mxu0
    %v1706 = vadd.f32 %v1344, %v1705
    %v1707 = vpop.f32.mrb[0].mxu0
    %v1708 = vadd.f32 %v1348, %v1707
    %v1709 = vpop.f32.mrb[0].mxu0
    %v1710 = vadd.f32 %v1344, %v1709
    %v1711 = vpop.f32.mrb[0].mxu0
    %v1712 = vadd.f32 %v1348, %v1711
    %1713 = vdwg.mxu0
    %1714 = vmatprep.subr.bf16.mxu0 %v1576
    %1715 = vmatpush1.bf16.msra.mxu0 %v1575
    %1716 = vmatprep.subr.bf16.mxu0 %v1578
    %1717 = vmatpush1.bf16.msra.mxu0 %v1577
    %1718 = vmatprep.subr.bf16.mxu0 %v1580
    %1719 = vmatpush1.bf16.msra.mxu0 %v1579
    %1720 = vmatprep.subr.bf16.mxu0 %v1582
    %1721 = vmatpush1.bf16.msra.mxu0 %v1581
    %1722 = vmatprep.subr.bf16.mxu0 %v1584
    %1723 = vmatpush1.bf16.msra.mxu0 %v1583
    %1724 = vmatprep.subr.bf16.mxu0 %v1586
    %1725 = vmatpush1.bf16.msra.mxu0 %v1585
    %1726 = vmatprep.subr.bf16.mxu0 %v1588
    %1727 = vmatpush1.bf16.msra.mxu0 %v1587
    %1728 = vmatprep.subr.bf16.mxu0 %v1590
    %1729 = vmatpush1.bf16.msra.mxu0 %v1589
    %1730 = vmatprep.subr.bf16.mxu0 %v1592
    %1731 = vmatpush1.bf16.msra.mxu0 %v1591
    %1732 = vmatprep.subr.bf16.mxu0 %v1594
    %1733 = vmatpush1.bf16.msra.mxu0 %v1593
    %1734 = vmatprep.subr.bf16.mxu0 %v1596
    %1735 = vmatpush1.bf16.msra.mxu0 %v1595
    %1736 = vmatprep.subr.bf16.mxu0 %v1598
    %1737 = vmatpush1.bf16.msra.mxu0 %v1597
    %1738 = vmatprep.subr.bf16.mxu0 %v1600
    %1739 = vmatpush1.bf16.msra.mxu0 %v1599
    %1740 = vmatprep.subr.bf16.mxu0 %v1602
    %1741 = vmatpush1.bf16.msra.mxu0 %v1601
    %1742 = vmatprep.subr.bf16.mxu0 %v1604
    %1743 = vmatpush1.bf16.msra.mxu0 %v1603
    %1744 = vmatprep.subr.bf16.mxu0 %v1606
    %1745 = vmatpush1.bf16.msra.mxu0 %v1605
    %1746 = vmatprep.mubr.bf16.mxu0 %v1274
    %1747 = vmatmul.mubr.bf16.gmra.mrb[0].mxu0 %v1273
    %v1748 = vpop.f32.mrb[0].mxu0
    %v1749 = vadd.f32 %v1706, %v1748
    %v1750 = vpop.f32.mrb[0].mxu0
    %v1751 = vadd.f32 %v1708, %v1750
    %v1752 = vpop.f32.mrb[0].mxu0
    %v1753 = vadd.f32 %v1710, %v1752
    %v1754 = vpop.f32.mrb[0].mxu0
    %v1755 = vadd.f32 %v1712, %v1754
    %1756 = vdwg.mxu0
    %v1757 = vmax.f32 %v1749, 0.0
    %v1758 = vmax.f32 %v1751, 0.0
    %v1759 = vmax.f32 %v1753, 0.0
    %v1760 = vmax.f32 %v1755, 0.0
    %v1761 = vpack.c.bf16 %v1759, %v1757
    %v1762 = vpack.c.bf16 %v1760, %v1758
    %v1763 = vld [vmem:[#allocation10] sm:$0xf]
    %v1764 = vld [vmem:[#allocation10 + $0x4] sm:$0xf]
    %v1765 = vld [vmem:[#allocation10 + $0x8] sm:$0xf]
    %v1766 = vld [vmem:[#allocation10 + $0xc] sm:$0xf]
    %v1767 = vld [vmem:[#allocation10 + $0x10] sm:$0xf]
    %v1768 = vld [vmem:[#allocation10 + $0x14] sm:$0xf]
    %v1769 = vld [vmem:[#allocation10 + $0x18] sm:$0xf]
    %v1770 = vld [vmem:[#allocation10 + $0x1c] sm:$0xf]
    %v1771 = vld [vmem:[#allocation10 + $0x20] sm:$0xf]
    %v1772 = vld [vmem:[#allocation10 + $0x24] sm:$0xf]
    %v1773 = vld [vmem:[#allocation10 + $0x28] sm:$0xf]
    %v1774 = vld [vmem:[#allocation10 + $0x2c] sm:$0xf]
    %v1775 = vld [vmem:[#allocation10 + $0x30] sm:$0xf]
    %v1776 = vld [vmem:[#allocation10 + $0x34] sm:$0xf]
    %v1777 = vld [vmem:[#allocation10 + $0x38] sm:$0xf]
    %v1778 = vld [vmem:[#allocation10 + $0x3c] sm:$0xf]
    %v1779 = vld [vmem:[#allocation10 + $0x40] sm:$0xf]
    %v1780 = vld [vmem:[#allocation10 + $0x44] sm:$0xf]
    %v1781 = vld [vmem:[#allocation10 + $0x48] sm:$0xf]
    %v1782 = vld [vmem:[#allocation10 + $0x4c] sm:$0xf]
    %v1783 = vld [vmem:[#allocation10 + $0x50] sm:$0xf]
    %v1784 = vld [vmem:[#allocation10 + $0x54] sm:$0xf]
    %v1785 = vld [vmem:[#allocation10 + $0x58] sm:$0xf]
    %v1786 = vld [vmem:[#allocation10 + $0x5c] sm:$0xf]
    %v1787 = vld [vmem:[#allocation10 + $0x60] sm:$0xf]
    %v1788 = vld [vmem:[#allocation10 + $0x64] sm:$0xf]
    %v1789 = vld [vmem:[#allocation10 + $0x68] sm:$0xf]
    %v1790 = vld [vmem:[#allocation10 + $0x6c] sm:$0xf]
    %v1791 = vld [vmem:[#allocation10 + $0x70] sm:$0xf]
    %v1792 = vld [vmem:[#allocation10 + $0x74] sm:$0xf]
    %v1793 = vld [vmem:[#allocation10 + $0x78] sm:$0xf]
    %v1794 = vld [vmem:[#allocation10 + $0x7c] sm:$0xf]
    %v1795 = vld [vmem:[%s8] sm:$0x1]
    %v1797 = vlaneseq
    %v1798 = vshrl.u32 %v1797, 7
    %v1799 = vsub.s32 0, %v1798
    %v1800 = vrot.slane %v1795, %v1799
    %v1834 = vunpack.c.l.b16 %v1763
    %v1835 = vunpack.c.l.b16 %v1764
    %v1836 = vunpack.c.l.b16 %v1765
    %v1837 = vunpack.c.l.b16 %v1766
    %v1838 = vunpack.c.l.b16 %v1767
    %v1839 = vunpack.c.l.b16 %v1768
    %v1840 = vunpack.c.l.b16 %v1769
    %v1841 = vunpack.c.l.b16 %v1770
    %v1842 = vunpack.c.l.b16 %v1771
    %v1843 = vunpack.c.l.b16 %v1772
    %v1844 = vunpack.c.l.b16 %v1773
    %v1845 = vunpack.c.l.b16 %v1774
    %v1846 = vunpack.c.l.b16 %v1775
    %v1847 = vunpack.c.l.b16 %v1776
    %v1848 = vunpack.c.l.b16 %v1777
    %v1849 = vunpack.c.l.b16 %v1778
    %v1850 = vunpack.c.l.b16 %v1779
    %v1851 = vunpack.c.l.b16 %v1780
    %v1852 = vunpack.c.l.b16 %v1781
    %v1853 = vunpack.c.l.b16 %v1782
    %v1854 = vunpack.c.l.b16 %v1783
    %v1855 = vunpack.c.l.b16 %v1784
    %v1856 = vunpack.c.l.b16 %v1785
    %v1857 = vunpack.c.l.b16 %v1786
    %v1858 = vunpack.c.l.b16 %v1787
    %v1859 = vunpack.c.l.b16 %v1788
    %v1860 = vunpack.c.l.b16 %v1789
    %v1861 = vunpack.c.l.b16 %v1790
    %v1862 = vunpack.c.l.b16 %v1791
    %v1863 = vunpack.c.l.b16 %v1792
    %v1864 = vunpack.c.l.b16 %v1793
    %v1865 = vunpack.c.l.b16 %v1794
    %v1866 = vpack.c.b16 %v1835, %v1834
    %v1867 = vpack.c.b16 %v1837, %v1836
    %v1868 = vpack.c.b16 %v1839, %v1838
    %v1869 = vpack.c.b16 %v1841, %v1840
    %v1870 = vpack.c.b16 %v1843, %v1842
    %v1871 = vpack.c.b16 %v1845, %v1844
    %v1872 = vpack.c.b16 %v1847, %v1846
    %v1873 = vpack.c.b16 %v1849, %v1848
    %v1874 = vpack.c.b16 %v1851, %v1850
    %v1875 = vpack.c.b16 %v1853, %v1852
    %v1876 = vpack.c.b16 %v1855, %v1854
    %v1877 = vpack.c.b16 %v1857, %v1856
    %v1878 = vpack.c.b16 %v1859, %v1858
    %v1879 = vpack.c.b16 %v1861, %v1860
    %v1880 = vpack.c.b16 %v1863, %v1862
    %v1881 = vpack.c.b16 %v1865, %v1864
    %1898 = vmatprep.subr.bf16.mxu0 0
    %1899 = vmatpush1.bf16.msra.mxu0 %v1866
    %1900 = vmatprep.subr.bf16.mxu0 0
    %1901 = vmatpush1.bf16.msra.mxu0 %v1867
    %1902 = vmatprep.subr.bf16.mxu0 0
    %1903 = vmatpush1.bf16.msra.mxu0 %v1868
    %1904 = vmatprep.subr.bf16.mxu0 0
    %1905 = vmatpush1.bf16.msra.mxu0 %v1869
    %1906 = vmatprep.subr.bf16.mxu0 0
    %1907 = vmatpush1.bf16.msra.mxu0 %v1870
    %1908 = vmatprep.subr.bf16.mxu0 0
    %1909 = vmatpush1.bf16.msra.mxu0 %v1871
    %1910 = vmatprep.subr.bf16.mxu0 0
    %1911 = vmatpush1.bf16.msra.mxu0 %v1872
    %1912 = vmatprep.subr.bf16.mxu0 0
    %1913 = vmatpush1.bf16.msra.mxu0 %v1873
    %1914 = vmatprep.subr.bf16.mxu0 0
    %1915 = vmatpush1.bf16.msra.mxu0 %v1874
    %1916 = vmatprep.subr.bf16.mxu0 0
    %1917 = vmatpush1.bf16.msra.mxu0 %v1875
    %1918 = vmatprep.subr.bf16.mxu0 0
    %1919 = vmatpush1.bf16.msra.mxu0 %v1876
    %1920 = vmatprep.subr.bf16.mxu0 0
    %1921 = vmatpush1.bf16.msra.mxu0 %v1877
    %1922 = vmatprep.subr.bf16.mxu0 0
    %1923 = vmatpush1.bf16.msra.mxu0 %v1878
    %1924 = vmatprep.subr.bf16.mxu0 0
    %1925 = vmatpush1.bf16.msra.mxu0 %v1879
    %1926 = vmatprep.subr.bf16.mxu0 0
    %1927 = vmatpush1.bf16.msra.mxu0 %v1880
    %1928 = vmatprep.subr.bf16.mxu0 0
    %1929 = vmatpush1.bf16.msra.mxu0 %v1881
    %1930 = vmatprep.mubr.bf16.mxu0 %v1762
    %1931 = vmatmul.mubr.bf16.gmra.mrb[0].mxu0 %v1761
    %v1932 = vpop.f32.mrb[0].mxu0
    %v1933 = vadd.f32 %v1800, %v1932
    %v1934 = vpop.f32.mrb[0].mxu0
    %v1935 = vpop.f32.mrb[0].mxu0
    %v1936 = vadd.f32 %v1800, %v1935
    %v1937 = vpop.f32.mrb[0].mxu0
    %1938 = vdwg.mxu0
    %v1939 = vmax.f32 %v1933, 0.0
    %v1940 = vmax.f32 %v1936, 0.0
    %v1941 = vpack.c.bf16 %v1940, %v1939
    %v1942 = vld [vmem:[#allocation11] sm:$0xf]
    %v1943 = vld [vmem:[#allocation11 + $0x4] sm:$0xf]
    %v1944 = vld [vmem:[#allocation11 + $0x8] sm:$0xf]
    %v1945 = vld [vmem:[#allocation11 + $0xc] sm:$0xf]
    %v1946 = vld [vmem:[#allocation11 + $0x10] sm:$0xf]
    %v1947 = vld [vmem:[#allocation11 + $0x14] sm:$0xf]
    %v1948 = vld [vmem:[#allocation11 + $0x18] sm:$0xf]
    %v1949 = vld [vmem:[#allocation11 + $0x1c] sm:$0xf]
    %v1950 = vld [vmem:[#allocation11 + $0x20] sm:$0xf]
    %v1951 = vld [vmem:[#allocation11 + $0x24] sm:$0xf]
    %v1952 = vld [vmem:[#allocation11 + $0x28] sm:$0xf]
    %v1953 = vld [vmem:[#allocation11 + $0x2c] sm:$0xf]
    %v1954 = vld [vmem:[#allocation11 + $0x30] sm:$0xf]
    %v1955 = vld [vmem:[#allocation11 + $0x34] sm:$0xf]
    %v1956 = vld [vmem:[#allocation11 + $0x38] sm:$0xf]
    %v1957 = vld [vmem:[#allocation11 + $0x3c] sm:$0xf]
    %v1958 = vld [vmem:[%s10] sm:$0x1]
    %v1960 = vlaneseq
    %v1961 = vshrl.u32 %v1960, 7
    %v1962 = vsub.s32 0, %v1961
    %v1963 = vrot.slane %v1958, %v1962
    %v1981 = vunpack.c.l.b16 %v1942
    %v1982 = vunpack.c.l.b16 %v1943
    %v1983 = vunpack.c.l.b16 %v1944
    %v1984 = vunpack.c.l.b16 %v1945
    %v1985 = vunpack.c.l.b16 %v1946
    %v1986 = vunpack.c.l.b16 %v1947
    %v1987 = vunpack.c.l.b16 %v1948
    %v1988 = vunpack.c.l.b16 %v1949
    %v1989 = vunpack.c.l.b16 %v1950
    %v1990 = vunpack.c.l.b16 %v1951
    %v1991 = vunpack.c.l.b16 %v1952
    %v1992 = vunpack.c.l.b16 %v1953
    %v1993 = vunpack.c.l.b16 %v1954
    %v1994 = vunpack.c.l.b16 %v1955
    %v1995 = vunpack.c.l.b16 %v1956
    %v1996 = vunpack.c.l.b16 %v1957
    %v1997 = vpack.c.b16 %v1982, %v1981
    %v1998 = vpack.c.b16 %v1984, %v1983
    %v1999 = vpack.c.b16 %v1986, %v1985
    %v2000 = vpack.c.b16 %v1988, %v1987
    %v2001 = vpack.c.b16 %v1990, %v1989
    %v2002 = vpack.c.b16 %v1992, %v1991
    %v2003 = vpack.c.b16 %v1994, %v1993
    %v2004 = vpack.c.b16 %v1996, %v1995
    %2013 = vmatprep.subr.bf16.mxu0 0
    %2014 = vmatpush1.bf16.msra.mxu0 %v1997
    %2015 = vmatprep.subr.bf16.mxu0 0
    %2016 = vmatpush1.bf16.msra.mxu0 %v1998
    %2017 = vmatprep.subr.bf16.mxu0 0
    %2018 = vmatpush1.bf16.msra.mxu0 %v1999
    %2019 = vmatprep.subr.bf16.mxu0 0
    %2020 = vmatpush1.bf16.msra.mxu0 %v2000
    %2021 = vmatprep.subr.bf16.mxu0 0
    %2022 = vmatpush1.bf16.msra.mxu0 %v2001
    %2023 = vmatprep.subr.bf16.mxu0 0
    %2024 = vmatpush1.bf16.msra.mxu0 %v2002
    %2025 = vmatprep.subr.bf16.mxu0 0
    %2026 = vmatpush1.bf16.msra.mxu0 %v2003
    %2027 = vmatprep.subr.bf16.mxu0 0
    %2028 = vmatpush1.bf16.msra.mxu0 %v2004
    %2029 = vmatprep.subr.bf16.mxu0 0
    %2030 = vmatpush1.bf16.msra.mxu0 0
    %2031 = vmatprep.subr.bf16.mxu0 0
    %2032 = vmatpush1.bf16.msra.mxu0 0
    %2033 = vmatprep.subr.bf16.mxu0 0
    %2034 = vmatpush1.bf16.msra.mxu0 0
    %2035 = vmatprep.subr.bf16.mxu0 0
    %2036 = vmatpush1.bf16.msra.mxu0 0
    %2037 = vmatprep.subr.bf16.mxu0 0
    %2038 = vmatpush1.bf16.msra.mxu0 0
    %2039 = vmatprep.subr.bf16.mxu0 0
    %2040 = vmatpush1.bf16.msra.mxu0 0
    %2041 = vmatprep.subr.bf16.mxu0 0
    %2042 = vmatpush1.bf16.msra.mxu0 0
    %2043 = vmatprep.subr.bf16.mxu0 0
    %2044 = vmatpush1.bf16.msra.mxu0 0
    %2045 = vmatprep.mubr.bf16.mxu0 0
    %2046 = vmatmul.mubr.bf16.gmra.mrb[0].mxu0 %v1941
    %v2047 = vpop.f32.mrb[0].mxu0
    %v2048 = vadd.f32 %v1963, %v2047
    %v2049 = vpop.f32.mrb[0].mxu0
    %v2050 = vpop.f32.mrb[0].mxu0
    %v2051 = vadd.f32 %v1963, %v2050
    %v2052 = vpop.f32.mrb[0].mxu0
    %2053 = vdwg.mxu0
    %v2054 = vpack.c.bf16 %v2051, %v2048
    %v2056 = vunpack.c.l.b16 %v2054
    %v2057 = vunpack.c.h.b16 %v2054
    %v2058 = vpack.c.b16 %v2056, %v2056
    %v2059 = vpack.c.b16 %v2057, %v2057
    %2062 = vst [vmem:[#allocation13] sm:$0xf] %v2058
    %2063 = vst [vmem:[#allocation13 + $0x4] sm:$0xf] %v2059
    // Predicated region
    $region70: #{tpu_custom_call.1} parent=1 // pred_check
      _
    $region71: #{tpu_custom_call.1} parent=1 // pred_check_branch
      %2065 = sbr.rel (0) target = $region73
    $region72: #{tpu_custom_call.1} parent=1 // pred_region
      %s2067 = ssub.s32 128, 128
      %2068 = vsyncadd [#allocation4], %s2067
      %s2069 = sshll.u32 [#allocation13], 4
      %s2070 = int_to_ptr.vmem [resolvable:$true] %s2069
      %2075 = dma.vmem_to_hbm [thread:$0]  %s2070, 128, %s11, [#allocation4], 64, 64, 4
    $region73: #{tpu_custom_call.1} parent=1 // pred_fallthru
      _
    // Predicated region
    $region74: #{tpu_custom_call.1} parent=1 // pred_check
      _
    $region75: #{tpu_custom_call.1} parent=1 // pred_check_branch
      %2077 = sbr.rel (0) target = $region77
    $region76: #{tpu_custom_call.1} parent=1 // pred_region
      %2078 = dma.done [#allocation4], 128
    $region77: #{tpu_custom_call.1} parent=1 // pred_fallthru
      _
    %2079 = vsyncpa [#allocation3], 1
    %2080 = vsyncpa [#allocation6], 1
    %2081 = vsyncpa [#allocation9], 1
    %2082 = vsyncpa [#allocation12], 1
    %2083 = vsyncpa [#allocation4], 1

</llo_original>
